<compile_context>
chip_gen: v6e
topology: v6e:2x2x1
jax: 0.10.0
libtpu: 0.0.40
codegen_flags: <defaults>
</compile_context>

<pallas_src>
import jax
import jax.numpy as jnp
from jax.experimental import pallas as pl
from jax.experimental.pallas import tpu as pltpu


_LEAKY_SLOPE = 0.01  # torch.nn.LeakyReLU default


def _make_resblock_kernel(B, H, W, C, dilations, pad):
    n_layers = len(dilations)
    WC = W * C
    BH = B * H

    def shift_cols(rows, s):
        # rows: (BH, WC) bf16 tile.  Returns the tile shifted by `s` image
        # columns with zero fill (emulates zero padding along W).  Lowers to
        # lane shifts + a zero strip concat (XLU-slot work, like pltpu.roll).
        if s == 0:
            return rows
        z = jnp.zeros((BH, abs(s) * C), rows.dtype)
        if s > 0:
            return jnp.concatenate([rows[:, s * C:], z], axis=1)
        return jnp.concatenate([z, rows[:, :WC + s * C]], axis=1)

    def kernel(x_ref, w_ref, b_ref, out_ref, buf0, buf1):
        # x_ref/out_ref: (B, H, W*C) fp32.  buf0/buf1: (B, H+2*pad, W*C) bf16.
        # Zero only the halo row strips (cheap, re-done every step so it is
        # correct regardless of how the grid is split across cores).
        halo = jnp.zeros((B, pad, WC), jnp.bfloat16)
        for buf in (buf0, buf1):
            buf[:, 0:pad, :] = halo
            buf[:, pad + H:pad + H + pad, :] = halo

        x = x_ref[...]                                     # fp32 (B, H, WC)
        buf0[:, pad:pad + H, :] = x.astype(jnp.bfloat16)

        bufs = (buf0, buf1)
        acc = None
        for l, d in enumerate(dilations):
            src = bufs[l % 2]
            dst = bufs[(l + 1) % 2]

            # Build the lane-dense "im2col" LHS directly in vregs:
            # 3 row loads per layer, 9 shifted tap tiles of shape (BH, WC).
            taps = []
            for dy in range(3):
                r0 = pad + (dy - 1) * d                     # always in-bounds
                rows = src[:, r0:r0 + H, :].reshape(BH, WC)
                for dx in range(3):
                    taps.append(shift_cols(rows, (dx - 1) * d))
            lhs = jnp.concatenate(taps, axis=1)             # (BH, 9*WC) bf16

            # Whole dilated conv as one lane-dense MXU matmul, fp32 accum.
            acc = jnp.dot(lhs, w_ref[l], preferred_element_type=jnp.float32)
            acc = acc + b_ref[l]                            # (1, WC) broadcast

            if l < n_layers - 1:
                acc = jnp.where(acc >= 0, acc, _LEAKY_SLOPE * acc)
                dst[:, pad:pad + H, :] = (
                    acc.reshape(B, H, WC).astype(jnp.bfloat16))

        # Last conv: no activation, fused residual add, single HBM write.
        out_ref[...] = (acc.reshape(B, H, WC) + x).astype(out_ref.dtype)

    return kernel


def dilated_resblock_forward(x_nchw, params, batch_tile=None):
    """Forward pass of Dilated_Resblock.  Input/output are NCHW float32."""
    x_nhwc = jnp.transpose(x_nchw, (0, 2, 3, 1)).astype(jnp.float32)
    N, H, W, C = x_nhwc.shape
    dilations = tuple(d for (_, _, d) in params)
    n_layers = len(params)
    pad = max(dilations)
    WC = W * C

    for (w, b, _) in params:
        assert w.shape == (3, 3, C, C) and b.shape == (C,), (
            "Dilated_Resblock requires in_channels == out_channels")

    if batch_tile is None:
        # Amortize per-grid-step overhead, but keep >= 2 grid steps so both
        # v7x TensorCores get work when the batch allows it.
        batch_tile = 2 if (N % 2 == 0 and N >= 4) else 1
    assert N % batch_tile == 0, "batch must be divisible by batch_tile"
    grid_n = N // batch_tile

    # Lane-dense input/output slabs: (N, H, W*C).
    x_packed = x_nhwc.reshape(N, H, WC)

    # Per layer: expand each 3x3 tap weight (C, C) to kron(I_W, w_tap) and
    # stack the 9 taps along the contraction dim -> (9*W*C, W*C), so a single
    # bf16 matmul per layer produces the lane-dense (.., W*C) output.
    eye_w = jnp.eye(W, dtype=jnp.float32)
    w_blocks, b_rows = [], []
    for (w, b, _) in params:
        w_taps = w.reshape(9, C, C)                         # tap = dy*3 + dx
        blk = jnp.einsum('ab,tij->taibj', eye_w, w_taps).reshape(9 * WC, WC)
        w_blocks.append(blk)
        b_rows.append(jnp.tile(b, W).reshape(1, WC))        # b[co] at w*C+co
    w_all = jnp.stack(w_blocks).astype(jnp.bfloat16)        # (L, 9*W*C, W*C)
    b_all = jnp.stack(b_rows).astype(jnp.float32)           # (L, 1, W*C)

    kernel = _make_resblock_kernel(batch_tile, H, W, C, dilations, pad)

    flops = 2 * N * H * (9 * WC) * WC * n_layers            # MXU flops
    bytes_accessed = x_packed.size * 4 * 2 + w_all.size * 2 + b_all.size * 4

    out = pl.pallas_call(
        kernel,
        out_shape=jax.ShapeDtypeStruct((N, H, WC), jnp.float32),
        grid=(grid_n,),
        in_specs=[
            pl.BlockSpec((batch_tile, H, WC), lambda n: (n, 0, 0)),    # x
            pl.BlockSpec((n_layers, 9 * WC, WC), lambda n: (0, 0, 0)),  # W (VMEM-resident)
            pl.BlockSpec((n_layers, 1, WC), lambda n: (0, 0, 0)),       # bias
        ],
        out_specs=pl.BlockSpec((batch_tile, H, WC), lambda n: (n, 0, 0)),
        scratch_shapes=[
            pltpu.VMEM((batch_tile, H + 2 * pad, WC), jnp.bfloat16),   # ping
            pltpu.VMEM((batch_tile, H + 2 * pad, WC), jnp.bfloat16),   # pong
        ],
        compiler_params=pltpu.CompilerParams(
            dimension_semantics=("parallel",),
            vmem_limit_bytes=32 * 1024 * 1024),
        cost_estimate=pl.CostEstimate(
            flops=flops, transcendentals=0, bytes_accessed=bytes_accessed),
    )(x_packed, w_all, b_all)

    out = out.reshape(N, H, W, C)
    return jnp.transpose(out, (0, 3, 1, 2))                 # NHWC -> NCHW


def init_params(key, in_channels, out_channels):
    """Conv layer (Cin, Cout, dilation) sequence from the PyTorch module."""
    assert in_channels == out_channels, (
        "Dilated_Resblock only composes when in_channels == out_channels")
    layer_defs = [
        (in_channels, out_channels, 1),
        (out_channels, out_channels, 2),
        (out_channels, in_channels, 3),
        (out_channels, in_channels, 2),
        (out_channels, in_channels, 1),
    ]
    params = []
    for i, (cin, cout, dil) in enumerate(layer_defs):
        kw, kb = jax.random.split(jax.random.fold_in(key, i))
        scale = 1.0 / (3.0 * 3.0 * cin) ** 0.5
        w = jax.random.uniform(kw, (3, 3, cin, cout), jnp.float32,
                               minval=-scale, maxval=scale)
        b = jax.random.uniform(kb, (cout,), jnp.float32,
                               minval=-scale, maxval=scale)
        params.append((w, b, dil))
    return params


def _reference_forward(x_nchw, params):
    """Pure-JAX reference (lax.conv_general_dilated), precision-matched to
    the kernel: bf16 conv operands, fp32 accumulation and epilogue."""
    x = jnp.transpose(x_nchw, (0, 2, 3, 1)).astype(jnp.float32)
    h = x
    dn = ("NHWC", "HWIO", "NHWC")
    for i, (w, b, d) in enumerate(params):
        h = jax.lax.conv_general_dilated(
            h.astype(jnp.bfloat16), w.astype(jnp.bfloat16),
            window_strides=(1, 1), padding=[(d, d), (d, d)],
            rhs_dilation=(d, d), dimension_numbers=dn,
            preferred_element_type=jnp.float32) + b
        if i < len(params) - 1:
            h = jnp.where(h >= 0, h, _LEAKY_SLOPE * h)
    out = h + x
    return jnp.transpose(out, (0, 3, 1, 2))


if __name__ == "__main__":
    key = jax.random.PRNGKey(0)
    k_x, k_p = jax.random.split(key)

    # The PyTorch module only composes when in_channels == out_channels.
    # W*C = 128 makes the packed minor dim exactly one lane tile.
    N, C, H, W = 4, 8, 16, 16
    x = jax.random.normal(k_x, (N, C, H, W), jnp.float32)
    params = init_params(k_p, C, C)

    out = jax.block_until_ready(dilated_resblock_forward(x, params))
    ref = jax.block_until_ready(_reference_forward(x, params))

    assert out.shape == (N, C, H, W)
    err = float(jnp.max(jnp.abs(out - ref)))
    assert err < 2e-2, f"max abs err {err}"
    print("KERNEL_OK")
</pallas_src>

<mosaic_0001>
module attributes {stable_mosaic.version = 11 : i64} {
  func.func @kernel(%arg0: i32, %arg1: memref<2x16x128xf32, #tpu.memory_space<vmem>>, %arg2: memref<5x1152x128xbf16, #tpu.memory_space<vmem>>, %arg3: memref<5x1x128xf32, #tpu.memory_space<vmem>>, %arg4: memref<2x16x128xf32, #tpu.memory_space<vmem>>, %arg5: memref<2x22x128xbf16, #tpu.memory_space<vmem>>, %arg6: memref<2x22x128xbf16, #tpu.memory_space<vmem>>) attributes {dimension_semantics = [#tpu.dimension_semantics<parallel>], iteration_bounds = array<i64: 2>, scalar_prefetch = 0 : i64, scratch_operands = 2 : i64, tpu.core_type = #tpu.core_type<tc>, window_params = [{transform_indices = @transform_0, window_bounds = array<i64: 2, 16, 128>}, {pipeline_mode = #tpu.pipeline_mode<synchronous>, transform_indices = @transform_1, window_bounds = array<i64: 5, 1152, 128>}, {pipeline_mode = #tpu.pipeline_mode<synchronous>, transform_indices = @transform_2, window_bounds = array<i64: 5, 1, 128>}, {transform_indices = @transform_3, window_bounds = array<i64: 2, 16, 128>}]} {
    %cst = arith.constant 0.000000e+00 : bf16
    %0 = vector.broadcast %cst : bf16 to vector<2x3x128xbf16>
    %c0 = arith.constant 0 : index
    %c0_0 = arith.constant 0 : index
    %c0_1 = arith.constant 0 : index
    %1 = vector.load %arg5[%c0, %c0_0, %c0_1] : memref<2x22x128xbf16, #tpu.memory_space<vmem>>, vector<2x3x128xbf16>
    tpu.vector_store %arg5[%c0, %c0_0, %c0_1], %0 {strides = array<i32>} : memref<2x22x128xbf16, #tpu.memory_space<vmem>>, vector<2x3x128xbf16>,
    %c0_2 = arith.constant 0 : index
    %c19 = arith.constant 19 : index
    %c0_3 = arith.constant 0 : index
    %2 = vector.load %arg5[%c0_2, %c19, %c0_3] : memref<2x22x128xbf16, #tpu.memory_space<vmem>>, vector<2x3x128xbf16>
    tpu.vector_store %arg5[%c0_2, %c19, %c0_3], %0 {strides = array<i32>} : memref<2x22x128xbf16, #tpu.memory_space<vmem>>, vector<2x3x128xbf16>,
    %c0_4 = arith.constant 0 : index
    %c0_5 = arith.constant 0 : index
    %c0_6 = arith.constant 0 : index
    %3 = vector.load %arg6[%c0_4, %c0_5, %c0_6] : memref<2x22x128xbf16, #tpu.memory_space<vmem>>, vector<2x3x128xbf16>
    tpu.vector_store %arg6[%c0_4, %c0_5, %c0_6], %0 {strides = array<i32>} : memref<2x22x128xbf16, #tpu.memory_space<vmem>>, vector<2x3x128xbf16>,
    %c0_7 = arith.constant 0 : index
    %c19_8 = arith.constant 19 : index
    %c0_9 = arith.constant 0 : index
    %4 = vector.load %arg6[%c0_7, %c19_8, %c0_9] : memref<2x22x128xbf16, #tpu.memory_space<vmem>>, vector<2x3x128xbf16>
    tpu.vector_store %arg6[%c0_7, %c19_8, %c0_9], %0 {strides = array<i32>} : memref<2x22x128xbf16, #tpu.memory_space<vmem>>, vector<2x3x128xbf16>,
    %c0_10 = arith.constant 0 : index
    %c0_11 = arith.constant 0 : index
    %c0_12 = arith.constant 0 : index
    %5 = vector.load %arg1[%c0_10, %c0_11, %c0_12] : memref<2x16x128xf32, #tpu.memory_space<vmem>>, vector<2x16x128xf32>
    %6 = arith.truncf %5 : vector<2x16x128xf32> to vector<2x16x128xbf16>
    %c0_13 = arith.constant 0 : index
    %c3 = arith.constant 3 : index
    %c0_14 = arith.constant 0 : index
    %7 = vector.load %arg5[%c0_13, %c3, %c0_14] : memref<2x22x128xbf16, #tpu.memory_space<vmem>>, vector<2x16x128xbf16>
    tpu.vector_store %arg5[%c0_13, %c3, %c0_14], %6 {strides = array<i32>} : memref<2x22x128xbf16, #tpu.memory_space<vmem>>, vector<2x16x128xbf16>,
    %c0_15 = arith.constant 0 : index
    %c2 = arith.constant 2 : index
    %c0_16 = arith.constant 0 : index
    %8 = vector.load %arg5[%c0_15, %c2, %c0_16] : memref<2x22x128xbf16, #tpu.memory_space<vmem>>, vector<2x16x128xbf16>
    %9 = vector.shape_cast %8 : vector<2x16x128xbf16> to vector<32x128xbf16>
    %cst_17 = arith.constant 0.000000e+00 : bf16
    %10 = vector.broadcast %cst_17 : bf16 to vector<32x8xbf16>
    %11 = vector.extract_strided_slice %9 {offsets = [0, 0], sizes = [32, 120], strides = [1, 1]} : vector<32x128xbf16> to vector<32x120xbf16>
    %12 = tpu.concatenate %10, %11 in 1 : vector<32x8xbf16>, vector<32x120xbf16> -> vector<32x128xbf16>
    %cst_18 = arith.constant 0.000000e+00 : bf16
    %13 = vector.broadcast %cst_18 : bf16 to vector<32x8xbf16>
    %14 = vector.extract_strided_slice %9 {offsets = [0, 8], sizes = [32, 120], strides = [1, 1]} : vector<32x128xbf16> to vector<32x120xbf16>
    %15 = tpu.concatenate %14, %13 in 1 : vector<32x120xbf16>, vector<32x8xbf16> -> vector<32x128xbf16>
    %c0_19 = arith.constant 0 : index
    %c3_20 = arith.constant 3 : index
    %c0_21 = arith.constant 0 : index
    %16 = vector.load %arg5[%c0_19, %c3_20, %c0_21] : memref<2x22x128xbf16, #tpu.memory_space<vmem>>, vector<2x16x128xbf16>
    %17 = vector.shape_cast %16 : vector<2x16x128xbf16> to vector<32x128xbf16>
    %cst_22 = arith.constant 0.000000e+00 : bf16
    %18 = vector.broadcast %cst_22 : bf16 to vector<32x8xbf16>
    %19 = vector.extract_strided_slice %17 {offsets = [0, 0], sizes = [32, 120], strides = [1, 1]} : vector<32x128xbf16> to vector<32x120xbf16>
    %20 = tpu.concatenate %18, %19 in 1 : vector<32x8xbf16>, vector<32x120xbf16> -> vector<32x128xbf16>
    %cst_23 = arith.constant 0.000000e+00 : bf16
    %21 = vector.broadcast %cst_23 : bf16 to vector<32x8xbf16>
    %22 = vector.extract_strided_slice %17 {offsets = [0, 8], sizes = [32, 120], strides = [1, 1]} : vector<32x128xbf16> to vector<32x120xbf16>
    %23 = tpu.concatenate %22, %21 in 1 : vector<32x120xbf16>, vector<32x8xbf16> -> vector<32x128xbf16>
    %c0_24 = arith.constant 0 : index
    %c4 = arith.constant 4 : index
    %c0_25 = arith.constant 0 : index
    %24 = vector.load %arg5[%c0_24, %c4, %c0_25] : memref<2x22x128xbf16, #tpu.memory_space<vmem>>, vector<2x16x128xbf16>
    %25 = vector.shape_cast %24 : vector<2x16x128xbf16> to vector<32x128xbf16>
    %cst_26 = arith.constant 0.000000e+00 : bf16
    %26 = vector.broadcast %cst_26 : bf16 to vector<32x8xbf16>
    %27 = vector.extract_strided_slice %25 {offsets = [0, 0], sizes = [32, 120], strides = [1, 1]} : vector<32x128xbf16> to vector<32x120xbf16>
    %28 = tpu.concatenate %26, %27 in 1 : vector<32x8xbf16>, vector<32x120xbf16> -> vector<32x128xbf16>
    %cst_27 = arith.constant 0.000000e+00 : bf16
    %29 = vector.broadcast %cst_27 : bf16 to vector<32x8xbf16>
    %30 = vector.extract_strided_slice %25 {offsets = [0, 8], sizes = [32, 120], strides = [1, 1]} : vector<32x128xbf16> to vector<32x120xbf16>
    %31 = tpu.concatenate %30, %29 in 1 : vector<32x120xbf16>, vector<32x8xbf16> -> vector<32x128xbf16>
    %32 = tpu.concatenate %12, %9, %15, %20, %17, %23, %28, %25, %31 in 1 : vector<32x128xbf16>, vector<32x128xbf16>, vector<32x128xbf16>, vector<32x128xbf16>, vector<32x128xbf16>, vector<32x128xbf16>, vector<32x128xbf16>, vector<32x128xbf16>, vector<32x128xbf16> -> vector<32x1152xbf16>
    %c0_28 = arith.constant 0 : index
    %c0_29 = arith.constant 0 : index
    %c0_30 = arith.constant 0 : index
    %33 = vector.load %arg2[%c0_28, %c0_29, %c0_30] : memref<5x1152x128xbf16, #tpu.memory_space<vmem>>, vector<1x1152x128xbf16>
    %34 = vector.shape_cast %33 : vector<1x1152x128xbf16> to vector<1152x128xbf16>
    %cst_31 = arith.constant dense<0.000000e+00> : vector<32x128xf32>
    %35 = tpu.matmul %32, %34, %cst_31 {dimension_numbers = #tpu.dot_dimension_numbers<[1], [0], [0], [1], [0, 0, 1, 1], [], []>} : vector<32x1152xbf16>, vector<1152x128xbf16>, vector<32x128xf32> -> vector<32x128xf32>
    %c0_32 = arith.constant 0 : index
    %c0_33 = arith.constant 0 : index
    %c0_34 = arith.constant 0 : index
    %36 = vector.load %arg3[%c0_32, %c0_33, %c0_34] : memref<5x1x128xf32, #tpu.memory_space<vmem>>, vector<1x1x128xf32>
    %37 = vector.shape_cast %36 : vector<1x1x128xf32> to vector<1x128xf32>
    %38 = vector.broadcast %37 : vector<1x128xf32> to vector<32x128xf32>
    %39 = arith.addf %35, %38 : vector<32x128xf32>
    %cst_35 = arith.constant 0.000000e+00 : f32
    %40 = vector.broadcast %cst_35 : f32 to vector<32x128xf32>
    %41 = arith.cmpf oge, %39, %40 : vector<32x128xf32>
    %cst_36 = arith.constant 0.00999999977 : f32
    %42 = vector.broadcast %cst_36 : f32 to vector<32x128xf32>
    %43 = arith.mulf %42, %39 : vector<32x128xf32>
    %44 = arith.select %41, %39, %43 : vector<32x128xi1>, vector<32x128xf32>
    %45 = vector.shape_cast %44 : vector<32x128xf32> to vector<2x16x128xf32>
    %46 = arith.truncf %45 : vector<2x16x128xf32> to vector<2x16x128xbf16>
    %c0_37 = arith.constant 0 : index
    %c3_38 = arith.constant 3 : index
    %c0_39 = arith.constant 0 : index
    %47 = vector.load %arg6[%c0_37, %c3_38, %c0_39] : memref<2x22x128xbf16, #tpu.memory_space<vmem>>, vector<2x16x128xbf16>
    tpu.vector_store %arg6[%c0_37, %c3_38, %c0_39], %46 {strides = array<i32>} : memref<2x22x128xbf16, #tpu.memory_space<vmem>>, vector<2x16x128xbf16>,
    %c0_40 = arith.constant 0 : index
    %c1 = arith.constant 1 : index
    %c0_41 = arith.constant 0 : index
    %48 = vector.load %arg6[%c0_40, %c1, %c0_41] : memref<2x22x128xbf16, #tpu.memory_space<vmem>>, vector<2x16x128xbf16>
    %49 = vector.shape_cast %48 : vector<2x16x128xbf16> to vector<32x128xbf16>
    %cst_42 = arith.constant 0.000000e+00 : bf16
    %50 = vector.broadcast %cst_42 : bf16 to vector<32x16xbf16>
    %51 = vector.extract_strided_slice %49 {offsets = [0, 0], sizes = [32, 112], strides = [1, 1]} : vector<32x128xbf16> to vector<32x112xbf16>
    %52 = tpu.concatenate %50, %51 in 1 : vector<32x16xbf16>, vector<32x112xbf16> -> vector<32x128xbf16>
    %cst_43 = arith.constant 0.000000e+00 : bf16
    %53 = vector.broadcast %cst_43 : bf16 to vector<32x16xbf16>
    %54 = vector.extract_strided_slice %49 {offsets = [0, 16], sizes = [32, 112], strides = [1, 1]} : vector<32x128xbf16> to vector<32x112xbf16>
    %55 = tpu.concatenate %54, %53 in 1 : vector<32x112xbf16>, vector<32x16xbf16> -> vector<32x128xbf16>
    %c0_44 = arith.constant 0 : index
    %c3_45 = arith.constant 3 : index
    %c0_46 = arith.constant 0 : index
    %56 = vector.load %arg6[%c0_44, %c3_45, %c0_46] : memref<2x22x128xbf16, #tpu.memory_space<vmem>>, vector<2x16x128xbf16>
    %57 = vector.shape_cast %56 : vector<2x16x128xbf16> to vector<32x128xbf16>
    %cst_47 = arith.constant 0.000000e+00 : bf16
    %58 = vector.broadcast %cst_47 : bf16 to vector<32x16xbf16>
    %59 = vector.extract_strided_slice %57 {offsets = [0, 0], sizes = [32, 112], strides = [1, 1]} : vector<32x128xbf16> to vector<32x112xbf16>
    %60 = tpu.concatenate %58, %59 in 1 : vector<32x16xbf16>, vector<32x112xbf16> -> vector<32x128xbf16>
    %cst_48 = arith.constant 0.000000e+00 : bf16
    %61 = vector.broadcast %cst_48 : bf16 to vector<32x16xbf16>
    %62 = vector.extract_strided_slice %57 {offsets = [0, 16], sizes = [32, 112], strides = [1, 1]} : vector<32x128xbf16> to vector<32x112xbf16>
    %63 = tpu.concatenate %62, %61 in 1 : vector<32x112xbf16>, vector<32x16xbf16> -> vector<32x128xbf16>
    %c0_49 = arith.constant 0 : index
    %c5 = arith.constant 5 : index
    %c0_50 = arith.constant 0 : index
    %64 = vector.load %arg6[%c0_49, %c5, %c0_50] : memref<2x22x128xbf16, #tpu.memory_space<vmem>>, vector<2x16x128xbf16>
    %65 = vector.shape_cast %64 : vector<2x16x128xbf16> to vector<32x128xbf16>
    %cst_51 = arith.constant 0.000000e+00 : bf16
    %66 = vector.broadcast %cst_51 : bf16 to vector<32x16xbf16>
    %67 = vector.extract_strided_slice %65 {offsets = [0, 0], sizes = [32, 112], strides = [1, 1]} : vector<32x128xbf16> to vector<32x112xbf16>
    %68 = tpu.concatenate %66, %67 in 1 : vector<32x16xbf16>, vector<32x112xbf16> -> vector<32x128xbf16>
    %cst_52 = arith.constant 0.000000e+00 : bf16
    %69 = vector.broadcast %cst_52 : bf16 to vector<32x16xbf16>
    %70 = vector.extract_strided_slice %65 {offsets = [0, 16], sizes = [32, 112], strides = [1, 1]} : vector<32x128xbf16> to vector<32x112xbf16>
    %71 = tpu.concatenate %70, %69 in 1 : vector<32x112xbf16>, vector<32x16xbf16> -> vector<32x128xbf16>
    %72 = tpu.concatenate %52, %49, %55, %60, %57, %63, %68, %65, %71 in 1 : vector<32x128xbf16>, vector<32x128xbf16>, vector<32x128xbf16>, vector<32x128xbf16>, vector<32x128xbf16>, vector<32x128xbf16>, vector<32x128xbf16>, vector<32x128xbf16>, vector<32x128xbf16> -> vector<32x1152xbf16>
    %c1_53 = arith.constant 1 : index
    %c0_54 = arith.constant 0 : index
    %c0_55 = arith.constant 0 : index
    %73 = vector.load %arg2[%c1_53, %c0_54, %c0_55] : memref<5x1152x128xbf16, #tpu.memory_space<vmem>>, vector<1x1152x128xbf16>
    %74 = vector.shape_cast %73 : vector<1x1152x128xbf16> to vector<1152x128xbf16>
    %cst_56 = arith.constant dense<0.000000e+00> : vector<32x128xf32>
    %75 = tpu.matmul %72, %74, %cst_56 {dimension_numbers = #tpu.dot_dimension_numbers<[1], [0], [0], [1], [0, 0, 1, 1], [], []>} : vector<32x1152xbf16>, vector<1152x128xbf16>, vector<32x128xf32> -> vector<32x128xf32>
    %c1_57 = arith.constant 1 : index
    %c0_58 = arith.constant 0 : index
    %c0_59 = arith.constant 0 : index
    %76 = vector.load %arg3[%c1_57, %c0_58, %c0_59] : memref<5x1x128xf32, #tpu.memory_space<vmem>>, vector<1x1x128xf32>
    %77 = vector.shape_cast %76 : vector<1x1x128xf32> to vector<1x128xf32>
    %78 = vector.broadcast %77 : vector<1x128xf32> to vector<32x128xf32>
    %79 = arith.addf %75, %78 : vector<32x128xf32>
    %cst_60 = arith.constant 0.000000e+00 : f32
    %80 = vector.broadcast %cst_60 : f32 to vector<32x128xf32>
    %81 = arith.cmpf oge, %79, %80 : vector<32x128xf32>
    %cst_61 = arith.constant 0.00999999977 : f32
    %82 = vector.broadcast %cst_61 : f32 to vector<32x128xf32>
    %83 = arith.mulf %82, %79 : vector<32x128xf32>
    %84 = arith.select %81, %79, %83 : vector<32x128xi1>, vector<32x128xf32>
    %85 = vector.shape_cast %84 : vector<32x128xf32> to vector<2x16x128xf32>
    %86 = arith.truncf %85 : vector<2x16x128xf32> to vector<2x16x128xbf16>
    %c0_62 = arith.constant 0 : index
    %c3_63 = arith.constant 3 : index
    %c0_64 = arith.constant 0 : index
    %87 = vector.load %arg5[%c0_62, %c3_63, %c0_64] : memref<2x22x128xbf16, #tpu.memory_space<vmem>>, vector<2x16x128xbf16>
    tpu.vector_store %arg5[%c0_62, %c3_63, %c0_64], %86 {strides = array<i32>} : memref<2x22x128xbf16, #tpu.memory_space<vmem>>, vector<2x16x128xbf16>,
    %c0_65 = arith.constant 0 : index
    %c0_66 = arith.constant 0 : index
    %c0_67 = arith.constant 0 : index
    %88 = vector.load %arg5[%c0_65, %c0_66, %c0_67] : memref<2x22x128xbf16, #tpu.memory_space<vmem>>, vector<2x16x128xbf16>
    %89 = vector.shape_cast %88 : vector<2x16x128xbf16> to vector<32x128xbf16>
    %cst_68 = arith.constant 0.000000e+00 : bf16
    %90 = vector.broadcast %cst_68 : bf16 to vector<32x24xbf16>
    %91 = vector.extract_strided_slice %89 {offsets = [0, 0], sizes = [32, 104], strides = [1, 1]} : vector<32x128xbf16> to vector<32x104xbf16>
    %92 = tpu.concatenate %90, %91 in 1 : vector<32x24xbf16>, vector<32x104xbf16> -> vector<32x128xbf16>
    %cst_69 = arith.constant 0.000000e+00 : bf16
    %93 = vector.broadcast %cst_69 : bf16 to vector<32x24xbf16>
    %94 = vector.extract_strided_slice %89 {offsets = [0, 24], sizes = [32, 104], strides = [1, 1]} : vector<32x128xbf16> to vector<32x104xbf16>
    %95 = tpu.concatenate %94, %93 in 1 : vector<32x104xbf16>, vector<32x24xbf16> -> vector<32x128xbf16>
    %c0_70 = arith.constant 0 : index
    %c3_71 = arith.constant 3 : index
    %c0_72 = arith.constant 0 : index
    %96 = vector.load %arg5[%c0_70, %c3_71, %c0_72] : memref<2x22x128xbf16, #tpu.memory_space<vmem>>, vector<2x16x128xbf16>
    %97 = vector.shape_cast %96 : vector<2x16x128xbf16> to vector<32x128xbf16>
    %cst_73 = arith.constant 0.000000e+00 : bf16
    %98 = vector.broadcast %cst_73 : bf16 to vector<32x24xbf16>
    %99 = vector.extract_strided_slice %97 {offsets = [0, 0], sizes = [32, 104], strides = [1, 1]} : vector<32x128xbf16> to vector<32x104xbf16>
    %100 = tpu.concatenate %98, %99 in 1 : vector<32x24xbf16>, vector<32x104xbf16> -> vector<32x128xbf16>
    %cst_74 = arith.constant 0.000000e+00 : bf16
    %101 = vector.broadcast %cst_74 : bf16 to vector<32x24xbf16>
    %102 = vector.extract_strided_slice %97 {offsets = [0, 24], sizes = [32, 104], strides = [1, 1]} : vector<32x128xbf16> to vector<32x104xbf16>
    %103 = tpu.concatenate %102, %101 in 1 : vector<32x104xbf16>, vector<32x24xbf16> -> vector<32x128xbf16>
    %c0_75 = arith.constant 0 : index
    %c6 = arith.constant 6 : index
    %c0_76 = arith.constant 0 : index
    %104 = vector.load %arg5[%c0_75, %c6, %c0_76] : memref<2x22x128xbf16, #tpu.memory_space<vmem>>, vector<2x16x128xbf16>
    %105 = vector.shape_cast %104 : vector<2x16x128xbf16> to vector<32x128xbf16>
    %cst_77 = arith.constant 0.000000e+00 : bf16
    %106 = vector.broadcast %cst_77 : bf16 to vector<32x24xbf16>
    %107 = vector.extract_strided_slice %105 {offsets = [0, 0], sizes = [32, 104], strides = [1, 1]} : vector<32x128xbf16> to vector<32x104xbf16>
    %108 = tpu.concatenate %106, %107 in 1 : vector<32x24xbf16>, vector<32x104xbf16> -> vector<32x128xbf16>
    %cst_78 = arith.constant 0.000000e+00 : bf16
    %109 = vector.broadcast %cst_78 : bf16 to vector<32x24xbf16>
    %110 = vector.extract_strided_slice %105 {offsets = [0, 24], sizes = [32, 104], strides = [1, 1]} : vector<32x128xbf16> to vector<32x104xbf16>
    %111 = tpu.concatenate %110, %109 in 1 : vector<32x104xbf16>, vector<32x24xbf16> -> vector<32x128xbf16>
    %112 = tpu.concatenate %92, %89, %95, %100, %97, %103, %108, %105, %111 in 1 : vector<32x128xbf16>, vector<32x128xbf16>, vector<32x128xbf16>, vector<32x128xbf16>, vector<32x128xbf16>, vector<32x128xbf16>, vector<32x128xbf16>, vector<32x128xbf16>, vector<32x128xbf16> -> vector<32x1152xbf16>
    %c2_79 = arith.constant 2 : index
    %c0_80 = arith.constant 0 : index
    %c0_81 = arith.constant 0 : index
    %113 = vector.load %arg2[%c2_79, %c0_80, %c0_81] : memref<5x1152x128xbf16, #tpu.memory_space<vmem>>, vector<1x1152x128xbf16>
    %114 = vector.shape_cast %113 : vector<1x1152x128xbf16> to vector<1152x128xbf16>
    %cst_82 = arith.constant dense<0.000000e+00> : vector<32x128xf32>
    %115 = tpu.matmul %112, %114, %cst_82 {dimension_numbers = #tpu.dot_dimension_numbers<[1], [0], [0], [1], [0, 0, 1, 1], [], []>} : vector<32x1152xbf16>, vector<1152x128xbf16>, vector<32x128xf32> -> vector<32x128xf32>
    %c2_83 = arith.constant 2 : index
    %c0_84 = arith.constant 0 : index
    %c0_85 = arith.constant 0 : index
    %116 = vector.load %arg3[%c2_83, %c0_84, %c0_85] : memref<5x1x128xf32, #tpu.memory_space<vmem>>, vector<1x1x128xf32>
    %117 = vector.shape_cast %116 : vector<1x1x128xf32> to vector<1x128xf32>
    %118 = vector.broadcast %117 : vector<1x128xf32> to vector<32x128xf32>
    %119 = arith.addf %115, %118 : vector<32x128xf32>
    %cst_86 = arith.constant 0.000000e+00 : f32
    %120 = vector.broadcast %cst_86 : f32 to vector<32x128xf32>
    %121 = arith.cmpf oge, %119, %120 : vector<32x128xf32>
    %cst_87 = arith.constant 0.00999999977 : f32
    %122 = vector.broadcast %cst_87 : f32 to vector<32x128xf32>
    %123 = arith.mulf %122, %119 : vector<32x128xf32>
    %124 = arith.select %121, %119, %123 : vector<32x128xi1>, vector<32x128xf32>
    %125 = vector.shape_cast %124 : vector<32x128xf32> to vector<2x16x128xf32>
    %126 = arith.truncf %125 : vector<2x16x128xf32> to vector<2x16x128xbf16>
    %c0_88 = arith.constant 0 : index
    %c3_89 = arith.constant 3 : index
    %c0_90 = arith.constant 0 : index
    %127 = vector.load %arg6[%c0_88, %c3_89, %c0_90] : memref<2x22x128xbf16, #tpu.memory_space<vmem>>, vector<2x16x128xbf16>
    tpu.vector_store %arg6[%c0_88, %c3_89, %c0_90], %126 {strides = array<i32>} : memref<2x22x128xbf16, #tpu.memory_space<vmem>>, vector<2x16x128xbf16>,
    %c0_91 = arith.constant 0 : index
    %c1_92 = arith.constant 1 : index
    %c0_93 = arith.constant 0 : index
    %128 = vector.load %arg6[%c0_91, %c1_92, %c0_93] : memref<2x22x128xbf16, #tpu.memory_space<vmem>>, vector<2x16x128xbf16>
    %129 = vector.shape_cast %128 : vector<2x16x128xbf16> to vector<32x128xbf16>
    %cst_94 = arith.constant 0.000000e+00 : bf16
    %130 = vector.broadcast %cst_94 : bf16 to vector<32x16xbf16>
    %131 = vector.extract_strided_slice %129 {offsets = [0, 0], sizes = [32, 112], strides = [1, 1]} : vector<32x128xbf16> to vector<32x112xbf16>
    %132 = tpu.concatenate %130, %131 in 1 : vector<32x16xbf16>, vector<32x112xbf16> -> vector<32x128xbf16>
    %cst_95 = arith.constant 0.000000e+00 : bf16
    %133 = vector.broadcast %cst_95 : bf16 to vector<32x16xbf16>
    %134 = vector.extract_strided_slice %129 {offsets = [0, 16], sizes = [32, 112], strides = [1, 1]} : vector<32x128xbf16> to vector<32x112xbf16>
    %135 = tpu.concatenate %134, %133 in 1 : vector<32x112xbf16>, vector<32x16xbf16> -> vector<32x128xbf16>
    %c0_96 = arith.constant 0 : index
    %c3_97 = arith.constant 3 : index
    %c0_98 = arith.constant 0 : index
    %136 = vector.load %arg6[%c0_96, %c3_97, %c0_98] : memref<2x22x128xbf16, #tpu.memory_space<vmem>>, vector<2x16x128xbf16>
    %137 = vector.shape_cast %136 : vector<2x16x128xbf16> to vector<32x128xbf16>
    %cst_99 = arith.constant 0.000000e+00 : bf16
    %138 = vector.broadcast %cst_99 : bf16 to vector<32x16xbf16>
    %139 = vector.extract_strided_slice %137 {offsets = [0, 0], sizes = [32, 112], strides = [1, 1]} : vector<32x128xbf16> to vector<32x112xbf16>
    %140 = tpu.concatenate %138, %139 in 1 : vector<32x16xbf16>, vector<32x112xbf16> -> vector<32x128xbf16>
    %cst_100 = arith.constant 0.000000e+00 : bf16
    %141 = vector.broadcast %cst_100 : bf16 to vector<32x16xbf16>
    %142 = vector.extract_strided_slice %137 {offsets = [0, 16], sizes = [32, 112], strides = [1, 1]} : vector<32x128xbf16> to vector<32x112xbf16>
    %143 = tpu.concatenate %142, %141 in 1 : vector<32x112xbf16>, vector<32x16xbf16> -> vector<32x128xbf16>
    %c0_101 = arith.constant 0 : index
    %c5_102 = arith.constant 5 : index
    %c0_103 = arith.constant 0 : index
    %144 = vector.load %arg6[%c0_101, %c5_102, %c0_103] : memref<2x22x128xbf16, #tpu.memory_space<vmem>>, vector<2x16x128xbf16>
    %145 = vector.shape_cast %144 : vector<2x16x128xbf16> to vector<32x128xbf16>
    %cst_104 = arith.constant 0.000000e+00 : bf16
    %146 = vector.broadcast %cst_104 : bf16 to vector<32x16xbf16>
    %147 = vector.extract_strided_slice %145 {offsets = [0, 0], sizes = [32, 112], strides = [1, 1]} : vector<32x128xbf16> to vector<32x112xbf16>
    %148 = tpu.concatenate %146, %147 in 1 : vector<32x16xbf16>, vector<32x112xbf16> -> vector<32x128xbf16>
    %cst_105 = arith.constant 0.000000e+00 : bf16
    %149 = vector.broadcast %cst_105 : bf16 to vector<32x16xbf16>
    %150 = vector.extract_strided_slice %145 {offsets = [0, 16], sizes = [32, 112], strides = [1, 1]} : vector<32x128xbf16> to vector<32x112xbf16>
    %151 = tpu.concatenate %150, %149 in 1 : vector<32x112xbf16>, vector<32x16xbf16> -> vector<32x128xbf16>
    %152 = tpu.concatenate %132, %129, %135, %140, %137, %143, %148, %145, %151 in 1 : vector<32x128xbf16>, vector<32x128xbf16>, vector<32x128xbf16>, vector<32x128xbf16>, vector<32x128xbf16>, vector<32x128xbf16>, vector<32x128xbf16>, vector<32x128xbf16>, vector<32x128xbf16> -> vector<32x1152xbf16>
    %c3_106 = arith.constant 3 : index
    %c0_107 = arith.constant 0 : index
    %c0_108 = arith.constant 0 : index
    %153 = vector.load %arg2[%c3_106, %c0_107, %c0_108] : memref<5x1152x128xbf16, #tpu.memory_space<vmem>>, vector<1x1152x128xbf16>
    %154 = vector.shape_cast %153 : vector<1x1152x128xbf16> to vector<1152x128xbf16>
    %cst_109 = arith.constant dense<0.000000e+00> : vector<32x128xf32>
    %155 = tpu.matmul %152, %154, %cst_109 {dimension_numbers = #tpu.dot_dimension_numbers<[1], [0], [0], [1], [0, 0, 1, 1], [], []>} : vector<32x1152xbf16>, vector<1152x128xbf16>, vector<32x128xf32> -> vector<32x128xf32>
    %c3_110 = arith.constant 3 : index
    %c0_111 = arith.constant 0 : index
    %c0_112 = arith.constant 0 : index
    %156 = vector.load %arg3[%c3_110, %c0_111, %c0_112] : memref<5x1x128xf32, #tpu.memory_space<vmem>>, vector<1x1x128xf32>
    %157 = vector.shape_cast %156 : vector<1x1x128xf32> to vector<1x128xf32>
    %158 = vector.broadcast %157 : vector<1x128xf32> to vector<32x128xf32>
    %159 = arith.addf %155, %158 : vector<32x128xf32>
    %cst_113 = arith.constant 0.000000e+00 : f32
    %160 = vector.broadcast %cst_113 : f32 to vector<32x128xf32>
    %161 = arith.cmpf oge, %159, %160 : vector<32x128xf32>
    %cst_114 = arith.constant 0.00999999977 : f32
    %162 = vector.broadcast %cst_114 : f32 to vector<32x128xf32>
    %163 = arith.mulf %162, %159 : vector<32x128xf32>
    %164 = arith.select %161, %159, %163 : vector<32x128xi1>, vector<32x128xf32>
    %165 = vector.shape_cast %164 : vector<32x128xf32> to vector<2x16x128xf32>
    %166 = arith.truncf %165 : vector<2x16x128xf32> to vector<2x16x128xbf16>
    %c0_115 = arith.constant 0 : index
    %c3_116 = arith.constant 3 : index
    %c0_117 = arith.constant 0 : index
    %167 = vector.load %arg5[%c0_115, %c3_116, %c0_117] : memref<2x22x128xbf16, #tpu.memory_space<vmem>>, vector<2x16x128xbf16>
    tpu.vector_store %arg5[%c0_115, %c3_116, %c0_117], %166 {strides = array<i32>} : memref<2x22x128xbf16, #tpu.memory_space<vmem>>, vector<2x16x128xbf16>,
    %c0_118 = arith.constant 0 : index
    %c2_119 = arith.constant 2 : index
    %c0_120 = arith.constant 0 : index
    %168 = vector.load %arg5[%c0_118, %c2_119, %c0_120] : memref<2x22x128xbf16, #tpu.memory_space<vmem>>, vector<2x16x128xbf16>
    %169 = vector.shape_cast %168 : vector<2x16x128xbf16> to vector<32x128xbf16>
    %cst_121 = arith.constant 0.000000e+00 : bf16
    %170 = vector.broadcast %cst_121 : bf16 to vector<32x8xbf16>
    %171 = vector.extract_strided_slice %169 {offsets = [0, 0], sizes = [32, 120], strides = [1, 1]} : vector<32x128xbf16> to vector<32x120xbf16>
    %172 = tpu.concatenate %170, %171 in 1 : vector<32x8xbf16>, vector<32x120xbf16> -> vector<32x128xbf16>
    %cst_122 = arith.constant 0.000000e+00 : bf16
    %173 = vector.broadcast %cst_122 : bf16 to vector<32x8xbf16>
    %174 = vector.extract_strided_slice %169 {offsets = [0, 8], sizes = [32, 120], strides = [1, 1]} : vector<32x128xbf16> to vector<32x120xbf16>
    %175 = tpu.concatenate %174, %173 in 1 : vector<32x120xbf16>, vector<32x8xbf16> -> vector<32x128xbf16>
    %c0_123 = arith.constant 0 : index
    %c3_124 = arith.constant 3 : index
    %c0_125 = arith.constant 0 : index
    %176 = vector.load %arg5[%c0_123, %c3_124, %c0_125] : memref<2x22x128xbf16, #tpu.memory_space<vmem>>, vector<2x16x128xbf16>
    %177 = vector.shape_cast %176 : vector<2x16x128xbf16> to vector<32x128xbf16>
    %cst_126 = arith.constant 0.000000e+00 : bf16
    %178 = vector.broadcast %cst_126 : bf16 to vector<32x8xbf16>
    %179 = vector.extract_strided_slice %177 {offsets = [0, 0], sizes = [32, 120], strides = [1, 1]} : vector<32x128xbf16> to vector<32x120xbf16>
    %180 = tpu.concatenate %178, %179 in 1 : vector<32x8xbf16>, vector<32x120xbf16> -> vector<32x128xbf16>
    %cst_127 = arith.constant 0.000000e+00 : bf16
    %181 = vector.broadcast %cst_127 : bf16 to vector<32x8xbf16>
    %182 = vector.extract_strided_slice %177 {offsets = [0, 8], sizes = [32, 120], strides = [1, 1]} : vector<32x128xbf16> to vector<32x120xbf16>
    %183 = tpu.concatenate %182, %181 in 1 : vector<32x120xbf16>, vector<32x8xbf16> -> vector<32x128xbf16>
    %c0_128 = arith.constant 0 : index
    %c4_129 = arith.constant 4 : index
    %c0_130 = arith.constant 0 : index
    %184 = vector.load %arg5[%c0_128, %c4_129, %c0_130] : memref<2x22x128xbf16, #tpu.memory_space<vmem>>, vector<2x16x128xbf16>
    %185 = vector.shape_cast %184 : vector<2x16x128xbf16> to vector<32x128xbf16>
    %cst_131 = arith.constant 0.000000e+00 : bf16
    %186 = vector.broadcast %cst_131 : bf16 to vector<32x8xbf16>
    %187 = vector.extract_strided_slice %185 {offsets = [0, 0], sizes = [32, 120], strides = [1, 1]} : vector<32x128xbf16> to vector<32x120xbf16>
    %188 = tpu.concatenate %186, %187 in 1 : vector<32x8xbf16>, vector<32x120xbf16> -> vector<32x128xbf16>
    %cst_132 = arith.constant 0.000000e+00 : bf16
    %189 = vector.broadcast %cst_132 : bf16 to vector<32x8xbf16>
    %190 = vector.extract_strided_slice %185 {offsets = [0, 8], sizes = [32, 120], strides = [1, 1]} : vector<32x128xbf16> to vector<32x120xbf16>
    %191 = tpu.concatenate %190, %189 in 1 : vector<32x120xbf16>, vector<32x8xbf16> -> vector<32x128xbf16>
    %192 = tpu.concatenate %172, %169, %175, %180, %177, %183, %188, %185, %191 in 1 : vector<32x128xbf16>, vector<32x128xbf16>, vector<32x128xbf16>, vector<32x128xbf16>, vector<32x128xbf16>, vector<32x128xbf16>, vector<32x128xbf16>, vector<32x128xbf16>, vector<32x128xbf16> -> vector<32x1152xbf16>
    %c4_133 = arith.constant 4 : index
    %c0_134 = arith.constant 0 : index
    %c0_135 = arith.constant 0 : index
    %193 = vector.load %arg2[%c4_133, %c0_134, %c0_135] : memref<5x1152x128xbf16, #tpu.memory_space<vmem>>, vector<1x1152x128xbf16>
    %194 = vector.shape_cast %193 : vector<1x1152x128xbf16> to vector<1152x128xbf16>
    %cst_136 = arith.constant dense<0.000000e+00> : vector<32x128xf32>
    %195 = tpu.matmul %192, %194, %cst_136 {dimension_numbers = #tpu.dot_dimension_numbers<[1], [0], [0], [1], [0, 0, 1, 1], [], []>} : vector<32x1152xbf16>, vector<1152x128xbf16>, vector<32x128xf32> -> vector<32x128xf32>
    %c4_137 = arith.constant 4 : index
    %c0_138 = arith.constant 0 : index
    %c0_139 = arith.constant 0 : index
    %196 = vector.load %arg3[%c4_137, %c0_138, %c0_139] : memref<5x1x128xf32, #tpu.memory_space<vmem>>, vector<1x1x128xf32>
    %197 = vector.shape_cast %196 : vector<1x1x128xf32> to vector<1x128xf32>
    %198 = vector.broadcast %197 : vector<1x128xf32> to vector<32x128xf32>
    %199 = arith.addf %195, %198 : vector<32x128xf32>
    %200 = vector.shape_cast %199 : vector<32x128xf32> to vector<2x16x128xf32>
    %201 = arith.addf %200, %5 : vector<2x16x128xf32>
    %c0_140 = arith.constant 0 : index
    %c0_141 = arith.constant 0 : index
    %c0_142 = arith.constant 0 : index
    %202 = vector.load %arg4[%c0_140, %c0_141, %c0_142] : memref<2x16x128xf32, #tpu.memory_space<vmem>>, vector<2x16x128xf32>
    tpu.vector_store %arg4[%c0_140, %c0_141, %c0_142], %201 {strides = array<i32>} : memref<2x16x128xf32, #tpu.memory_space<vmem>>, vector<2x16x128xf32>,
    return
  }
  func.func @transform_0(%arg0: i32) -> (i32, i32, i32) {
    %c0_i32 = arith.constant 0 : i32
    %c0_i32_0 = arith.constant 0 : i32
    %c0_i32_1 = arith.constant 0 : i32
    return %arg0, %c0_i32, %c0_i32_0 : i32, i32, i32
  }
  func.func @transform_1(%arg0: i32) -> (i32, i32, i32) {
    %c0_i32 = arith.constant 0 : i32
    %c0_i32_0 = arith.constant 0 : i32
    %c0_i32_1 = arith.constant 0 : i32
    %c0_i32_2 = arith.constant 0 : i32
    return %c0_i32, %c0_i32_0, %c0_i32_1 : i32, i32, i32
  }
  func.func @transform_2(%arg0: i32) -> (i32, i32, i32) {
    %c0_i32 = arith.constant 0 : i32
    %c0_i32_0 = arith.constant 0 : i32
    %c0_i32_1 = arith.constant 0 : i32
    %c0_i32_2 = arith.constant 0 : i32
    return %c0_i32, %c0_i32_0, %c0_i32_1 : i32, i32, i32
  }
  func.func @transform_3(%arg0: i32) -> (i32, i32, i32) {
    %c0_i32 = arith.constant 0 : i32
    %c0_i32_0 = arith.constant 0 : i32
    %c0_i32_1 = arith.constant 0 : i32
    return %arg0, %c0_i32, %c0_i32_0 : i32, i32, i32
  }
}

</mosaic_0001>

<llo_original>
// kernel: tpu_custom_call.1
$region0: #{tpu_custom_call.1}
  #allocation0 [shape = 'u32[]', space=smem, size = 0x4, offset = 0x4, fixed_abs, tag = 'smem constant byte address 0x4 - core index']
  #allocation1 [shape = 'u32[144,128]{1,0:T(1,128)}', space=vmem, size = 0x12000, scoped, tag = 'internal scratch']
  #allocation2 [shape = 'bf16[2,22,128]{2,1,0:T(8,128)(2,1)}', space=vmem, size = 0x3000, scoped, tag = 'scratch operand']
  #allocation3 [shape = 'bf16[2,22,128]{2,1,0:T(8,128)(2,1)}', space=vmem, size = 0x3000, scoped, tag = 'scratch operand']
  %s0 = inlined_call_operand.hbm [shape: f32[4,16,128], index: 0, kind: input, shape index: {}]
  %s1 = inlined_call_operand.hbm [shape: bf16[5,1152,128], index: 1, kind: input, shape index: {}]
  %s2 = inlined_call_operand.hbm [shape: f32[5,1,128], index: 2, kind: input, shape index: {}]
  %s3 = inlined_call_operand.hbm [shape: f32[4,16,128], index: 3, kind: output, shape index: {}]
  %s4 = sld [smem:[#allocation0]]
  $region57: #{tpu_custom_call.1} parent=0
    _
  %s6 = ssub.s32 1, %s4
  %s7 = scalar_select 0, %s6, %s4
  $region1: #{tpu_custom_call.1} parent=0
    #allocation4 [shape = 'u8[32768]{0}', space=vmem, size = 0x8000, scoped, tag = 'input window, operand 0']
    #allocation5 [shape = 's32[2]{0}', space=sflag, size = 0x8, scoped, tag = 'scoped memory for tpu_custom_call.1']
    #allocation6 [shape = 's32[2]{0}', space=sflag, size = 0x8, scoped, tag = 'scoped memory for tpu_custom_call.1']
    #allocation7 [shape = 'u8[1474560]{0}', space=vmem, size = 0x168000, scoped, tag = 'input window, operand 1, single buffered']
    #allocation8 [shape = 's32[1]{0}', space=sflag, size = 0x4, scoped, tag = 'scoped memory for tpu_custom_call.1']
    #allocation9 [shape = 'u8[2560]{0}', space=vmem, size = 0xc00, scoped, tag = 'input window, operand 2, single buffered']
    #allocation10 [shape = 'u8[32768]{0}', space=vmem, size = 0x8000, scoped, tag = 'output window, operand 0']
    %8 = vsyncpa [#allocation5], 0
    %s9 = scalar_lea.sflag [#allocation5], 1
    %10 = vsyncpa %s9, 0
    %11 = vsyncpa [#allocation8], 0
    %12 = vsyncpa [#allocation6], 0
    %s13 = scalar_lea.sflag [#allocation6], 1
    %14 = vsyncpa %s13, 0
    loop: start=0, step=1, limit=4
    $region2: #{tpu_custom_call.1} parent=1 // loop_pre_header
      _
    $region3: #{tpu_custom_call.1} parent=1 // loop_header
      %s16 = sphi 0, %s20
      %p17 = scmp.ge.s32.totalorder %s16, 4
      %s26 = sphi 0, %s28
      %s29 = sphi 0, %s26
      %s30 = sphi 0, %s29
      %s46 = sphi 0, %s30
      %s50 = sphi 0, %s50
      %s52 = sphi 0, %s50
      %s53 = sphi 0, %s52
      %s67 = sphi 0, %s53
      %s71 = sphi 0, %s71
      %s73 = sphi 0, %s71
      %s74 = sphi 0, %s73
      %s88 = sphi 0, %s74
      %s94 = sphi 0, %s96
      %s97 = sphi 0, %s94
      %s98 = sphi 0, %s97
      %s114 = sphi 0, %s98
    $region4: #{tpu_custom_call.1} parent=1 // loop_header_branch
      %19 = sbr.rel (%p17) target = $region8
    $region5: #{tpu_custom_call.1} parent=1 // loop_body
      %s21 = ssub.s32 %s16, 1
      %s22 = ssub.s32 %s16, 2
      %s23 = sadd.s32 %s16, 1
      %s24 = ssub.s32 %s16, %s23
      %p25 = scmp.eq.s32.totalorder %s24, 0
      %s27 = sadd.s32 %s26, 1
      %s28 = scalar_select %p25, %s26, %s27
      %p31 = pneg %p25
      %p32 = scmp.eq.s32.totalorder %s16, 1
      %p33 = por %p31, %p32
      %p34 = scmp.ne.s32.totalorder %s26, %s29
      %p35 = scmp.eq.s32.totalorder %s16, 0
      %p36 = por %p34, %p35
      %p37 = scmp.ne.s32.totalorder %s26, %s29
      %p38 = scmp.eq.s32.totalorder %s21, 1
      %p39 = por %p37, %p38
      %p40 = scmp.ne.s32.totalorder %s29, %s30
      %p41 = scmp.eq.s32.totalorder %s21, 0
      %p42 = por %p40, %p41
      %p43 = scmp.ne.s32.totalorder %s29, %s30
      %p44 = scmp.eq.s32.totalorder %s22, 1
      %p45 = por %p43, %p44
      %p47 = scmp.ne.s32.totalorder %s30, %s46
      %p48 = scmp.eq.s32.totalorder %s22, 0
      %p49 = por %p47, %p48
      %s51 = sadd.s32 %s50, 1
      %p54 = scmp.eq.s32.totalorder %s16, 1
      %p55 = scmp.ne.s32.totalorder %s50, %s52
      %p56 = scmp.eq.s32.totalorder %s16, 0
      %p57 = por %p55, %p56
      %p58 = scmp.ne.s32.totalorder %s50, %s52
      %p59 = scmp.eq.s32.totalorder %s21, 1
      %p60 = por %p58, %p59
      %p61 = scmp.ne.s32.totalorder %s52, %s53
      %p62 = scmp.eq.s32.totalorder %s21, 0
      %p63 = por %p61, %p62
      %p64 = scmp.ne.s32.totalorder %s52, %s53
      %p65 = scmp.eq.s32.totalorder %s22, 1
      %p66 = por %p64, %p65
      %p68 = scmp.ne.s32.totalorder %s53, %s67
      %p69 = scmp.eq.s32.totalorder %s22, 0
      %p70 = por %p68, %p69
      %s72 = sadd.s32 %s71, 1
      %p75 = scmp.eq.s32.totalorder %s16, 1
      %p76 = scmp.ne.s32.totalorder %s71, %s73
      %p77 = scmp.eq.s32.totalorder %s16, 0
      %p78 = por %p76, %p77
      %p79 = scmp.ne.s32.totalorder %s71, %s73
      %p80 = scmp.eq.s32.totalorder %s21, 1
      %p81 = por %p79, %p80
      %p82 = scmp.ne.s32.totalorder %s73, %s74
      %p83 = scmp.eq.s32.totalorder %s21, 0
      %p84 = por %p82, %p83
      %p85 = scmp.ne.s32.totalorder %s73, %s74
      %p86 = scmp.eq.s32.totalorder %s22, 1
      %p87 = por %p85, %p86
      %p89 = scmp.ne.s32.totalorder %s74, %s88
      %p90 = scmp.eq.s32.totalorder %s22, 0
      %p91 = por %p89, %p90
      %s92 = ssub.s32 %s16, %s23
      %p93 = scmp.eq.s32.totalorder %s92, 0
      %s95 = sadd.s32 %s94, 1
      %s96 = scalar_select %p93, %s94, %s95
      %p99 = pneg %p93
      %p100 = scmp.eq.s32.totalorder %s16, 1
      %p101 = por %p99, %p100
      %p102 = scmp.ne.s32.totalorder %s94, %s97
      %p103 = scmp.eq.s32.totalorder %s16, 0
      %p104 = por %p102, %p103
      %p105 = scmp.ne.s32.totalorder %s94, %s97
      %p106 = scmp.eq.s32.totalorder %s21, 1
      %p107 = por %p105, %p106
      %p108 = scmp.ne.s32.totalorder %s97, %s98
      %p109 = scmp.eq.s32.totalorder %s21, 0
      %p110 = por %p108, %p109
      %p111 = scmp.ne.s32.totalorder %s97, %s98
      %p112 = scmp.eq.s32.totalorder %s22, 1
      %p113 = por %p111, %p112
      %p115 = scmp.ne.s32.totalorder %s98, %s114
      %p116 = scmp.eq.s32.totalorder %s22, 0
      %p117 = por %p115, %p116
      %p118 = scmp.le.s32.totalorder 1, %s16
      %p119 = scmp.lt.s32.totalorder %s16, 3
      %p120 = pnand %p118, %p119
      %p121 = pneg %p120
      // Predicated region
      $region9: #{tpu_custom_call.1} parent=5 // pred_check
        _
      $region10: #{tpu_custom_call.1} parent=5 // pred_check_branch
        %123 = sbr.rel (%p120) target = $region12
      $region11: #{tpu_custom_call.1} parent=5 // pred_region
        %s124 = ssub.s32 %s16, 1
        // Predicated region
        $region13: #{tpu_custom_call.1} parent=11 // pred_check
          %p125 = pneg %p63
        $region14: #{tpu_custom_call.1} parent=11 // pred_check_branch
          %127 = sbr.rel (%p125) target = $region16
        $region15: #{tpu_custom_call.1} parent=11 // pred_region
          %s129 = ssub.s32 46080, 46080
          %130 = vsyncadd [#allocation8], %s129
          %s131 = sshll.u32 [#allocation7], 4
          %s132 = int_to_ptr.vmem [resolvable:$true] %s131
          %137 = dma.hbm_to_vmem [thread:$0]  %s1, 46080, %s132, [#allocation8], 64, 64, 4
        $region16: #{tpu_custom_call.1} parent=11 // pred_fallthru
          _
        // Predicated region
        $region17: #{tpu_custom_call.1} parent=11 // pred_check
          %p138 = pneg %p84
        $region18: #{tpu_custom_call.1} parent=11 // pred_check_branch
          %140 = sbr.rel (%p138) target = $region20
        $region19: #{tpu_custom_call.1} parent=11 // pred_region
          %s142 = ssub.s32 80, 80
          %143 = vsyncadd [#allocation8], %s142
          %s144 = sshll.u32 [#allocation9], 4
          %s145 = int_to_ptr.vmem [resolvable:$true] %s144
          %150 = dma.hbm_to_vmem [thread:$0]  %s2, 80, %s145, [#allocation8], 16, 16, 1
        $region20: #{tpu_custom_call.1} parent=11 // pred_fallthru
          _
      $region12: #{tpu_custom_call.1} parent=5 // pred_fallthru
        _
      %p151 = scmp.lt.s32.totalorder %s16, 2
      // Predicated region
      $region21: #{tpu_custom_call.1} parent=5 // pred_check
        %p152 = pneg %p151
      $region22: #{tpu_custom_call.1} parent=5 // pred_check_branch
        %154 = sbr.rel (%p152) target = $region24
      $region23: #{tpu_custom_call.1} parent=5 // pred_region
        // Predicated region
        $region25: #{tpu_custom_call.1} parent=23 // pred_check
          %p155 = pneg %p36
        $region26: #{tpu_custom_call.1} parent=23 // pred_check_branch
          %157 = sbr.rel (%p155) target = $region28
        $region27: #{tpu_custom_call.1} parent=23 // pred_region
          %s158 = sand.u32 %s26, 1
          %s159 = scalar_lea.sflag [#allocation5], %s158
          %s160 = sand.u32 %s26, 1
          %s161 = smul.addr %s160, 32
          %s162 = scalar_lea.vmem [#allocation4], %s161
          %s163 = smul.u32 2, %s16
          %s165 = ssub.s32 512, 512
          %166 = vsyncadd %s159, %s165
          %s167 = smul.addr %s163, 2
          %s168 = smul.addr %s167, 128
          %s169 = scalar_lea.hbm %s0, %s168
          %s170 = sshll.u32 %s162, 4
          %s171 = int_to_ptr.vmem [resolvable:$true] %s170
          %176 = dma.hbm_to_vmem [thread:$0]  %s169, 512, %s171, %s159, 128, 128, 8
        $region28: #{tpu_custom_call.1} parent=23 // pred_fallthru
          _
      $region24: #{tpu_custom_call.1} parent=5 // pred_fallthru
        _
      %p177 = scmp.le.s32.totalorder 1, %s16
      %p178 = scmp.lt.s32.totalorder %s16, 3
      %p179 = pnand %p177, %p178
      %p180 = pneg %p179
      // Predicated region
      $region29: #{tpu_custom_call.1} parent=5 // pred_check
        _
      $region30: #{tpu_custom_call.1} parent=5 // pred_check_branch
        %182 = sbr.rel (%p179) target = $region32
      $region31: #{tpu_custom_call.1} parent=5 // pred_region
        %s183 = ssub.s32 %s16, 1
        %s184 = sand.u32 %s29, 1
        %s185 = scalar_lea.sflag [#allocation5], %s184
        %s186 = sand.u32 %s29, 1
        %s187 = smul.addr %s186, 32
        %s188 = scalar_lea.vmem [#allocation4], %s187
        // Predicated region
        $region33: #{tpu_custom_call.1} parent=31 // pred_check
          %p189 = pneg %p42
        $region34: #{tpu_custom_call.1} parent=31 // pred_check_branch
          %191 = sbr.rel (%p189) target = $region36
        $region35: #{tpu_custom_call.1} parent=31 // pred_region
          %192 = dma.done %s185, 512
        $region36: #{tpu_custom_call.1} parent=31 // pred_fallthru
          _
        // Predicated region
        $region37: #{tpu_custom_call.1} parent=31 // pred_check
          %p193 = pneg %p63
        $region38: #{tpu_custom_call.1} parent=31 // pred_check_branch
          %195 = sbr.rel (%p193) target = $region40
        $region39: #{tpu_custom_call.1} parent=31 // pred_region
          %196 = dma.done [#allocation8], 46080
        $region40: #{tpu_custom_call.1} parent=31 // pred_fallthru
          _
        // Predicated region
        $region41: #{tpu_custom_call.1} parent=31 // pred_check
          %p197 = pneg %p84
        $region42: #{tpu_custom_call.1} parent=31 // pred_check_branch
          %199 = sbr.rel (%p197) target = $region44
        $region43: #{tpu_custom_call.1} parent=31 // pred_region
          %200 = dma.done [#allocation8], 80
        $region44: #{tpu_custom_call.1} parent=31 // pred_fallthru
          _
        %s201 = sand.u32 %s29, 1
        %s202 = scalar_lea.sflag [#allocation5], %s201
        %s203 = sand.u32 %s29, 1
        %s204 = smul.addr %s203, 32
        %s205 = scalar_lea.vmem [#allocation4], %s204
        %p206 = pneg %p42
        %p207 = pneg %p39
        %p208 = pneg %p63
        %p209 = pneg %p60
        %p210 = pneg %p84
        %p211 = pneg %p81
        %p212 = pneg %p110
        %p213 = pneg %p107
        %s214 = sand.u32 %s97, 1
        %s215 = scalar_lea.sflag [#allocation6], %s214
        %s216 = sand.u32 %s97, 1
        %s217 = smul.addr %s216, 32
        %s218 = scalar_lea.vmem [#allocation10], %s217
        %s219 = smul.u32 2, %s21
        %s220 = smul.u32 2, %s21
        %vm222 = vcmask 1041408
        %vm223 = vsmask.f32 1280
        %vm224 = vmand %vm222, %vm223
        %v225 = vld [vmem:[#allocation2] sm:$0x3]
        %v226 = vsel %vm224, 0, %v225
        %227 = vst [vmem:[#allocation2] sm:$0x3] %v226
        %v228 = vld [vmem:[#allocation2 + $0xc] sm:$0x3]
        %v229 = vsel %vm224, 0, %v228
        %230 = vst [vmem:[#allocation2 + $0xc] sm:$0x3] %v229
        %vm231 = vcmask 1042433
        %vm232 = vsmask.f32 7942
        %vm233 = vmand %vm231, %vm232
        %v234 = vld [vmem:[#allocation2 + $0x8] sm:$0x6]
        %v235 = vsel %vm233, 0, %v234
        %236 = vst [vmem:[#allocation2 + $0x8] sm:$0x6] %v235
        %v237 = vld [vmem:[#allocation2 + $0x14] sm:$0x6]
        %v238 = vsel %vm233, 0, %v237
        %239 = vst [vmem:[#allocation2 + $0x14] sm:$0x6] %v238
        %v240 = vld [vmem:[#allocation3] sm:$0x3]
        %v241 = vsel %vm224, 0, %v240
        %242 = vst [vmem:[#allocation3] sm:$0x3] %v241
        %v243 = vld [vmem:[#allocation3 + $0xc] sm:$0x3]
        %v244 = vsel %vm224, 0, %v243
        %245 = vst [vmem:[#allocation3 + $0xc] sm:$0x3] %v244
        %v246 = vld [vmem:[#allocation3 + $0x8] sm:$0x6]
        %v247 = vsel %vm233, 0, %v246
        %248 = vst [vmem:[#allocation3 + $0x8] sm:$0x6] %v247
        %v249 = vld [vmem:[#allocation3 + $0x14] sm:$0x6]
        %v250 = vsel %vm233, 0, %v249
        %251 = vst [vmem:[#allocation3 + $0x14] sm:$0x6] %v250
        %v252 = vld [vmem:[%s188] sm:$0xff]
        %v253 = vld [vmem:[%s188 + $0x8] sm:$0xff]
        %v254 = vld [vmem:[%s188 + $0x10] sm:$0xff]
        %v255 = vld [vmem:[%s188 + $0x18] sm:$0xff]
        %v256 = vpack.c.bf16 %v253, %v252
        %v257 = vpack.c.bf16 %v255, %v254
        %v260 = vunpack.c.l.b16 %v256
        %v261 = vunpack.c.h.b16 %v256
        %v262 = vunpack.c.l.b16 %v257
        %v263 = vunpack.c.h.b16 %v257
        %v264 = vpack.c.b16 %v260, %v260
        %v265 = vpack.c.b16 %v261, %v261
        %v266 = vpack.c.b16 %v262, %v262
        %v267 = vpack.c.b16 %v263, %v263
        %vm268 = vsmask.f32 5392
        %vm269 = vmor %vm223, %vm268
        %v271 = vshrl.u32 %v264, 16
        %v273 = vrot.slane %v271, 6
        %v274 = vshll.u32 %v264, 16
        %v276 = vrot.slane %v274, 7
        %v277 = vor.u32 %v273, %v276
        %v278 = vrot.slane %v277, 4
        %v280 = vshrl.u32 %v265, 16
        %v282 = vrot.slane %v280, 6
        %v283 = vshll.u32 %v265, 16
        %v285 = vrot.slane %v283, 7
        %v286 = vor.u32 %v282, %v285
        %v287 = vsel %vm269, %v278, %v286
        %v288 = vrot.slane %v286, 4
        %v290 = vshrl.u32 %v266, 16
        %v292 = vrot.slane %v290, 6
        %v293 = vshll.u32 %v266, 16
        %v295 = vrot.slane %v293, 7
        %v296 = vor.u32 %v292, %v295
        %v297 = vrot.slane %v296, 4
        %v299 = vshrl.u32 %v267, 16
        %v301 = vrot.slane %v299, 6
        %v302 = vshll.u32 %v267, 16
        %v304 = vrot.slane %v302, 7
        %v305 = vor.u32 %v301, %v304
        %v306 = vsel %vm269, %v297, %v305
        %v307 = vrot.slane %v305, 4
        %vm314 = vcmask 1043457
        %vm315 = vmand %vm314, %vm232
        %v316 = vld [vmem:[#allocation2] sm:$0xe]
        %v317 = vsel %vm315, %v277, %v316
        %318 = vst [vmem:[#allocation2] sm:$0xe] %v317
        %319 = vst [vmem:[#allocation2 + $0x4] sm:$0xf] %v287
        %v320 = vld [vmem:[#allocation2 + $0x8] sm:$0x3]
        %v321 = vsel %vm224, %v288, %v320
        %322 = vst [vmem:[#allocation2 + $0x8] sm:$0x3] %v321
        %v323 = vld [vmem:[#allocation2 + $0xc] sm:$0xe]
        %v324 = vsel %vm315, %v296, %v323
        %325 = vst [vmem:[#allocation2 + $0xc] sm:$0xe] %v324
        %326 = vst [vmem:[#allocation2 + $0x10] sm:$0xf] %v306
        %v327 = vld [vmem:[#allocation2 + $0x14] sm:$0x3]
        %v328 = vsel %vm224, %v307, %v327
        %329 = vst [vmem:[#allocation2 + $0x14] sm:$0x3] %v328
        %v330 = vld [vmem:[#allocation2] sm:$0xe]
        %v331 = vld [vmem:[#allocation2 + $0x4] sm:$0xf]
        %v332 = vld [vmem:[#allocation2 + $0x8] sm:$0x1]
        %v333 = vld [vmem:[#allocation2 + $0xc] sm:$0xe]
        %v334 = vld [vmem:[#allocation2 + $0x10] sm:$0xf]
        %v335 = vld [vmem:[#allocation2 + $0x14] sm:$0x1]
        %vm342 = vcmask 1042432
        %vm343 = vcmask 1046532
        %vm344 = vmor %vm342, %vm343
        %v345 = vrot.slane %v330, 5
        %v346 = vrot.slane %v345, 4
        %v347 = vrot.slane %v331, 5
        %v348 = vsel %vm344, %v346, %v347
        %v349 = vrot.slane %v347, 4
        %v350 = vrot.slane %v332, 5
        %v351 = vsel %vm344, %v349, %v350
        %v352 = vrot.slane %v333, 5
        %v353 = vrot.slane %v352, 4
        %v354 = vrot.slane %v334, 5
        %v355 = vsel %vm344, %v353, %v354
        %v356 = vrot.slane %v354, 4
        %v357 = vrot.slane %v335, 5
        %v358 = vsel %vm344, %v356, %v357
        %v359 = vunpack.c.l.b16 %v348
        %v360 = vunpack.c.l.b16 %v351
        %v361 = vunpack.c.l.b16 %v355
        %v362 = vunpack.c.l.b16 %v358
        %v363 = vpack.c.b16 %v360, %v359
        %v364 = vpack.c.b16 %v362, %v361
        %365 = vrot.lane.b32.xlu0 %v363, 8
        %v366 = vpop.permute.xlu0 %365
        %367 = vrot.lane.b32.xlu0 %v364, 8
        %v368 = vpop.permute.xlu0 %367
        %vm369 = vcmask 64512
        %v372 = vsel %vm369, 0, %v366
        %v375 = vsel %vm369, 0, %v368
        %377 = vrot.lane.b32.xlu0 %v363, 120
        %v378 = vpop.permute.xlu0 %377
        %379 = vrot.lane.b32.xlu0 %v364, 120
        %v380 = vpop.permute.xlu0 %379
        %vm381 = vcmask 982016
        %v383 = vsel %vm381, %v378, 0
        %v386 = vsel %vm381, %v380, 0
        %v388 = vld [vmem:[#allocation2 + $0x8] sm:$0x3]
        %v389 = vld [vmem:[#allocation2 + $0x14] sm:$0x3]
        %vm390 = vsmask.f32 2304
        %vm391 = vsmask.f32 6416
        %vm392 = vmor %vm390, %vm391
        %v394 = vshrl.u32 %v330, 16
        %v396 = vrot.slane %v394, 5
        %v397 = vshll.u32 %v330, 16
        %v399 = vrot.slane %v397, 6
        %v400 = vor.u32 %v396, %v399
        %v401 = vrot.slane %v400, 4
        %v403 = vshrl.u32 %v331, 16
        %v405 = vrot.slane %v403, 5
        %v406 = vshll.u32 %v331, 16
        %v408 = vrot.slane %v406, 6
        %v409 = vor.u32 %v405, %v408
        %v410 = vsel %vm392, %v401, %v409
        %v411 = vrot.slane %v409, 4
        %v413 = vshrl.u32 %v388, 16
        %v415 = vrot.slane %v413, 5
        %v416 = vshll.u32 %v388, 16
        %v418 = vrot.slane %v416, 6
        %v419 = vor.u32 %v415, %v418
        %v420 = vsel %vm392, %v411, %v419
        %v422 = vshrl.u32 %v333, 16
        %v424 = vrot.slane %v422, 5
        %v425 = vshll.u32 %v333, 16
        %v427 = vrot.slane %v425, 6
        %v428 = vor.u32 %v424, %v427
        %v429 = vrot.slane %v428, 4
        %v431 = vshrl.u32 %v334, 16
        %v433 = vrot.slane %v431, 5
        %v434 = vshll.u32 %v334, 16
        %v436 = vrot.slane %v434, 6
        %v437 = vor.u32 %v433, %v436
        %v438 = vsel %vm392, %v429, %v437
        %v439 = vrot.slane %v437, 4
        %v441 = vshrl.u32 %v389, 16
        %v443 = vrot.slane %v441, 5
        %v444 = vshll.u32 %v389, 16
        %v446 = vrot.slane %v444, 6
        %v447 = vor.u32 %v443, %v446
        %v448 = vsel %vm392, %v439, %v447
        %v449 = vunpack.c.l.b16 %v410
        %v450 = vunpack.c.l.b16 %v420
        %v451 = vunpack.c.l.b16 %v438
        %v452 = vunpack.c.l.b16 %v448
        %v453 = vpack.c.b16 %v450, %v449
        %v454 = vpack.c.b16 %v452, %v451
        %455 = vrot.lane.b32.xlu0 %v453, 8
        %v456 = vpop.permute.xlu0 %455
        %457 = vrot.lane.b32.xlu0 %v454, 8
        %v458 = vpop.permute.xlu0 %457
        %v460 = vsel %vm369, 0, %v456
        %v463 = vsel %vm369, 0, %v458
        %465 = vrot.lane.b32.xlu0 %v453, 120
        %v466 = vpop.permute.xlu0 %465
        %467 = vrot.lane.b32.xlu0 %v454, 120
        %v468 = vpop.permute.xlu0 %467
        %v470 = vsel %vm381, %v466, 0
        %v473 = vsel %vm381, %v468, 0
        %v475 = vld [vmem:[#allocation2] sm:$0xc]
        %v476 = vld [vmem:[#allocation2 + $0xc] sm:$0xc]
        %vm481 = vcmask 1045508
        %vm482 = vmor %vm222, %vm481
        %v483 = vrot.slane %v475, 6
        %v484 = vrot.slane %v483, 4
        %v485 = vrot.slane %v331, 6
        %v486 = vsel %vm482, %v484, %v485
        %v487 = vrot.slane %v485, 4
        %v488 = vrot.slane %v388, 6
        %v489 = vsel %vm482, %v487, %v488
        %v490 = vrot.slane %v476, 6
        %v491 = vrot.slane %v490, 4
        %v492 = vrot.slane %v334, 6
        %v493 = vsel %vm482, %v491, %v492
        %v494 = vrot.slane %v492, 4
        %v495 = vrot.slane %v389, 6
        %v496 = vsel %vm482, %v494, %v495
        %v497 = vunpack.c.l.b16 %v486
        %v498 = vunpack.c.l.b16 %v489
        %v499 = vunpack.c.l.b16 %v493
        %v500 = vunpack.c.l.b16 %v496
        %v501 = vpack.c.b16 %v498, %v497
        %v502 = vpack.c.b16 %v500, %v499
        %503 = vrot.lane.b32.xlu0 %v501, 8
        %v504 = vpop.permute.xlu0 %503
        %505 = vrot.lane.b32.xlu0 %v502, 8
        %v506 = vpop.permute.xlu0 %505
        %v508 = vsel %vm369, 0, %v504
        %v511 = vsel %vm369, 0, %v506
        %513 = vrot.lane.b32.xlu0 %v501, 120
        %v514 = vpop.permute.xlu0 %513
        %515 = vrot.lane.b32.xlu0 %v502, 120
        %v516 = vpop.permute.xlu0 %515
        %v518 = vsel %vm381, %v514, 0
        %v521 = vsel %vm381, %v516, 0
        %v529 = vld [vmem:[#allocation7] sm:$0xf]
        %v530 = vld [vmem:[#allocation7 + $0x4] sm:$0xf]
        %v531 = vld [vmem:[#allocation7 + $0x8] sm:$0xf]
        %v532 = vld [vmem:[#allocation7 + $0xc] sm:$0xf]
        %v533 = vld [vmem:[#allocation7 + $0x10] sm:$0xf]
        %v534 = vld [vmem:[#allocation7 + $0x14] sm:$0xf]
        %v535 = vld [vmem:[#allocation7 + $0x18] sm:$0xf]
        %v536 = vld [vmem:[#allocation7 + $0x1c] sm:$0xf]
        %v537 = vld [vmem:[#allocation7 + $0x20] sm:$0xf]
        %v538 = vld [vmem:[#allocation7 + $0x24] sm:$0xf]
        %v539 = vld [vmem:[#allocation7 + $0x28] sm:$0xf]
        %v540 = vld [vmem:[#allocation7 + $0x2c] sm:$0xf]
        %v541 = vld [vmem:[#allocation7 + $0x30] sm:$0xf]
        %v542 = vld [vmem:[#allocation7 + $0x34] sm:$0xf]
        %v543 = vld [vmem:[#allocation7 + $0x38] sm:$0xf]
        %v544 = vld [vmem:[#allocation7 + $0x3c] sm:$0xf]
        %v545 = vld [vmem:[#allocation7 + $0x40] sm:$0xf]
        %v546 = vld [vmem:[#allocation7 + $0x44] sm:$0xf]
        %v547 = vld [vmem:[#allocation7 + $0x48] sm:$0xf]
        %v548 = vld [vmem:[#allocation7 + $0x4c] sm:$0xf]
        %v549 = vld [vmem:[#allocation7 + $0x50] sm:$0xf]
        %v550 = vld [vmem:[#allocation7 + $0x54] sm:$0xf]
        %v551 = vld [vmem:[#allocation7 + $0x58] sm:$0xf]
        %v552 = vld [vmem:[#allocation7 + $0x5c] sm:$0xf]
        %v553 = vld [vmem:[#allocation7 + $0x60] sm:$0xf]
        %v554 = vld [vmem:[#allocation7 + $0x64] sm:$0xf]
        %v555 = vld [vmem:[#allocation7 + $0x68] sm:$0xf]
        %v556 = vld [vmem:[#allocation7 + $0x6c] sm:$0xf]
        %v557 = vld [vmem:[#allocation7 + $0x70] sm:$0xf]
        %v558 = vld [vmem:[#allocation7 + $0x74] sm:$0xf]
        %v559 = vld [vmem:[#allocation7 + $0x78] sm:$0xf]
        %v560 = vld [vmem:[#allocation7 + $0x7c] sm:$0xf]
        %v561 = vld [vmem:[#allocation7 + $0x80] sm:$0xf]
        %v562 = vld [vmem:[#allocation7 + $0x84] sm:$0xf]
        %v563 = vld [vmem:[#allocation7 + $0x88] sm:$0xf]
        %v564 = vld [vmem:[#allocation7 + $0x8c] sm:$0xf]
        %v565 = vld [vmem:[#allocation7 + $0x90] sm:$0xf]
        %v566 = vld [vmem:[#allocation7 + $0x94] sm:$0xf]
        %v567 = vld [vmem:[#allocation7 + $0x98] sm:$0xf]
        %v568 = vld [vmem:[#allocation7 + $0x9c] sm:$0xf]
        %v569 = vld [vmem:[#allocation7 + $0xa0] sm:$0xf]
        %v570 = vld [vmem:[#allocation7 + $0xa4] sm:$0xf]
        %v571 = vld [vmem:[#allocation7 + $0xa8] sm:$0xf]
        %v572 = vld [vmem:[#allocation7 + $0xac] sm:$0xf]
        %v573 = vld [vmem:[#allocation7 + $0xb0] sm:$0xf]
        %v574 = vld [vmem:[#allocation7 + $0xb4] sm:$0xf]
        %v575 = vld [vmem:[#allocation7 + $0xb8] sm:$0xf]
        %v576 = vld [vmem:[#allocation7 + $0xbc] sm:$0xf]
        %v577 = vld [vmem:[#allocation7 + $0xc0] sm:$0xf]
        %v578 = vld [vmem:[#allocation7 + $0xc4] sm:$0xf]
        %v579 = vld [vmem:[#allocation7 + $0xc8] sm:$0xf]
        %v580 = vld [vmem:[#allocation7 + $0xcc] sm:$0xf]
        %v581 = vld [vmem:[#allocation7 + $0xd0] sm:$0xf]
        %v582 = vld [vmem:[#allocation7 + $0xd4] sm:$0xf]
        %v583 = vld [vmem:[#allocation7 + $0xd8] sm:$0xf]
        %v584 = vld [vmem:[#allocation7 + $0xdc] sm:$0xf]
        %v585 = vld [vmem:[#allocation7 + $0xe0] sm:$0xf]
        %v586 = vld [vmem:[#allocation7 + $0xe4] sm:$0xf]
        %v587 = vld [vmem:[#allocation7 + $0xe8] sm:$0xf]
        %v588 = vld [vmem:[#allocation7 + $0xec] sm:$0xf]
        %v589 = vld [vmem:[#allocation7 + $0xf0] sm:$0xf]
        %v590 = vld [vmem:[#allocation7 + $0xf4] sm:$0xf]
        %v591 = vld [vmem:[#allocation7 + $0xf8] sm:$0xf]
        %v592 = vld [vmem:[#allocation7 + $0xfc] sm:$0xf]
        %v593 = vld [vmem:[#allocation7 + $0x100] sm:$0xf]
        %v594 = vld [vmem:[#allocation7 + $0x104] sm:$0xf]
        %v595 = vld [vmem:[#allocation7 + $0x108] sm:$0xf]
        %v596 = vld [vmem:[#allocation7 + $0x10c] sm:$0xf]
        %v597 = vld [vmem:[#allocation7 + $0x110] sm:$0xf]
        %v598 = vld [vmem:[#allocation7 + $0x114] sm:$0xf]
        %v599 = vld [vmem:[#allocation7 + $0x118] sm:$0xf]
        %v600 = vld [vmem:[#allocation7 + $0x11c] sm:$0xf]
        %v601 = vld [vmem:[#allocation7 + $0x120] sm:$0xf]
        %v602 = vld [vmem:[#allocation7 + $0x124] sm:$0xf]
        %v603 = vld [vmem:[#allocation7 + $0x128] sm:$0xf]
        %v604 = vld [vmem:[#allocation7 + $0x12c] sm:$0xf]
        %v605 = vld [vmem:[#allocation7 + $0x130] sm:$0xf]
        %v606 = vld [vmem:[#allocation7 + $0x134] sm:$0xf]
        %v607 = vld [vmem:[#allocation7 + $0x138] sm:$0xf]
        %v608 = vld [vmem:[#allocation7 + $0x13c] sm:$0xf]
        %v609 = vld [vmem:[#allocation7 + $0x140] sm:$0xf]
        %v610 = vld [vmem:[#allocation7 + $0x144] sm:$0xf]
        %v611 = vld [vmem:[#allocation7 + $0x148] sm:$0xf]
        %v612 = vld [vmem:[#allocation7 + $0x14c] sm:$0xf]
        %v613 = vld [vmem:[#allocation7 + $0x150] sm:$0xf]
        %v614 = vld [vmem:[#allocation7 + $0x154] sm:$0xf]
        %v615 = vld [vmem:[#allocation7 + $0x158] sm:$0xf]
        %v616 = vld [vmem:[#allocation7 + $0x15c] sm:$0xf]
        %v617 = vld [vmem:[#allocation7 + $0x160] sm:$0xf]
        %v618 = vld [vmem:[#allocation7 + $0x164] sm:$0xf]
        %v619 = vld [vmem:[#allocation7 + $0x168] sm:$0xf]
        %v620 = vld [vmem:[#allocation7 + $0x16c] sm:$0xf]
        %v621 = vld [vmem:[#allocation7 + $0x170] sm:$0xf]
        %v622 = vld [vmem:[#allocation7 + $0x174] sm:$0xf]
        %v623 = vld [vmem:[#allocation7 + $0x178] sm:$0xf]
        %v624 = vld [vmem:[#allocation7 + $0x17c] sm:$0xf]
        %v625 = vld [vmem:[#allocation7 + $0x180] sm:$0xf]
        %v626 = vld [vmem:[#allocation7 + $0x184] sm:$0xf]
        %v627 = vld [vmem:[#allocation7 + $0x188] sm:$0xf]
        %v628 = vld [vmem:[#allocation7 + $0x18c] sm:$0xf]
        %v629 = vld [vmem:[#allocation7 + $0x190] sm:$0xf]
        %v630 = vld [vmem:[#allocation7 + $0x194] sm:$0xf]
        %v631 = vld [vmem:[#allocation7 + $0x198] sm:$0xf]
        %v632 = vld [vmem:[#allocation7 + $0x19c] sm:$0xf]
        %v633 = vld [vmem:[#allocation7 + $0x1a0] sm:$0xf]
        %v634 = vld [vmem:[#allocation7 + $0x1a4] sm:$0xf]
        %v635 = vld [vmem:[#allocation7 + $0x1a8] sm:$0xf]
        %v636 = vld [vmem:[#allocation7 + $0x1ac] sm:$0xf]
        %v637 = vld [vmem:[#allocation7 + $0x1b0] sm:$0xf]
        %v638 = vld [vmem:[#allocation7 + $0x1b4] sm:$0xf]
        %v639 = vld [vmem:[#allocation7 + $0x1b8] sm:$0xf]
        %v640 = vld [vmem:[#allocation7 + $0x1bc] sm:$0xf]
        %v641 = vld [vmem:[#allocation7 + $0x1c0] sm:$0xf]
        %v642 = vld [vmem:[#allocation7 + $0x1c4] sm:$0xf]
        %v643 = vld [vmem:[#allocation7 + $0x1c8] sm:$0xf]
        %v644 = vld [vmem:[#allocation7 + $0x1cc] sm:$0xf]
        %v645 = vld [vmem:[#allocation7 + $0x1d0] sm:$0xf]
        %v646 = vld [vmem:[#allocation7 + $0x1d4] sm:$0xf]
        %v647 = vld [vmem:[#allocation7 + $0x1d8] sm:$0xf]
        %v648 = vld [vmem:[#allocation7 + $0x1dc] sm:$0xf]
        %v649 = vld [vmem:[#allocation7 + $0x1e0] sm:$0xf]
        %v650 = vld [vmem:[#allocation7 + $0x1e4] sm:$0xf]
        %v651 = vld [vmem:[#allocation7 + $0x1e8] sm:$0xf]
        %v652 = vld [vmem:[#allocation7 + $0x1ec] sm:$0xf]
        %v653 = vld [vmem:[#allocation7 + $0x1f0] sm:$0xf]
        %v654 = vld [vmem:[#allocation7 + $0x1f4] sm:$0xf]
        %v655 = vld [vmem:[#allocation7 + $0x1f8] sm:$0xf]
        %v656 = vld [vmem:[#allocation7 + $0x1fc] sm:$0xf]
        %v657 = vld [vmem:[#allocation7 + $0x200] sm:$0xf]
        %v658 = vld [vmem:[#allocation7 + $0x204] sm:$0xf]
        %v659 = vld [vmem:[#allocation7 + $0x208] sm:$0xf]
        %v660 = vld [vmem:[#allocation7 + $0x20c] sm:$0xf]
        %v661 = vld [vmem:[#allocation7 + $0x210] sm:$0xf]
        %v662 = vld [vmem:[#allocation7 + $0x214] sm:$0xf]
        %v663 = vld [vmem:[#allocation7 + $0x218] sm:$0xf]
        %v664 = vld [vmem:[#allocation7 + $0x21c] sm:$0xf]
        %v665 = vld [vmem:[#allocation7 + $0x220] sm:$0xf]
        %v666 = vld [vmem:[#allocation7 + $0x224] sm:$0xf]
        %v667 = vld [vmem:[#allocation7 + $0x228] sm:$0xf]
        %v668 = vld [vmem:[#allocation7 + $0x22c] sm:$0xf]
        %v669 = vld [vmem:[#allocation7 + $0x230] sm:$0xf]
        %v670 = vld [vmem:[#allocation7 + $0x234] sm:$0xf]
        %v671 = vld [vmem:[#allocation7 + $0x238] sm:$0xf]
        %v672 = vld [vmem:[#allocation7 + $0x23c] sm:$0xf]
        %v673 = vld [vmem:[#allocation9] sm:$0x1]
        %v675 = vlaneseq
        %v676 = vshrl.u32 %v675, 7
        %v677 = vsub.s32 0, %v676
        %v678 = vrot.slane %v673, %v677
        %v824 = vunpack.c.l.b16 %v529
        %v825 = vunpack.c.l.b16 %v530
        %v826 = vunpack.c.l.b16 %v531
        %v827 = vunpack.c.l.b16 %v532
        %v828 = vunpack.c.l.b16 %v533
        %v829 = vunpack.c.l.b16 %v534
        %v830 = vunpack.c.l.b16 %v535
        %v831 = vunpack.c.l.b16 %v536
        %v832 = vunpack.c.l.b16 %v537
        %v833 = vunpack.c.l.b16 %v538
        %v834 = vunpack.c.l.b16 %v539
        %v835 = vunpack.c.l.b16 %v540
        %v836 = vunpack.c.l.b16 %v541
        %v837 = vunpack.c.l.b16 %v542
        %v838 = vunpack.c.l.b16 %v543
        %v839 = vunpack.c.l.b16 %v544
        %v840 = vunpack.c.l.b16 %v545
        %v841 = vunpack.c.l.b16 %v546
        %v842 = vunpack.c.l.b16 %v547
        %v843 = vunpack.c.l.b16 %v548
        %v844 = vunpack.c.l.b16 %v549
        %v845 = vunpack.c.l.b16 %v550
        %v846 = vunpack.c.l.b16 %v551
        %v847 = vunpack.c.l.b16 %v552
        %v848 = vunpack.c.l.b16 %v553
        %v849 = vunpack.c.l.b16 %v554
        %v850 = vunpack.c.l.b16 %v555
        %v851 = vunpack.c.l.b16 %v556
        %v852 = vunpack.c.l.b16 %v557
        %v853 = vunpack.c.l.b16 %v558
        %v854 = vunpack.c.l.b16 %v559
        %v855 = vunpack.c.l.b16 %v560
        %v856 = vunpack.c.l.b16 %v561
        %v857 = vunpack.c.l.b16 %v562
        %v858 = vunpack.c.l.b16 %v563
        %v859 = vunpack.c.l.b16 %v564
        %v860 = vunpack.c.l.b16 %v565
        %v861 = vunpack.c.l.b16 %v566
        %v862 = vunpack.c.l.b16 %v567
        %v863 = vunpack.c.l.b16 %v568
        %v864 = vunpack.c.l.b16 %v569
        %v865 = vunpack.c.l.b16 %v570
        %v866 = vunpack.c.l.b16 %v571
        %v867 = vunpack.c.l.b16 %v572
        %v868 = vunpack.c.l.b16 %v573
        %v869 = vunpack.c.l.b16 %v574
        %v870 = vunpack.c.l.b16 %v575
        %v871 = vunpack.c.l.b16 %v576
        %v872 = vunpack.c.l.b16 %v577
        %v873 = vunpack.c.l.b16 %v578
        %v874 = vunpack.c.l.b16 %v579
        %v875 = vunpack.c.l.b16 %v580
        %v876 = vunpack.c.l.b16 %v581
        %v877 = vunpack.c.l.b16 %v582
        %v878 = vunpack.c.l.b16 %v583
        %v879 = vunpack.c.l.b16 %v584
        %v880 = vunpack.c.l.b16 %v585
        %v881 = vunpack.c.l.b16 %v586
        %v882 = vunpack.c.l.b16 %v587
        %v883 = vunpack.c.l.b16 %v588
        %v884 = vunpack.c.l.b16 %v589
        %v885 = vunpack.c.l.b16 %v590
        %v886 = vunpack.c.l.b16 %v591
        %v887 = vunpack.c.l.b16 %v592
        %v888 = vunpack.c.l.b16 %v593
        %v889 = vunpack.c.l.b16 %v594
        %v890 = vunpack.c.l.b16 %v595
        %v891 = vunpack.c.l.b16 %v596
        %v892 = vunpack.c.l.b16 %v597
        %v893 = vunpack.c.l.b16 %v598
        %v894 = vunpack.c.l.b16 %v599
        %v895 = vunpack.c.l.b16 %v600
        %v896 = vunpack.c.l.b16 %v601
        %v897 = vunpack.c.l.b16 %v602
        %v898 = vunpack.c.l.b16 %v603
        %v899 = vunpack.c.l.b16 %v604
        %v900 = vunpack.c.l.b16 %v605
        %v901 = vunpack.c.l.b16 %v606
        %v902 = vunpack.c.l.b16 %v607
        %v903 = vunpack.c.l.b16 %v608
        %v904 = vunpack.c.l.b16 %v609
        %v905 = vunpack.c.l.b16 %v610
        %v906 = vunpack.c.l.b16 %v611
        %v907 = vunpack.c.l.b16 %v612
        %v908 = vunpack.c.l.b16 %v613
        %v909 = vunpack.c.l.b16 %v614
        %v910 = vunpack.c.l.b16 %v615
        %v911 = vunpack.c.l.b16 %v616
        %v912 = vunpack.c.l.b16 %v617
        %v913 = vunpack.c.l.b16 %v618
        %v914 = vunpack.c.l.b16 %v619
        %v915 = vunpack.c.l.b16 %v620
        %v916 = vunpack.c.l.b16 %v621
        %v917 = vunpack.c.l.b16 %v622
        %v918 = vunpack.c.l.b16 %v623
        %v919 = vunpack.c.l.b16 %v624
        %v920 = vunpack.c.l.b16 %v625
        %v921 = vunpack.c.l.b16 %v626
        %v922 = vunpack.c.l.b16 %v627
        %v923 = vunpack.c.l.b16 %v628
        %v924 = vunpack.c.l.b16 %v629
        %v925 = vunpack.c.l.b16 %v630
        %v926 = vunpack.c.l.b16 %v631
        %v927 = vunpack.c.l.b16 %v632
        %v928 = vunpack.c.l.b16 %v633
        %v929 = vunpack.c.l.b16 %v634
        %v930 = vunpack.c.l.b16 %v635
        %v931 = vunpack.c.l.b16 %v636
        %v932 = vunpack.c.l.b16 %v637
        %v933 = vunpack.c.l.b16 %v638
        %v934 = vunpack.c.l.b16 %v639
        %v935 = vunpack.c.l.b16 %v640
        %v936 = vunpack.c.l.b16 %v641
        %v937 = vunpack.c.l.b16 %v642
        %v938 = vunpack.c.l.b16 %v643
        %v939 = vunpack.c.l.b16 %v644
        %v940 = vunpack.c.l.b16 %v645
        %v941 = vunpack.c.l.b16 %v646
        %v942 = vunpack.c.l.b16 %v647
        %v943 = vunpack.c.l.b16 %v648
        %v944 = vunpack.c.l.b16 %v649
        %v945 = vunpack.c.l.b16 %v650
        %v946 = vunpack.c.l.b16 %v651
        %v947 = vunpack.c.l.b16 %v652
        %v948 = vunpack.c.l.b16 %v653
        %v949 = vunpack.c.l.b16 %v654
        %v950 = vunpack.c.l.b16 %v655
        %v951 = vunpack.c.l.b16 %v656
        %v952 = vunpack.c.l.b16 %v657
        %v953 = vunpack.c.l.b16 %v658
        %v954 = vunpack.c.l.b16 %v659
        %v955 = vunpack.c.l.b16 %v660
        %v956 = vunpack.c.l.b16 %v661
        %v957 = vunpack.c.l.b16 %v662
        %v958 = vunpack.c.l.b16 %v663
        %v959 = vunpack.c.l.b16 %v664
        %v960 = vunpack.c.l.b16 %v665
        %v961 = vunpack.c.l.b16 %v666
        %v962 = vunpack.c.l.b16 %v667
        %v963 = vunpack.c.l.b16 %v668
        %v964 = vunpack.c.l.b16 %v669
        %v965 = vunpack.c.l.b16 %v670
        %v966 = vunpack.c.l.b16 %v671
        %v967 = vunpack.c.l.b16 %v672
        %v968 = vpack.c.b16 %v825, %v824
        %v969 = vpack.c.b16 %v827, %v826
        %v970 = vpack.c.b16 %v829, %v828
        %v971 = vpack.c.b16 %v831, %v830
        %v972 = vpack.c.b16 %v833, %v832
        %v973 = vpack.c.b16 %v835, %v834
        %v974 = vpack.c.b16 %v837, %v836
        %v975 = vpack.c.b16 %v839, %v838
        %v976 = vpack.c.b16 %v841, %v840
        %v977 = vpack.c.b16 %v843, %v842
        %v978 = vpack.c.b16 %v845, %v844
        %v979 = vpack.c.b16 %v847, %v846
        %v980 = vpack.c.b16 %v849, %v848
        %v981 = vpack.c.b16 %v851, %v850
        %v982 = vpack.c.b16 %v853, %v852
        %v983 = vpack.c.b16 %v855, %v854
        %v984 = vpack.c.b16 %v857, %v856
        %v985 = vpack.c.b16 %v859, %v858
        %v986 = vpack.c.b16 %v861, %v860
        %v987 = vpack.c.b16 %v863, %v862
        %v988 = vpack.c.b16 %v865, %v864
        %v989 = vpack.c.b16 %v867, %v866
        %v990 = vpack.c.b16 %v869, %v868
        %v991 = vpack.c.b16 %v871, %v870
        %v992 = vpack.c.b16 %v873, %v872
        %v993 = vpack.c.b16 %v875, %v874
        %v994 = vpack.c.b16 %v877, %v876
        %v995 = vpack.c.b16 %v879, %v878
        %v996 = vpack.c.b16 %v881, %v880
        %v997 = vpack.c.b16 %v883, %v882
        %v998 = vpack.c.b16 %v885, %v884
        %v999 = vpack.c.b16 %v887, %v886
        %v1000 = vpack.c.b16 %v889, %v888
        %v1001 = vpack.c.b16 %v891, %v890
        %v1002 = vpack.c.b16 %v893, %v892
        %v1003 = vpack.c.b16 %v895, %v894
        %v1004 = vpack.c.b16 %v897, %v896
        %v1005 = vpack.c.b16 %v899, %v898
        %v1006 = vpack.c.b16 %v901, %v900
        %v1007 = vpack.c.b16 %v903, %v902
        %v1008 = vpack.c.b16 %v905, %v904
        %v1009 = vpack.c.b16 %v907, %v906
        %v1010 = vpack.c.b16 %v909, %v908
        %v1011 = vpack.c.b16 %v911, %v910
        %v1012 = vpack.c.b16 %v913, %v912
        %v1013 = vpack.c.b16 %v915, %v914
        %v1014 = vpack.c.b16 %v917, %v916
        %v1015 = vpack.c.b16 %v919, %v918
        %v1016 = vpack.c.b16 %v921, %v920
        %v1017 = vpack.c.b16 %v923, %v922
        %v1018 = vpack.c.b16 %v925, %v924
        %v1019 = vpack.c.b16 %v927, %v926
        %v1020 = vpack.c.b16 %v929, %v928
        %v1021 = vpack.c.b16 %v931, %v930
        %v1022 = vpack.c.b16 %v933, %v932
        %v1023 = vpack.c.b16 %v935, %v934
        %v1024 = vpack.c.b16 %v937, %v936
        %v1025 = vpack.c.b16 %v939, %v938
        %v1026 = vpack.c.b16 %v941, %v940
        %v1027 = vpack.c.b16 %v943, %v942
        %v1028 = vpack.c.b16 %v945, %v944
        %v1029 = vpack.c.b16 %v947, %v946
        %v1030 = vpack.c.b16 %v949, %v948
        %v1031 = vpack.c.b16 %v951, %v950
        %v1032 = vpack.c.b16 %v953, %v952
        %v1033 = vpack.c.b16 %v955, %v954
        %v1034 = vpack.c.b16 %v957, %v956
        %v1035 = vpack.c.b16 %v959, %v958
        %v1036 = vpack.c.b16 %v961, %v960
        %v1037 = vpack.c.b16 %v963, %v962
        %v1038 = vpack.c.b16 %v965, %v964
        %v1039 = vpack.c.b16 %v967, %v966
        %1112 = vmatprep.subr.bf16.mxu0 0
        %1113 = vmatpush1.bf16.msra.mxu0 %v975
        %1114 = vmatprep.subr.bf16.mxu0 0
        %1115 = vmatpush1.bf16.msra.mxu0 %v974
        %1116 = vmatprep.subr.bf16.mxu0 0
        %1117 = vmatpush1.bf16.msra.mxu0 %v973
        %1118 = vmatprep.subr.bf16.mxu0 0
        %1119 = vmatpush1.bf16.msra.mxu0 %v972
        %1120 = vmatprep.subr.bf16.mxu0 0
        %1121 = vmatpush1.bf16.msra.mxu0 %v971
        %1122 = vmatprep.subr.bf16.mxu0 0
        %1123 = vmatpush1.bf16.msra.mxu0 %v970
        %1124 = vmatprep.subr.bf16.mxu0 0
        %1125 = vmatpush1.bf16.msra.mxu0 %v969
        %1126 = vmatprep.subr.bf16.mxu0 0
        %1127 = vmatpush1.bf16.msra.mxu0 %v968
        %1128 = vmatprep.subr.bf16.mxu0 0
        %1129 = vmatpush2.bf16.msra.mxu0 %v983
        %1130 = vmatprep.subr.bf16.mxu0 0
        %1131 = vmatpush2.bf16.msra.mxu0 %v982
        %1132 = vmatprep.subr.bf16.mxu0 0
        %1133 = vmatpush2.bf16.msra.mxu0 %v981
        %1134 = vmatprep.subr.bf16.mxu0 0
        %1135 = vmatpush2.bf16.msra.mxu0 %v980
        %1136 = vmatprep.subr.bf16.mxu0 0
        %1137 = vmatpush2.bf16.msra.mxu0 %v979
        %1138 = vmatprep.subr.bf16.mxu0 0
        %1139 = vmatpush2.bf16.msra.mxu0 %v978
        %1140 = vmatprep.subr.bf16.mxu0 0
        %1141 = vmatpush2.bf16.msra.mxu0 %v977
        %1142 = vmatprep.subr.bf16.mxu0 0
        %1143 = vmatpush2.bf16.msra.mxu0 %v976
        %1144 = vmatprep.mubr.bf16.mxu0 %v363
        %1145 = vmatmul.mubr.bf16.gmra.mxu0 %v372
        %v1146 = vpop.f32.mrf.mxu0
        %v1147 = vadd.f32 %v678, %v1146
        %v1148 = vpop.f32.mrf.mxu0
        %v1149 = vpop.f32.mrf.mxu0
        %v1150 = vadd.f32 %v678, %v1149
        %v1151 = vpop.f32.mrf.mxu0
        %1152 = vmatprep.mubr.bf16.mxu0 %v364
        %1153 = vmatmul.mubr.bf16.gmra.mxu0 %v375
        %v1154 = vpop.f32.mrf.mxu0
        %v1155 = vadd.f32 %v678, %v1154
        %v1156 = vpop.f32.mrf.mxu0
        %v1157 = vpop.f32.mrf.mxu0
        %v1158 = vadd.f32 %v678, %v1157
        %v1159 = vpop.f32.mrf.mxu0
        %1160 = vdwg.mxu0
        %1161 = vmatprep.subr.bf16.mxu0 0
        %1162 = vmatpush1.bf16.msra.mxu0 %v991
        %1163 = vmatprep.subr.bf16.mxu0 0
        %1164 = vmatpush1.bf16.msra.mxu0 %v990
        %1165 = vmatprep.subr.bf16.mxu0 0
        %1166 = vmatpush1.bf16.msra.mxu0 %v989
        %1167 = vmatprep.subr.bf16.mxu0 0
        %1168 = vmatpush1.bf16.msra.mxu0 %v988
        %1169 = vmatprep.subr.bf16.mxu0 0
        %1170 = vmatpush1.bf16.msra.mxu0 %v987
        %1171 = vmatprep.subr.bf16.mxu0 0
        %1172 = vmatpush1.bf16.msra.mxu0 %v986
        %1173 = vmatprep.subr.bf16.mxu0 0
        %1174 = vmatpush1.bf16.msra.mxu0 %v985
        %1175 = vmatprep.subr.bf16.mxu0 0
        %1176 = vmatpush1.bf16.msra.mxu0 %v984
        %1177 = vmatprep.subr.bf16.mxu0 0
        %1178 = vmatpush2.bf16.msra.mxu0 %v999
        %1179 = vmatprep.subr.bf16.mxu0 0
        %1180 = vmatpush2.bf16.msra.mxu0 %v998
        %1181 = vmatprep.subr.bf16.mxu0 0
        %1182 = vmatpush2.bf16.msra.mxu0 %v997
        %1183 = vmatprep.subr.bf16.mxu0 0
        %1184 = vmatpush2.bf16.msra.mxu0 %v996
        %1185 = vmatprep.subr.bf16.mxu0 0
        %1186 = vmatpush2.bf16.msra.mxu0 %v995
        %1187 = vmatprep.subr.bf16.mxu0 0
        %1188 = vmatpush2.bf16.msra.mxu0 %v994
        %1189 = vmatprep.subr.bf16.mxu0 0
        %1190 = vmatpush2.bf16.msra.mxu0 %v993
        %1191 = vmatprep.subr.bf16.mxu0 0
        %1192 = vmatpush2.bf16.msra.mxu0 %v992
        %1193 = vmatprep.mubr.bf16.mxu0 %v460
        %1194 = vmatmul.mubr.bf16.gmra.mxu0 %v383
        %v1195 = vpop.f32.mrf.mxu0
        %v1196 = vadd.f32 %v1147, %v1195
        %v1197 = vpop.f32.mrf.mxu0
        %v1198 = vpop.f32.mrf.mxu0
        %v1199 = vadd.f32 %v1150, %v1198
        %v1200 = vpop.f32.mrf.mxu0
        %1201 = vmatprep.mubr.bf16.mxu0 %v463
        %1202 = vmatmul.mubr.bf16.gmra.mxu0 %v386
        %v1203 = vpop.f32.mrf.mxu0
        %v1204 = vadd.f32 %v1155, %v1203
        %v1205 = vpop.f32.mrf.mxu0
        %v1206 = vpop.f32.mrf.mxu0
        %v1207 = vadd.f32 %v1158, %v1206
        %v1208 = vpop.f32.mrf.mxu0
        %1209 = vdwg.mxu0
        %1210 = vmatprep.subr.bf16.mxu0 0
        %1211 = vmatpush1.bf16.msra.mxu0 %v1007
        %1212 = vmatprep.subr.bf16.mxu0 0
        %1213 = vmatpush1.bf16.msra.mxu0 %v1006
        %1214 = vmatprep.subr.bf16.mxu0 0
        %1215 = vmatpush1.bf16.msra.mxu0 %v1005
        %1216 = vmatprep.subr.bf16.mxu0 0
        %1217 = vmatpush1.bf16.msra.mxu0 %v1004
        %1218 = vmatprep.subr.bf16.mxu0 0
        %1219 = vmatpush1.bf16.msra.mxu0 %v1003
        %1220 = vmatprep.subr.bf16.mxu0 0
        %1221 = vmatpush1.bf16.msra.mxu0 %v1002
        %1222 = vmatprep.subr.bf16.mxu0 0
        %1223 = vmatpush1.bf16.msra.mxu0 %v1001
        %1224 = vmatprep.subr.bf16.mxu0 0
        %1225 = vmatpush1.bf16.msra.mxu0 %v1000
        %1226 = vmatprep.subr.bf16.mxu0 0
        %1227 = vmatpush2.bf16.msra.mxu0 %v1015
        %1228 = vmatprep.subr.bf16.mxu0 0
        %1229 = vmatpush2.bf16.msra.mxu0 %v1014
        %1230 = vmatprep.subr.bf16.mxu0 0
        %1231 = vmatpush2.bf16.msra.mxu0 %v1013
        %1232 = vmatprep.subr.bf16.mxu0 0
        %1233 = vmatpush2.bf16.msra.mxu0 %v1012
        %1234 = vmatprep.subr.bf16.mxu0 0
        %1235 = vmatpush2.bf16.msra.mxu0 %v1011
        %1236 = vmatprep.subr.bf16.mxu0 0
        %1237 = vmatpush2.bf16.msra.mxu0 %v1010
        %1238 = vmatprep.subr.bf16.mxu0 0
        %1239 = vmatpush2.bf16.msra.mxu0 %v1009
        %1240 = vmatprep.subr.bf16.mxu0 0
        %1241 = vmatpush2.bf16.msra.mxu0 %v1008
        %1242 = vmatprep.mubr.bf16.mxu0 %v470
        %1243 = vmatmul.mubr.bf16.gmra.mxu0 %v453
        %v1244 = vpop.f32.mrf.mxu0
        %v1245 = vadd.f32 %v1196, %v1244
        %v1246 = vpop.f32.mrf.mxu0
        %v1247 = vpop.f32.mrf.mxu0
        %v1248 = vadd.f32 %v1199, %v1247
        %v1249 = vpop.f32.mrf.mxu0
        %1250 = vmatprep.mubr.bf16.mxu0 %v473
        %1251 = vmatmul.mubr.bf16.gmra.mxu0 %v454
        %v1252 = vpop.f32.mrf.mxu0
        %v1253 = vadd.f32 %v1204, %v1252
        %v1254 = vpop.f32.mrf.mxu0
        %v1255 = vpop.f32.mrf.mxu0
        %v1256 = vadd.f32 %v1207, %v1255
        %v1257 = vpop.f32.mrf.mxu0
        %1258 = vdwg.mxu0
        %1259 = vmatprep.subr.bf16.mxu0 0
        %1260 = vmatpush1.bf16.msra.mxu0 %v1023
        %1261 = vmatprep.subr.bf16.mxu0 0
        %1262 = vmatpush1.bf16.msra.mxu0 %v1022
        %1263 = vmatprep.subr.bf16.mxu0 0
        %1264 = vmatpush1.bf16.msra.mxu0 %v1021
        %1265 = vmatprep.subr.bf16.mxu0 0
        %1266 = vmatpush1.bf16.msra.mxu0 %v1020
        %1267 = vmatprep.subr.bf16.mxu0 0
        %1268 = vmatpush1.bf16.msra.mxu0 %v1019
        %1269 = vmatprep.subr.bf16.mxu0 0
        %1270 = vmatpush1.bf16.msra.mxu0 %v1018
        %1271 = vmatprep.subr.bf16.mxu0 0
        %1272 = vmatpush1.bf16.msra.mxu0 %v1017
        %1273 = vmatprep.subr.bf16.mxu0 0
        %1274 = vmatpush1.bf16.msra.mxu0 %v1016
        %1275 = vmatprep.subr.bf16.mxu0 0
        %1276 = vmatpush2.bf16.msra.mxu0 %v1031
        %1277 = vmatprep.subr.bf16.mxu0 0
        %1278 = vmatpush2.bf16.msra.mxu0 %v1030
        %1279 = vmatprep.subr.bf16.mxu0 0
        %1280 = vmatpush2.bf16.msra.mxu0 %v1029
        %1281 = vmatprep.subr.bf16.mxu0 0
        %1282 = vmatpush2.bf16.msra.mxu0 %v1028
        %1283 = vmatprep.subr.bf16.mxu0 0
        %1284 = vmatpush2.bf16.msra.mxu0 %v1027
        %1285 = vmatprep.subr.bf16.mxu0 0
        %1286 = vmatpush2.bf16.msra.mxu0 %v1026
        %1287 = vmatprep.subr.bf16.mxu0 0
        %1288 = vmatpush2.bf16.msra.mxu0 %v1025
        %1289 = vmatprep.subr.bf16.mxu0 0
        %1290 = vmatpush2.bf16.msra.mxu0 %v1024
        %1291 = vmatprep.mubr.bf16.mxu0 %v501
        %1292 = vmatmul.mubr.bf16.gmra.mxu0 %v508
        %v1293 = vpop.f32.mrf.mxu0
        %v1294 = vadd.f32 %v1245, %v1293
        %v1295 = vpop.f32.mrf.mxu0
        %v1296 = vpop.f32.mrf.mxu0
        %v1297 = vadd.f32 %v1248, %v1296
        %v1298 = vpop.f32.mrf.mxu0
        %1299 = vmatprep.mubr.bf16.mxu0 %v502
        %1300 = vmatmul.mubr.bf16.gmra.mxu0 %v511
        %v1301 = vpop.f32.mrf.mxu0
        %v1302 = vadd.f32 %v1253, %v1301
        %v1303 = vpop.f32.mrf.mxu0
        %v1304 = vpop.f32.mrf.mxu0
        %v1305 = vadd.f32 %v1256, %v1304
        %v1306 = vpop.f32.mrf.mxu0
        %1307 = vdwg.mxu0
        %1308 = vmatprep.subr.bf16.mxu0 0
        %1309 = vmatpush1.bf16.msra.mxu0 %v1039
        %1310 = vmatprep.subr.bf16.mxu0 0
        %1311 = vmatpush1.bf16.msra.mxu0 %v1038
        %1312 = vmatprep.subr.bf16.mxu0 0
        %1313 = vmatpush1.bf16.msra.mxu0 %v1037
        %1314 = vmatprep.subr.bf16.mxu0 0
        %1315 = vmatpush1.bf16.msra.mxu0 %v1036
        %1316 = vmatprep.subr.bf16.mxu0 0
        %1317 = vmatpush1.bf16.msra.mxu0 %v1035
        %1318 = vmatprep.subr.bf16.mxu0 0
        %1319 = vmatpush1.bf16.msra.mxu0 %v1034
        %1320 = vmatprep.subr.bf16.mxu0 0
        %1321 = vmatpush1.bf16.msra.mxu0 %v1033
        %1322 = vmatprep.subr.bf16.mxu0 0
        %1323 = vmatpush1.bf16.msra.mxu0 %v1032
        %1324 = vmatprep.subr.bf16.mxu0 0
        %1325 = vmatpush2.bf16.msra.mxu0 0
        %1326 = vmatprep.subr.bf16.mxu0 0
        %1327 = vmatpush2.bf16.msra.mxu0 0
        %1328 = vmatprep.subr.bf16.mxu0 0
        %1329 = vmatpush2.bf16.msra.mxu0 0
        %1330 = vmatprep.subr.bf16.mxu0 0
        %1331 = vmatpush2.bf16.msra.mxu0 0
        %1332 = vmatprep.subr.bf16.mxu0 0
        %1333 = vmatpush2.bf16.msra.mxu0 0
        %1334 = vmatprep.subr.bf16.mxu0 0
        %1335 = vmatpush2.bf16.msra.mxu0 0
        %1336 = vmatprep.subr.bf16.mxu0 0
        %1337 = vmatpush2.bf16.msra.mxu0 0
        %1338 = vmatprep.subr.bf16.mxu0 0
        %1339 = vmatpush2.bf16.msra.mxu0 0
        %1340 = vmatprep.mubr.bf16.mxu0 0
        %1341 = vmatmul.mubr.bf16.gmra.mxu0 %v518
        %v1342 = vpop.f32.mrf.mxu0
        %v1343 = vadd.f32 %v1294, %v1342
        %v1344 = vpop.f32.mrf.mxu0
        %v1345 = vpop.f32.mrf.mxu0
        %v1346 = vadd.f32 %v1297, %v1345
        %v1347 = vpop.f32.mrf.mxu0
        %1348 = vmatprep.mubr.bf16.mxu0 0
        %1349 = vmatmul.mubr.bf16.gmra.mxu0 %v521
        %v1350 = vpop.f32.mrf.mxu0
        %v1351 = vadd.f32 %v1302, %v1350
        %v1352 = vpop.f32.mrf.mxu0
        %v1353 = vpop.f32.mrf.mxu0
        %v1354 = vadd.f32 %v1305, %v1353
        %v1355 = vpop.f32.mrf.mxu0
        %1356 = vdwg.mxu0
        %vm1357 = vcmp.ge.f32.partialorder %v1343, 0.0
        %vm1358 = vcmp.ge.f32.partialorder %v1346, 0.0
        %vm1359 = vcmp.ge.f32.partialorder %v1351, 0.0
        %vm1360 = vcmp.ge.f32.partialorder %v1354, 0.0
        %v1361 = vmul.f32 %v1343, 0.01
        %v1362 = vmul.f32 %v1346, 0.01
        %v1363 = vmul.f32 %v1351, 0.01
        %v1364 = vmul.f32 %v1354, 0.01
        %v1365 = vsel %vm1357, %v1343, %v1361
        %v1366 = vsel %vm1358, %v1346, %v1362
        %v1367 = vsel %vm1359, %v1351, %v1363
        %v1368 = vsel %vm1360, %v1354, %v1364
        %v1369 = vpack.c.bf16 %v1366, %v1365
        %v1370 = vpack.c.bf16 %v1368, %v1367
        %v1373 = vunpack.c.l.b16 %v1369
        %v1374 = vunpack.c.h.b16 %v1369
        %v1375 = vunpack.c.l.b16 %v1370
        %v1376 = vunpack.c.h.b16 %v1370
        %v1377 = vpack.c.b16 %v1373, %v1373
        %v1378 = vpack.c.b16 %v1374, %v1374
        %v1379 = vpack.c.b16 %v1375, %v1375
        %v1380 = vpack.c.b16 %v1376, %v1376
        %v1382 = vshrl.u32 %v1377, 16
        %v1384 = vrot.slane %v1382, 6
        %v1385 = vshll.u32 %v1377, 16
        %v1387 = vrot.slane %v1385, 7
        %v1388 = vor.u32 %v1384, %v1387
        %v1389 = vrot.slane %v1388, 4
        %v1391 = vshrl.u32 %v1378, 16
        %v1393 = vrot.slane %v1391, 6
        %v1394 = vshll.u32 %v1378, 16
        %v1396 = vrot.slane %v1394, 7
        %v1397 = vor.u32 %v1393, %v1396
        %v1398 = vsel %vm269, %v1389, %v1397
        %v1399 = vrot.slane %v1397, 4
        %v1401 = vshrl.u32 %v1379, 16
        %v1403 = vrot.slane %v1401, 6
        %v1404 = vshll.u32 %v1379, 16
        %v1406 = vrot.slane %v1404, 7
        %v1407 = vor.u32 %v1403, %v1406
        %v1408 = vrot.slane %v1407, 4
        %v1410 = vshrl.u32 %v1380, 16
        %v1412 = vrot.slane %v1410, 6
        %v1413 = vshll.u32 %v1380, 16
        %v1415 = vrot.slane %v1413, 7
        %v1416 = vor.u32 %v1412, %v1415
        %v1417 = vsel %vm269, %v1408, %v1416
        %v1418 = vrot.slane %v1416, 4
        %v1425 = vld [vmem:[#allocation3] sm:$0xe]
        %v1426 = vsel %vm315, %v1388, %v1425
        %1427 = vst [vmem:[#allocation3] sm:$0xe] %v1426
        %1428 = vst [vmem:[#allocation3 + $0x4] sm:$0xf] %v1398
        %v1429 = vld [vmem:[#allocation3 + $0x8] sm:$0x3]
        %v1430 = vsel %vm224, %v1399, %v1429
        %1431 = vst [vmem:[#allocation3 + $0x8] sm:$0x3] %v1430
        %v1432 = vld [vmem:[#allocation3 + $0xc] sm:$0xe]
        %v1433 = vsel %vm315, %v1407, %v1432
        %1434 = vst [vmem:[#allocation3 + $0xc] sm:$0xe] %v1433
        %1435 = vst [vmem:[#allocation3 + $0x10] sm:$0xf] %v1417
        %v1436 = vld [vmem:[#allocation3 + $0x14] sm:$0x3]
        %v1437 = vsel %vm224, %v1418, %v1436
        %1438 = vst [vmem:[#allocation3 + $0x14] sm:$0x3] %v1437
        %v1439 = vld [vmem:[#allocation3] sm:$0xf]
        %v1440 = vld [vmem:[#allocation3 + $0x4] sm:$0xf]
        %v1441 = vld [vmem:[#allocation3 + $0x8] sm:$0x1]
        %v1442 = vld [vmem:[#allocation3 + $0xc] sm:$0xf]
        %v1443 = vld [vmem:[#allocation3 + $0x10] sm:$0xf]
        %v1444 = vld [vmem:[#allocation3 + $0x14] sm:$0x1]
        %vm1445 = vsmask.f32 3328
        %vm1446 = vsmask.f32 7440
        %vm1447 = vmor %vm1445, %vm1446
        %v1449 = vshrl.u32 %v1439, 16
        %v1451 = vrot.slane %v1449, 4
        %v1452 = vshll.u32 %v1439, 16
        %v1454 = vrot.slane %v1452, 5
        %v1455 = vor.u32 %v1451, %v1454
        %v1456 = vrot.slane %v1455, 4
        %v1458 = vshll.u32 %v1440, 16
        %v1460 = vrot.slane %v1458, 5
        %v1461 = vsel %vm1447, %v1456, %v1460
        %v1462 = vshrl.u32 %v1440, 16
        %v1464 = vrot.slane %v1462, 4
        %v1465 = vor.u32 %v1464, %v1460
        %v1466 = vrot.slane %v1465, 4
        %v1468 = vshll.u32 %v1441, 16
        %v1470 = vrot.slane %v1468, 5
        %v1471 = vsel %vm1447, %v1466, %v1470
        %v1473 = vshrl.u32 %v1442, 16
        %v1475 = vrot.slane %v1473, 4
        %v1476 = vshll.u32 %v1442, 16
        %v1478 = vrot.slane %v1476, 5
        %v1479 = vor.u32 %v1475, %v1478
        %v1480 = vrot.slane %v1479, 4
        %v1482 = vshll.u32 %v1443, 16
        %v1484 = vrot.slane %v1482, 5
        %v1485 = vsel %vm1447, %v1480, %v1484
        %v1486 = vshrl.u32 %v1443, 16
        %v1488 = vrot.slane %v1486, 4
        %v1489 = vor.u32 %v1488, %v1484
        %v1490 = vrot.slane %v1489, 4
        %v1492 = vshll.u32 %v1444, 16
        %v1494 = vrot.slane %v1492, 5
        %v1495 = vsel %vm1447, %v1490, %v1494
        %v1496 = vunpack.c.l.b16 %v1461
        %v1497 = vunpack.c.l.b16 %v1471
        %v1498 = vunpack.c.l.b16 %v1485
        %v1499 = vunpack.c.l.b16 %v1495
        %v1500 = vpack.c.b16 %v1497, %v1496
        %v1501 = vpack.c.b16 %v1499, %v1498
        %1502 = vrot.lane.b32.xlu0 %v1500, 16
        %v1503 = vpop.permute.xlu0 %1502
        %1504 = vrot.lane.b32.xlu0 %v1501, 16
        %v1505 = vpop.permute.xlu0 %1504
        %vm1506 = vcmask 130048
        %v1508 = vsel %vm1506, 0, %v1503
        %v1511 = vsel %vm1506, 0, %v1505
        %1513 = vrot.lane.b32.xlu0 %v1500, 112
        %v1514 = vpop.permute.xlu0 %1513
        %1515 = vrot.lane.b32.xlu0 %v1501, 112
        %v1516 = vpop.permute.xlu0 %1515
        %vm1517 = vcmask 916480
        %v1519 = vsel %vm1517, %v1514, 0
        %v1522 = vsel %vm1517, %v1516, 0
        %v1524 = vld [vmem:[#allocation3] sm:$0xe]
        %v1525 = vld [vmem:[#allocation3 + $0x8] sm:$0x3]
        %v1526 = vld [vmem:[#allocation3 + $0xc] sm:$0xe]
        %v1527 = vld [vmem:[#allocation3 + $0x14] sm:$0x3]
        %v1529 = vshrl.u32 %v1524, 16
        %v1531 = vrot.slane %v1529, 5
        %v1532 = vshll.u32 %v1524, 16
        %v1534 = vrot.slane %v1532, 6
        %v1535 = vor.u32 %v1531, %v1534
        %v1536 = vrot.slane %v1535, 4
        %v1537 = vrot.slane %v1462, 5
        %v1538 = vrot.slane %v1458, 6
        %v1539 = vor.u32 %v1537, %v1538
        %v1540 = vsel %vm392, %v1536, %v1539
        %v1541 = vrot.slane %v1539, 4
        %v1543 = vshrl.u32 %v1525, 16
        %v1545 = vrot.slane %v1543, 5
        %v1546 = vshll.u32 %v1525, 16
        %v1548 = vrot.slane %v1546, 6
        %v1549 = vor.u32 %v1545, %v1548
        %v1550 = vsel %vm392, %v1541, %v1549
        %v1552 = vshrl.u32 %v1526, 16
        %v1554 = vrot.slane %v1552, 5
        %v1555 = vshll.u32 %v1526, 16
        %v1557 = vrot.slane %v1555, 6
        %v1558 = vor.u32 %v1554, %v1557
        %v1559 = vrot.slane %v1558, 4
        %v1560 = vrot.slane %v1486, 5
        %v1561 = vrot.slane %v1482, 6
        %v1562 = vor.u32 %v1560, %v1561
        %v1563 = vsel %vm392, %v1559, %v1562
        %v1564 = vrot.slane %v1562, 4
        %v1566 = vshrl.u32 %v1527, 16
        %v1568 = vrot.slane %v1566, 5
        %v1569 = vshll.u32 %v1527, 16
        %v1571 = vrot.slane %v1569, 6
        %v1572 = vor.u32 %v1568, %v1571
        %v1573 = vsel %vm392, %v1564, %v1572
        %v1574 = vunpack.c.l.b16 %v1540
        %v1575 = vunpack.c.l.b16 %v1550
        %v1576 = vunpack.c.l.b16 %v1563
        %v1577 = vunpack.c.l.b16 %v1573
        %v1578 = vpack.c.b16 %v1575, %v1574
        %v1579 = vpack.c.b16 %v1577, %v1576
        %1580 = vrot.lane.b32.xlu0 %v1578, 16
        %v1581 = vpop.permute.xlu0 %1580
        %1582 = vrot.lane.b32.xlu0 %v1579, 16
        %v1583 = vpop.permute.xlu0 %1582
        %v1585 = vsel %vm1506, 0, %v1581
        %v1588 = vsel %vm1506, 0, %v1583
        %1590 = vrot.lane.b32.xlu0 %v1578, 112
        %v1591 = vpop.permute.xlu0 %1590
        %1592 = vrot.lane.b32.xlu0 %v1579, 112
        %v1593 = vpop.permute.xlu0 %1592
        %v1595 = vsel %vm1517, %v1591, 0
        %v1598 = vsel %vm1517, %v1593, 0
        %v1600 = vld [vmem:[#allocation3] sm:$0xc]
        %v1601 = vld [vmem:[#allocation3 + $0x8] sm:$0x7]
        %v1602 = vld [vmem:[#allocation3 + $0xc] sm:$0xc]
        %v1603 = vld [vmem:[#allocation3 + $0x14] sm:$0x7]
        %v1605 = vshrl.u32 %v1600, 16
        %v1607 = vrot.slane %v1605, 6
        %v1608 = vshll.u32 %v1600, 16
        %v1610 = vrot.slane %v1608, 7
        %v1611 = vor.u32 %v1607, %v1610
        %v1612 = vrot.slane %v1611, 4
        %v1613 = vrot.slane %v1462, 6
        %v1614 = vrot.slane %v1458, 7
        %v1615 = vor.u32 %v1613, %v1614
        %v1616 = vsel %vm269, %v1612, %v1615
        %v1617 = vrot.slane %v1615, 4
        %v1619 = vshrl.u32 %v1601, 16
        %v1621 = vrot.slane %v1619, 6
        %v1622 = vshll.u32 %v1601, 16
        %v1624 = vrot.slane %v1622, 7
        %v1625 = vor.u32 %v1621, %v1624
        %v1626 = vsel %vm269, %v1617, %v1625
        %v1628 = vshrl.u32 %v1602, 16
        %v1630 = vrot.slane %v1628, 6
        %v1631 = vshll.u32 %v1602, 16
        %v1633 = vrot.slane %v1631, 7
        %v1634 = vor.u32 %v1630, %v1633
        %v1635 = vrot.slane %v1634, 4
        %v1636 = vrot.slane %v1486, 6
        %v1637 = vrot.slane %v1482, 7
        %v1638 = vor.u32 %v1636, %v1637
        %v1639 = vsel %vm269, %v1635, %v1638
        %v1640 = vrot.slane %v1638, 4
        %v1642 = vshrl.u32 %v1603, 16
        %v1644 = vrot.slane %v1642, 6
        %v1645 = vshll.u32 %v1603, 16
        %v1647 = vrot.slane %v1645, 7
        %v1648 = vor.u32 %v1644, %v1647
        %v1649 = vsel %vm269, %v1640, %v1648
        %v1650 = vunpack.c.l.b16 %v1616
        %v1651 = vunpack.c.l.b16 %v1626
        %v1652 = vunpack.c.l.b16 %v1639
        %v1653 = vunpack.c.l.b16 %v1649
        %v1654 = vpack.c.b16 %v1651, %v1650
        %v1655 = vpack.c.b16 %v1653, %v1652
        %1656 = vrot.lane.b32.xlu0 %v1654, 16
        %v1657 = vpop.permute.xlu0 %1656
        %1658 = vrot.lane.b32.xlu0 %v1655, 16
        %v1659 = vpop.permute.xlu0 %1658
        %v1661 = vsel %vm1506, 0, %v1657
        %v1664 = vsel %vm1506, 0, %v1659
        %1666 = vrot.lane.b32.xlu0 %v1654, 112
        %v1667 = vpop.permute.xlu0 %1666
        %1668 = vrot.lane.b32.xlu0 %v1655, 112
        %v1669 = vpop.permute.xlu0 %1668
        %v1671 = vsel %vm1517, %v1667, 0
        %v1674 = vsel %vm1517, %v1669, 0
        %s1682 = scalar_lea.vmem [#allocation7], 576
        %v1683 = vld [vmem:[%s1682] sm:$0xf]
        %v1684 = vld [vmem:[%s1682 + $0x4] sm:$0xf]
        %v1685 = vld [vmem:[%s1682 + $0x8] sm:$0xf]
        %v1686 = vld [vmem:[%s1682 + $0xc] sm:$0xf]
        %v1687 = vld [vmem:[%s1682 + $0x10] sm:$0xf]
        %v1688 = vld [vmem:[%s1682 + $0x14] sm:$0xf]
        %v1689 = vld [vmem:[%s1682 + $0x18] sm:$0xf]
        %v1690 = vld [vmem:[%s1682 + $0x1c] sm:$0xf]
        %v1691 = vld [vmem:[%s1682 + $0x20] sm:$0xf]
        %v1692 = vld [vmem:[%s1682 + $0x24] sm:$0xf]
        %v1693 = vld [vmem:[%s1682 + $0x28] sm:$0xf]
        %v1694 = vld [vmem:[%s1682 + $0x2c] sm:$0xf]
        %v1695 = vld [vmem:[%s1682 + $0x30] sm:$0xf]
        %v1696 = vld [vmem:[%s1682 + $0x34] sm:$0xf]
        %v1697 = vld [vmem:[%s1682 + $0x38] sm:$0xf]
        %v1698 = vld [vmem:[%s1682 + $0x3c] sm:$0xf]
        %v1699 = vld [vmem:[%s1682 + $0x40] sm:$0xf]
        %v1700 = vld [vmem:[%s1682 + $0x44] sm:$0xf]
        %v1701 = vld [vmem:[%s1682 + $0x48] sm:$0xf]
        %v1702 = vld [vmem:[%s1682 + $0x4c] sm:$0xf]
        %v1703 = vld [vmem:[%s1682 + $0x50] sm:$0xf]
        %v1704 = vld [vmem:[%s1682 + $0x54] sm:$0xf]
        %v1705 = vld [vmem:[%s1682 + $0x58] sm:$0xf]
        %v1706 = vld [vmem:[%s1682 + $0x5c] sm:$0xf]
        %v1707 = vld [vmem:[%s1682 + $0x60] sm:$0xf]
        %v1708 = vld [vmem:[%s1682 + $0x64] sm:$0xf]
        %v1709 = vld [vmem:[%s1682 + $0x68] sm:$0xf]
        %v1710 = vld [vmem:[%s1682 + $0x6c] sm:$0xf]
        %v1711 = vld [vmem:[%s1682 + $0x70] sm:$0xf]
        %v1712 = vld [vmem:[%s1682 + $0x74] sm:$0xf]
        %v1713 = vld [vmem:[%s1682 + $0x78] sm:$0xf]
        %v1714 = vld [vmem:[%s1682 + $0x7c] sm:$0xf]
        %v1715 = vld [vmem:[%s1682 + $0x80] sm:$0xf]
        %v1716 = vld [vmem:[%s1682 + $0x84] sm:$0xf]
        %v1717 = vld [vmem:[%s1682 + $0x88] sm:$0xf]
        %v1718 = vld [vmem:[%s1682 + $0x8c] sm:$0xf]
        %v1719 = vld [vmem:[%s1682 + $0x90] sm:$0xf]
        %v1720 = vld [vmem:[%s1682 + $0x94] sm:$0xf]
        %v1721 = vld [vmem:[%s1682 + $0x98] sm:$0xf]
        %v1722 = vld [vmem:[%s1682 + $0x9c] sm:$0xf]
        %v1723 = vld [vmem:[%s1682 + $0xa0] sm:$0xf]
        %v1724 = vld [vmem:[%s1682 + $0xa4] sm:$0xf]
        %v1725 = vld [vmem:[%s1682 + $0xa8] sm:$0xf]
        %v1726 = vld [vmem:[%s1682 + $0xac] sm:$0xf]
        %v1727 = vld [vmem:[%s1682 + $0xb0] sm:$0xf]
        %v1728 = vld [vmem:[%s1682 + $0xb4] sm:$0xf]
        %v1729 = vld [vmem:[%s1682 + $0xb8] sm:$0xf]
        %v1730 = vld [vmem:[%s1682 + $0xbc] sm:$0xf]
        %v1731 = vld [vmem:[%s1682 + $0xc0] sm:$0xf]
        %v1732 = vld [vmem:[%s1682 + $0xc4] sm:$0xf]
        %v1733 = vld [vmem:[%s1682 + $0xc8] sm:$0xf]
        %v1734 = vld [vmem:[%s1682 + $0xcc] sm:$0xf]
        %v1735 = vld [vmem:[%s1682 + $0xd0] sm:$0xf]
        %v1736 = vld [vmem:[%s1682 + $0xd4] sm:$0xf]
        %v1737 = vld [vmem:[%s1682 + $0xd8] sm:$0xf]
        %v1738 = vld [vmem:[%s1682 + $0xdc] sm:$0xf]
        %v1739 = vld [vmem:[%s1682 + $0xe0] sm:$0xf]
        %v1740 = vld [vmem:[%s1682 + $0xe4] sm:$0xf]
        %v1741 = vld [vmem:[%s1682 + $0xe8] sm:$0xf]
        %v1742 = vld [vmem:[%s1682 + $0xec] sm:$0xf]
        %v1743 = vld [vmem:[%s1682 + $0xf0] sm:$0xf]
        %v1744 = vld [vmem:[%s1682 + $0xf4] sm:$0xf]
        %v1745 = vld [vmem:[%s1682 + $0xf8] sm:$0xf]
        %v1746 = vld [vmem:[%s1682 + $0xfc] sm:$0xf]
        %v1747 = vld [vmem:[%s1682 + $0x100] sm:$0xf]
        %v1748 = vld [vmem:[%s1682 + $0x104] sm:$0xf]
        %v1749 = vld [vmem:[%s1682 + $0x108] sm:$0xf]
        %v1750 = vld [vmem:[%s1682 + $0x10c] sm:$0xf]
        %v1751 = vld [vmem:[%s1682 + $0x110] sm:$0xf]
        %v1752 = vld [vmem:[%s1682 + $0x114] sm:$0xf]
        %v1753 = vld [vmem:[%s1682 + $0x118] sm:$0xf]
        %v1754 = vld [vmem:[%s1682 + $0x11c] sm:$0xf]
        %v1755 = vld [vmem:[%s1682 + $0x120] sm:$0xf]
        %v1756 = vld [vmem:[%s1682 + $0x124] sm:$0xf]
        %v1757 = vld [vmem:[%s1682 + $0x128] sm:$0xf]
        %v1758 = vld [vmem:[%s1682 + $0x12c] sm:$0xf]
        %v1759 = vld [vmem:[%s1682 + $0x130] sm:$0xf]
        %v1760 = vld [vmem:[%s1682 + $0x134] sm:$0xf]
        %v1761 = vld [vmem:[%s1682 + $0x138] sm:$0xf]
        %v1762 = vld [vmem:[%s1682 + $0x13c] sm:$0xf]
        %v1763 = vld [vmem:[%s1682 + $0x140] sm:$0xf]
        %v1764 = vld [vmem:[%s1682 + $0x144] sm:$0xf]
        %v1765 = vld [vmem:[%s1682 + $0x148] sm:$0xf]
        %v1766 = vld [vmem:[%s1682 + $0x14c] sm:$0xf]
        %v1767 = vld [vmem:[%s1682 + $0x150] sm:$0xf]
        %v1768 = vld [vmem:[%s1682 + $0x154] sm:$0xf]
        %v1769 = vld [vmem:[%s1682 + $0x158] sm:$0xf]
        %v1770 = vld [vmem:[%s1682 + $0x15c] sm:$0xf]
        %v1771 = vld [vmem:[%s1682 + $0x160] sm:$0xf]
        %v1772 = vld [vmem:[%s1682 + $0x164] sm:$0xf]
        %v1773 = vld [vmem:[%s1682 + $0x168] sm:$0xf]
        %v1774 = vld [vmem:[%s1682 + $0x16c] sm:$0xf]
        %v1775 = vld [vmem:[%s1682 + $0x170] sm:$0xf]
        %v1776 = vld [vmem:[%s1682 + $0x174] sm:$0xf]
        %v1777 = vld [vmem:[%s1682 + $0x178] sm:$0xf]
        %v1778 = vld [vmem:[%s1682 + $0x17c] sm:$0xf]
        %v1779 = vld [vmem:[%s1682 + $0x180] sm:$0xf]
        %v1780 = vld [vmem:[%s1682 + $0x184] sm:$0xf]
        %v1781 = vld [vmem:[%s1682 + $0x188] sm:$0xf]
        %v1782 = vld [vmem:[%s1682 + $0x18c] sm:$0xf]
        %v1783 = vld [vmem:[%s1682 + $0x190] sm:$0xf]
        %v1784 = vld [vmem:[%s1682 + $0x194] sm:$0xf]
        %v1785 = vld [vmem:[%s1682 + $0x198] sm:$0xf]
        %v1786 = vld [vmem:[%s1682 + $0x19c] sm:$0xf]
        %v1787 = vld [vmem:[%s1682 + $0x1a0] sm:$0xf]
        %v1788 = vld [vmem:[%s1682 + $0x1a4] sm:$0xf]
        %v1789 = vld [vmem:[%s1682 + $0x1a8] sm:$0xf]
        %v1790 = vld [vmem:[%s1682 + $0x1ac] sm:$0xf]
        %v1791 = vld [vmem:[%s1682 + $0x1b0] sm:$0xf]
        %v1792 = vld [vmem:[%s1682 + $0x1b4] sm:$0xf]
        %v1793 = vld [vmem:[%s1682 + $0x1b8] sm:$0xf]
        %v1794 = vld [vmem:[%s1682 + $0x1bc] sm:$0xf]
        %v1795 = vld [vmem:[%s1682 + $0x1c0] sm:$0xf]
        %v1796 = vld [vmem:[%s1682 + $0x1c4] sm:$0xf]
        %v1797 = vld [vmem:[%s1682 + $0x1c8] sm:$0xf]
        %v1798 = vld [vmem:[%s1682 + $0x1cc] sm:$0xf]
        %v1799 = vld [vmem:[%s1682 + $0x1d0] sm:$0xf]
        %v1800 = vld [vmem:[%s1682 + $0x1d4] sm:$0xf]
        %v1801 = vld [vmem:[%s1682 + $0x1d8] sm:$0xf]
        %v1802 = vld [vmem:[%s1682 + $0x1dc] sm:$0xf]
        %v1803 = vld [vmem:[%s1682 + $0x1e0] sm:$0xf]
        %v1804 = vld [vmem:[%s1682 + $0x1e4] sm:$0xf]
        %v1805 = vld [vmem:[%s1682 + $0x1e8] sm:$0xf]
        %v1806 = vld [vmem:[%s1682 + $0x1ec] sm:$0xf]
        %v1807 = vld [vmem:[%s1682 + $0x1f0] sm:$0xf]
        %v1808 = vld [vmem:[%s1682 + $0x1f4] sm:$0xf]
        %v1809 = vld [vmem:[%s1682 + $0x1f8] sm:$0xf]
        %v1810 = vld [vmem:[%s1682 + $0x1fc] sm:$0xf]
        %v1811 = vld [vmem:[%s1682 + $0x200] sm:$0xf]
        %v1812 = vld [vmem:[%s1682 + $0x204] sm:$0xf]
        %v1813 = vld [vmem:[%s1682 + $0x208] sm:$0xf]
        %v1814 = vld [vmem:[%s1682 + $0x20c] sm:$0xf]
        %v1815 = vld [vmem:[%s1682 + $0x210] sm:$0xf]
        %v1816 = vld [vmem:[%s1682 + $0x214] sm:$0xf]
        %v1817 = vld [vmem:[%s1682 + $0x218] sm:$0xf]
        %v1818 = vld [vmem:[%s1682 + $0x21c] sm:$0xf]
        %v1819 = vld [vmem:[%s1682 + $0x220] sm:$0xf]
        %v1820 = vld [vmem:[%s1682 + $0x224] sm:$0xf]
        %v1821 = vld [vmem:[%s1682 + $0x228] sm:$0xf]
        %v1822 = vld [vmem:[%s1682 + $0x22c] sm:$0xf]
        %v1823 = vld [vmem:[%s1682 + $0x230] sm:$0xf]
        %v1824 = vld [vmem:[%s1682 + $0x234] sm:$0xf]
        %v1825 = vld [vmem:[%s1682 + $0x238] sm:$0xf]
        %v1826 = vld [vmem:[%s1682 + $0x23c] sm:$0xf]
        %s1827 = scalar_lea.vmem [#allocation9], 1
        %v1828 = vld [vmem:[%s1827] sm:$0x1]
        %v1830 = vlaneseq
        %v1831 = vshrl.u32 %v1830, 7
        %v1832 = vsub.s32 0, %v1831
        %v1833 = vrot.slane %v1828, %v1832
        %v1979 = vunpack.c.l.b16 %v1683
        %v1980 = vunpack.c.l.b16 %v1684
        %v1981 = vunpack.c.l.b16 %v1685
        %v1982 = vunpack.c.l.b16 %v1686
        %v1983 = vunpack.c.l.b16 %v1687
        %v1984 = vunpack.c.l.b16 %v1688
        %v1985 = vunpack.c.l.b16 %v1689
        %v1986 = vunpack.c.l.b16 %v1690
        %v1987 = vunpack.c.l.b16 %v1691
        %v1988 = vunpack.c.l.b16 %v1692
        %v1989 = vunpack.c.l.b16 %v1693
        %v1990 = vunpack.c.l.b16 %v1694
        %v1991 = vunpack.c.l.b16 %v1695
        %v1992 = vunpack.c.l.b16 %v1696
        %v1993 = vunpack.c.l.b16 %v1697
        %v1994 = vunpack.c.l.b16 %v1698
        %v1995 = vunpack.c.l.b16 %v1699
        %v1996 = vunpack.c.l.b16 %v1700
        %v1997 = vunpack.c.l.b16 %v1701
        %v1998 = vunpack.c.l.b16 %v1702
        %v1999 = vunpack.c.l.b16 %v1703
        %v2000 = vunpack.c.l.b16 %v1704
        %v2001 = vunpack.c.l.b16 %v1705
        %v2002 = vunpack.c.l.b16 %v1706
        %v2003 = vunpack.c.l.b16 %v1707
        %v2004 = vunpack.c.l.b16 %v1708
        %v2005 = vunpack.c.l.b16 %v1709
        %v2006 = vunpack.c.l.b16 %v1710
        %v2007 = vunpack.c.l.b16 %v1711
        %v2008 = vunpack.c.l.b16 %v1712
        %v2009 = vunpack.c.l.b16 %v1713
        %v2010 = vunpack.c.l.b16 %v1714
        %v2011 = vunpack.c.l.b16 %v1715
        %v2012 = vunpack.c.l.b16 %v1716
        %v2013 = vunpack.c.l.b16 %v1717
        %v2014 = vunpack.c.l.b16 %v1718
        %v2015 = vunpack.c.l.b16 %v1719
        %v2016 = vunpack.c.l.b16 %v1720
        %v2017 = vunpack.c.l.b16 %v1721
        %v2018 = vunpack.c.l.b16 %v1722
        %v2019 = vunpack.c.l.b16 %v1723
        %v2020 = vunpack.c.l.b16 %v1724
        %v2021 = vunpack.c.l.b16 %v1725
        %v2022 = vunpack.c.l.b16 %v1726
        %v2023 = vunpack.c.l.b16 %v1727
        %v2024 = vunpack.c.l.b16 %v1728
        %v2025 = vunpack.c.l.b16 %v1729
        %v2026 = vunpack.c.l.b16 %v1730
        %v2027 = vunpack.c.l.b16 %v1731
        %v2028 = vunpack.c.l.b16 %v1732
        %v2029 = vunpack.c.l.b16 %v1733
        %v2030 = vunpack.c.l.b16 %v1734
        %v2031 = vunpack.c.l.b16 %v1735
        %v2032 = vunpack.c.l.b16 %v1736
        %v2033 = vunpack.c.l.b16 %v1737
        %v2034 = vunpack.c.l.b16 %v1738
        %v2035 = vunpack.c.l.b16 %v1739
        %v2036 = vunpack.c.l.b16 %v1740
        %v2037 = vunpack.c.l.b16 %v1741
        %v2038 = vunpack.c.l.b16 %v1742
        %v2039 = vunpack.c.l.b16 %v1743
        %v2040 = vunpack.c.l.b16 %v1744
        %v2041 = vunpack.c.l.b16 %v1745
        %v2042 = vunpack.c.l.b16 %v1746
        %v2043 = vunpack.c.l.b16 %v1747
        %v2044 = vunpack.c.l.b16 %v1748
        %v2045 = vunpack.c.l.b16 %v1749
        %v2046 = vunpack.c.l.b16 %v1750
        %v2047 = vunpack.c.l.b16 %v1751
        %v2048 = vunpack.c.l.b16 %v1752
        %v2049 = vunpack.c.l.b16 %v1753
        %v2050 = vunpack.c.l.b16 %v1754
        %v2051 = vunpack.c.l.b16 %v1755
        %v2052 = vunpack.c.l.b16 %v1756
        %v2053 = vunpack.c.l.b16 %v1757
        %v2054 = vunpack.c.l.b16 %v1758
        %v2055 = vunpack.c.l.b16 %v1759
        %v2056 = vunpack.c.l.b16 %v1760
        %v2057 = vunpack.c.l.b16 %v1761
        %v2058 = vunpack.c.l.b16 %v1762
        %v2059 = vunpack.c.l.b16 %v1763
        %v2060 = vunpack.c.l.b16 %v1764
        %v2061 = vunpack.c.l.b16 %v1765
        %v2062 = vunpack.c.l.b16 %v1766
        %v2063 = vunpack.c.l.b16 %v1767
        %v2064 = vunpack.c.l.b16 %v1768
        %v2065 = vunpack.c.l.b16 %v1769
        %v2066 = vunpack.c.l.b16 %v1770
        %v2067 = vunpack.c.l.b16 %v1771
        %v2068 = vunpack.c.l.b16 %v1772
        %v2069 = vunpack.c.l.b16 %v1773
        %v2070 = vunpack.c.l.b16 %v1774
        %v2071 = vunpack.c.l.b16 %v1775
        %v2072 = vunpack.c.l.b16 %v1776
        %v2073 = vunpack.c.l.b16 %v1777
        %v2074 = vunpack.c.l.b16 %v1778
        %v2075 = vunpack.c.l.b16 %v1779
        %v2076 = vunpack.c.l.b16 %v1780
        %v2077 = vunpack.c.l.b16 %v1781
        %v2078 = vunpack.c.l.b16 %v1782
        %v2079 = vunpack.c.l.b16 %v1783
        %v2080 = vunpack.c.l.b16 %v1784
        %v2081 = vunpack.c.l.b16 %v1785
        %v2082 = vunpack.c.l.b16 %v1786
        %v2083 = vunpack.c.l.b16 %v1787
        %v2084 = vunpack.c.l.b16 %v1788
        %v2085 = vunpack.c.l.b16 %v1789
        %v2086 = vunpack.c.l.b16 %v1790
        %v2087 = vunpack.c.l.b16 %v1791
        %v2088 = vunpack.c.l.b16 %v1792
        %v2089 = vunpack.c.l.b16 %v1793
        %v2090 = vunpack.c.l.b16 %v1794
        %v2091 = vunpack.c.l.b16 %v1795
        %v2092 = vunpack.c.l.b16 %v1796
        %v2093 = vunpack.c.l.b16 %v1797
        %v2094 = vunpack.c.l.b16 %v1798
        %v2095 = vunpack.c.l.b16 %v1799
        %v2096 = vunpack.c.l.b16 %v1800
        %v2097 = vunpack.c.l.b16 %v1801
        %v2098 = vunpack.c.l.b16 %v1802
        %v2099 = vunpack.c.l.b16 %v1803
        %v2100 = vunpack.c.l.b16 %v1804
        %v2101 = vunpack.c.l.b16 %v1805
        %v2102 = vunpack.c.l.b16 %v1806
        %v2103 = vunpack.c.l.b16 %v1807
        %v2104 = vunpack.c.l.b16 %v1808
        %v2105 = vunpack.c.l.b16 %v1809
        %v2106 = vunpack.c.l.b16 %v1810
        %v2107 = vunpack.c.l.b16 %v1811
        %v2108 = vunpack.c.l.b16 %v1812
        %v2109 = vunpack.c.l.b16 %v1813
        %v2110 = vunpack.c.l.b16 %v1814
        %v2111 = vunpack.c.l.b16 %v1815
        %v2112 = vunpack.c.l.b16 %v1816
        %v2113 = vunpack.c.l.b16 %v1817
        %v2114 = vunpack.c.l.b16 %v1818
        %v2115 = vunpack.c.l.b16 %v1819
        %v2116 = vunpack.c.l.b16 %v1820
        %v2117 = vunpack.c.l.b16 %v1821
        %v2118 = vunpack.c.l.b16 %v1822
        %v2119 = vunpack.c.l.b16 %v1823
        %v2120 = vunpack.c.l.b16 %v1824
        %v2121 = vunpack.c.l.b16 %v1825
        %v2122 = vunpack.c.l.b16 %v1826
        %v2123 = vpack.c.b16 %v1980, %v1979
        %v2124 = vpack.c.b16 %v1982, %v1981
        %v2125 = vpack.c.b16 %v1984, %v1983
        %v2126 = vpack.c.b16 %v1986, %v1985
        %v2127 = vpack.c.b16 %v1988, %v1987
        %v2128 = vpack.c.b16 %v1990, %v1989
        %v2129 = vpack.c.b16 %v1992, %v1991
        %v2130 = vpack.c.b16 %v1994, %v1993
        %v2131 = vpack.c.b16 %v1996, %v1995
        %v2132 = vpack.c.b16 %v1998, %v1997
        %v2133 = vpack.c.b16 %v2000, %v1999
        %v2134 = vpack.c.b16 %v2002, %v2001
        %v2135 = vpack.c.b16 %v2004, %v2003
        %v2136 = vpack.c.b16 %v2006, %v2005
        %v2137 = vpack.c.b16 %v2008, %v2007
        %v2138 = vpack.c.b16 %v2010, %v2009
        %v2139 = vpack.c.b16 %v2012, %v2011
        %v2140 = vpack.c.b16 %v2014, %v2013
        %v2141 = vpack.c.b16 %v2016, %v2015
        %v2142 = vpack.c.b16 %v2018, %v2017
        %v2143 = vpack.c.b16 %v2020, %v2019
        %v2144 = vpack.c.b16 %v2022, %v2021
        %v2145 = vpack.c.b16 %v2024, %v2023
        %v2146 = vpack.c.b16 %v2026, %v2025
        %v2147 = vpack.c.b16 %v2028, %v2027
        %v2148 = vpack.c.b16 %v2030, %v2029
        %v2149 = vpack.c.b16 %v2032, %v2031
        %v2150 = vpack.c.b16 %v2034, %v2033
        %v2151 = vpack.c.b16 %v2036, %v2035
        %v2152 = vpack.c.b16 %v2038, %v2037
        %v2153 = vpack.c.b16 %v2040, %v2039
        %v2154 = vpack.c.b16 %v2042, %v2041
        %v2155 = vpack.c.b16 %v2044, %v2043
        %v2156 = vpack.c.b16 %v2046, %v2045
        %v2157 = vpack.c.b16 %v2048, %v2047
        %v2158 = vpack.c.b16 %v2050, %v2049
        %v2159 = vpack.c.b16 %v2052, %v2051
        %v2160 = vpack.c.b16 %v2054, %v2053
        %v2161 = vpack.c.b16 %v2056, %v2055
        %v2162 = vpack.c.b16 %v2058, %v2057
        %v2163 = vpack.c.b16 %v2060, %v2059
        %v2164 = vpack.c.b16 %v2062, %v2061
        %v2165 = vpack.c.b16 %v2064, %v2063
        %v2166 = vpack.c.b16 %v2066, %v2065
        %v2167 = vpack.c.b16 %v2068, %v2067
        %v2168 = vpack.c.b16 %v2070, %v2069
        %v2169 = vpack.c.b16 %v2072, %v2071
        %v2170 = vpack.c.b16 %v2074, %v2073
        %v2171 = vpack.c.b16 %v2076, %v2075
        %v2172 = vpack.c.b16 %v2078, %v2077
        %v2173 = vpack.c.b16 %v2080, %v2079
        %v2174 = vpack.c.b16 %v2082, %v2081
        %v2175 = vpack.c.b16 %v2084, %v2083
        %v2176 = vpack.c.b16 %v2086, %v2085
        %v2177 = vpack.c.b16 %v2088, %v2087
        %v2178 = vpack.c.b16 %v2090, %v2089
        %v2179 = vpack.c.b16 %v2092, %v2091
        %v2180 = vpack.c.b16 %v2094, %v2093
        %v2181 = vpack.c.b16 %v2096, %v2095
        %v2182 = vpack.c.b16 %v2098, %v2097
        %v2183 = vpack.c.b16 %v2100, %v2099
        %v2184 = vpack.c.b16 %v2102, %v2101
        %v2185 = vpack.c.b16 %v2104, %v2103
        %v2186 = vpack.c.b16 %v2106, %v2105
        %v2187 = vpack.c.b16 %v2108, %v2107
        %v2188 = vpack.c.b16 %v2110, %v2109
        %v2189 = vpack.c.b16 %v2112, %v2111
        %v2190 = vpack.c.b16 %v2114, %v2113
        %v2191 = vpack.c.b16 %v2116, %v2115
        %v2192 = vpack.c.b16 %v2118, %v2117
        %v2193 = vpack.c.b16 %v2120, %v2119
        %v2194 = vpack.c.b16 %v2122, %v2121
        %2267 = vmatprep.subr.bf16.mxu0 0
        %2268 = vmatpush1.bf16.msra.mxu0 %v2130
        %2269 = vmatprep.subr.bf16.mxu0 0
        %2270 = vmatpush1.bf16.msra.mxu0 %v2129
        %2271 = vmatprep.subr.bf16.mxu0 0
        %2272 = vmatpush1.bf16.msra.mxu0 %v2128
        %2273 = vmatprep.subr.bf16.mxu0 0
        %2274 = vmatpush1.bf16.msra.mxu0 %v2127
        %2275 = vmatprep.subr.bf16.mxu0 0
        %2276 = vmatpush1.bf16.msra.mxu0 %v2126
        %2277 = vmatprep.subr.bf16.mxu0 0
        %2278 = vmatpush1.bf16.msra.mxu0 %v2125
        %2279 = vmatprep.subr.bf16.mxu0 0
        %2280 = vmatpush1.bf16.msra.mxu0 %v2124
        %2281 = vmatprep.subr.bf16.mxu0 0
        %2282 = vmatpush1.bf16.msra.mxu0 %v2123
        %2283 = vmatprep.subr.bf16.mxu0 0
        %2284 = vmatpush2.bf16.msra.mxu0 %v2138
        %2285 = vmatprep.subr.bf16.mxu0 0
        %2286 = vmatpush2.bf16.msra.mxu0 %v2137
        %2287 = vmatprep.subr.bf16.mxu0 0
        %2288 = vmatpush2.bf16.msra.mxu0 %v2136
        %2289 = vmatprep.subr.bf16.mxu0 0
        %2290 = vmatpush2.bf16.msra.mxu0 %v2135
        %2291 = vmatprep.subr.bf16.mxu0 0
        %2292 = vmatpush2.bf16.msra.mxu0 %v2134
        %2293 = vmatprep.subr.bf16.mxu0 0
        %2294 = vmatpush2.bf16.msra.mxu0 %v2133
        %2295 = vmatprep.subr.bf16.mxu0 0
        %2296 = vmatpush2.bf16.msra.mxu0 %v2132
        %2297 = vmatprep.subr.bf16.mxu0 0
        %2298 = vmatpush2.bf16.msra.mxu0 %v2131
        %2299 = vmatprep.mubr.bf16.mxu0 %v1500
        %2300 = vmatmul.mubr.bf16.gmra.mxu0 %v1508
        %v2301 = vpop.f32.mrf.mxu0
        %v2302 = vadd.f32 %v1833, %v2301
        %v2303 = vpop.f32.mrf.mxu0
        %v2304 = vpop.f32.mrf.mxu0
        %v2305 = vadd.f32 %v1833, %v2304
        %v2306 = vpop.f32.mrf.mxu0
        %2307 = vmatprep.mubr.bf16.mxu0 %v1501
        %2308 = vmatmul.mubr.bf16.gmra.mxu0 %v1511
        %v2309 = vpop.f32.mrf.mxu0
        %v2310 = vadd.f32 %v1833, %v2309
        %v2311 = vpop.f32.mrf.mxu0
        %v2312 = vpop.f32.mrf.mxu0
        %v2313 = vadd.f32 %v1833, %v2312
        %v2314 = vpop.f32.mrf.mxu0
        %2315 = vdwg.mxu0
        %2316 = vmatprep.subr.bf16.mxu0 0
        %2317 = vmatpush1.bf16.msra.mxu0 %v2146
        %2318 = vmatprep.subr.bf16.mxu0 0
        %2319 = vmatpush1.bf16.msra.mxu0 %v2145
        %2320 = vmatprep.subr.bf16.mxu0 0
        %2321 = vmatpush1.bf16.msra.mxu0 %v2144
        %2322 = vmatprep.subr.bf16.mxu0 0
        %2323 = vmatpush1.bf16.msra.mxu0 %v2143
        %2324 = vmatprep.subr.bf16.mxu0 0
        %2325 = vmatpush1.bf16.msra.mxu0 %v2142
        %2326 = vmatprep.subr.bf16.mxu0 0
        %2327 = vmatpush1.bf16.msra.mxu0 %v2141
        %2328 = vmatprep.subr.bf16.mxu0 0
        %2329 = vmatpush1.bf16.msra.mxu0 %v2140
        %2330 = vmatprep.subr.bf16.mxu0 0
        %2331 = vmatpush1.bf16.msra.mxu0 %v2139
        %2332 = vmatprep.subr.bf16.mxu0 0
        %2333 = vmatpush2.bf16.msra.mxu0 %v2154
        %2334 = vmatprep.subr.bf16.mxu0 0
        %2335 = vmatpush2.bf16.msra.mxu0 %v2153
        %2336 = vmatprep.subr.bf16.mxu0 0
        %2337 = vmatpush2.bf16.msra.mxu0 %v2152
        %2338 = vmatprep.subr.bf16.mxu0 0
        %2339 = vmatpush2.bf16.msra.mxu0 %v2151
        %2340 = vmatprep.subr.bf16.mxu0 0
        %2341 = vmatpush2.bf16.msra.mxu0 %v2150
        %2342 = vmatprep.subr.bf16.mxu0 0
        %2343 = vmatpush2.bf16.msra.mxu0 %v2149
        %2344 = vmatprep.subr.bf16.mxu0 0
        %2345 = vmatpush2.bf16.msra.mxu0 %v2148
        %2346 = vmatprep.subr.bf16.mxu0 0
        %2347 = vmatpush2.bf16.msra.mxu0 %v2147
        %2348 = vmatprep.mubr.bf16.mxu0 %v1585
        %2349 = vmatmul.mubr.bf16.gmra.mxu0 %v1519
        %v2350 = vpop.f32.mrf.mxu0
        %v2351 = vadd.f32 %v2302, %v2350
        %v2352 = vpop.f32.mrf.mxu0
        %v2353 = vpop.f32.mrf.mxu0
        %v2354 = vadd.f32 %v2305, %v2353
        %v2355 = vpop.f32.mrf.mxu0
        %2356 = vmatprep.mubr.bf16.mxu0 %v1588
        %2357 = vmatmul.mubr.bf16.gmra.mxu0 %v1522
        %v2358 = vpop.f32.mrf.mxu0
        %v2359 = vadd.f32 %v2310, %v2358
        %v2360 = vpop.f32.mrf.mxu0
        %v2361 = vpop.f32.mrf.mxu0
        %v2362 = vadd.f32 %v2313, %v2361
        %v2363 = vpop.f32.mrf.mxu0
        %2364 = vdwg.mxu0
        %2365 = vmatprep.subr.bf16.mxu0 0
        %2366 = vmatpush1.bf16.msra.mxu0 %v2162
        %2367 = vmatprep.subr.bf16.mxu0 0
        %2368 = vmatpush1.bf16.msra.mxu0 %v2161
        %2369 = vmatprep.subr.bf16.mxu0 0
        %2370 = vmatpush1.bf16.msra.mxu0 %v2160
        %2371 = vmatprep.subr.bf16.mxu0 0
        %2372 = vmatpush1.bf16.msra.mxu0 %v2159
        %2373 = vmatprep.subr.bf16.mxu0 0
        %2374 = vmatpush1.bf16.msra.mxu0 %v2158
        %2375 = vmatprep.subr.bf16.mxu0 0
        %2376 = vmatpush1.bf16.msra.mxu0 %v2157
        %2377 = vmatprep.subr.bf16.mxu0 0
        %2378 = vmatpush1.bf16.msra.mxu0 %v2156
        %2379 = vmatprep.subr.bf16.mxu0 0
        %2380 = vmatpush1.bf16.msra.mxu0 %v2155
        %2381 = vmatprep.subr.bf16.mxu0 0
        %2382 = vmatpush2.bf16.msra.mxu0 %v2170
        %2383 = vmatprep.subr.bf16.mxu0 0
        %2384 = vmatpush2.bf16.msra.mxu0 %v2169
        %2385 = vmatprep.subr.bf16.mxu0 0
        %2386 = vmatpush2.bf16.msra.mxu0 %v2168
        %2387 = vmatprep.subr.bf16.mxu0 0
        %2388 = vmatpush2.bf16.msra.mxu0 %v2167
        %2389 = vmatprep.subr.bf16.mxu0 0
        %2390 = vmatpush2.bf16.msra.mxu0 %v2166
        %2391 = vmatprep.subr.bf16.mxu0 0
        %2392 = vmatpush2.bf16.msra.mxu0 %v2165
        %2393 = vmatprep.subr.bf16.mxu0 0
        %2394 = vmatpush2.bf16.msra.mxu0 %v2164
        %2395 = vmatprep.subr.bf16.mxu0 0
        %2396 = vmatpush2.bf16.msra.mxu0 %v2163
        %2397 = vmatprep.mubr.bf16.mxu0 %v1595
        %2398 = vmatmul.mubr.bf16.gmra.mxu0 %v1578
        %v2399 = vpop.f32.mrf.mxu0
        %v2400 = vadd.f32 %v2351, %v2399
        %v2401 = vpop.f32.mrf.mxu0
        %v2402 = vpop.f32.mrf.mxu0
        %v2403 = vadd.f32 %v2354, %v2402
        %v2404 = vpop.f32.mrf.mxu0
        %2405 = vmatprep.mubr.bf16.mxu0 %v1598
        %2406 = vmatmul.mubr.bf16.gmra.mxu0 %v1579
        %v2407 = vpop.f32.mrf.mxu0
        %v2408 = vadd.f32 %v2359, %v2407
        %v2409 = vpop.f32.mrf.mxu0
        %v2410 = vpop.f32.mrf.mxu0
        %v2411 = vadd.f32 %v2362, %v2410
        %v2412 = vpop.f32.mrf.mxu0
        %2413 = vdwg.mxu0
        %2414 = vmatprep.subr.bf16.mxu0 0
        %2415 = vmatpush1.bf16.msra.mxu0 %v2178
        %2416 = vmatprep.subr.bf16.mxu0 0
        %2417 = vmatpush1.bf16.msra.mxu0 %v2177
        %2418 = vmatprep.subr.bf16.mxu0 0
        %2419 = vmatpush1.bf16.msra.mxu0 %v2176
        %2420 = vmatprep.subr.bf16.mxu0 0
        %2421 = vmatpush1.bf16.msra.mxu0 %v2175
        %2422 = vmatprep.subr.bf16.mxu0 0
        %2423 = vmatpush1.bf16.msra.mxu0 %v2174
        %2424 = vmatprep.subr.bf16.mxu0 0
        %2425 = vmatpush1.bf16.msra.mxu0 %v2173
        %2426 = vmatprep.subr.bf16.mxu0 0
        %2427 = vmatpush1.bf16.msra.mxu0 %v2172
        %2428 = vmatprep.subr.bf16.mxu0 0
        %2429 = vmatpush1.bf16.msra.mxu0 %v2171
        %2430 = vmatprep.subr.bf16.mxu0 0
        %2431 = vmatpush2.bf16.msra.mxu0 %v2186
        %2432 = vmatprep.subr.bf16.mxu0 0
        %2433 = vmatpush2.bf16.msra.mxu0 %v2185
        %2434 = vmatprep.subr.bf16.mxu0 0
        %2435 = vmatpush2.bf16.msra.mxu0 %v2184
        %2436 = vmatprep.subr.bf16.mxu0 0
        %2437 = vmatpush2.bf16.msra.mxu0 %v2183
        %2438 = vmatprep.subr.bf16.mxu0 0
        %2439 = vmatpush2.bf16.msra.mxu0 %v2182
        %2440 = vmatprep.subr.bf16.mxu0 0
        %2441 = vmatpush2.bf16.msra.mxu0 %v2181
        %2442 = vmatprep.subr.bf16.mxu0 0
        %2443 = vmatpush2.bf16.msra.mxu0 %v2180
        %2444 = vmatprep.subr.bf16.mxu0 0
        %2445 = vmatpush2.bf16.msra.mxu0 %v2179
        %2446 = vmatprep.mubr.bf16.mxu0 %v1654
        %2447 = vmatmul.mubr.bf16.gmra.mxu0 %v1661
        %v2448 = vpop.f32.mrf.mxu0
        %v2449 = vadd.f32 %v2400, %v2448
        %v2450 = vpop.f32.mrf.mxu0
        %v2451 = vpop.f32.mrf.mxu0
        %v2452 = vadd.f32 %v2403, %v2451
        %v2453 = vpop.f32.mrf.mxu0
        %2454 = vmatprep.mubr.bf16.mxu0 %v1655
        %2455 = vmatmul.mubr.bf16.gmra.mxu0 %v1664
        %v2456 = vpop.f32.mrf.mxu0
        %v2457 = vadd.f32 %v2408, %v2456
        %v2458 = vpop.f32.mrf.mxu0
        %v2459 = vpop.f32.mrf.mxu0
        %v2460 = vadd.f32 %v2411, %v2459
        %v2461 = vpop.f32.mrf.mxu0
        %2462 = vdwg.mxu0
        %2463 = vmatprep.subr.bf16.mxu0 0
        %2464 = vmatpush1.bf16.msra.mxu0 %v2194
        %2465 = vmatprep.subr.bf16.mxu0 0
        %2466 = vmatpush1.bf16.msra.mxu0 %v2193
        %2467 = vmatprep.subr.bf16.mxu0 0
        %2468 = vmatpush1.bf16.msra.mxu0 %v2192
        %2469 = vmatprep.subr.bf16.mxu0 0
        %2470 = vmatpush1.bf16.msra.mxu0 %v2191
        %2471 = vmatprep.subr.bf16.mxu0 0
        %2472 = vmatpush1.bf16.msra.mxu0 %v2190
        %2473 = vmatprep.subr.bf16.mxu0 0
        %2474 = vmatpush1.bf16.msra.mxu0 %v2189
        %2475 = vmatprep.subr.bf16.mxu0 0
        %2476 = vmatpush1.bf16.msra.mxu0 %v2188
        %2477 = vmatprep.subr.bf16.mxu0 0
        %2478 = vmatpush1.bf16.msra.mxu0 %v2187
        %2479 = vmatprep.subr.bf16.mxu0 0
        %2480 = vmatpush2.bf16.msra.mxu0 0
        %2481 = vmatprep.subr.bf16.mxu0 0
        %2482 = vmatpush2.bf16.msra.mxu0 0
        %2483 = vmatprep.subr.bf16.mxu0 0
        %2484 = vmatpush2.bf16.msra.mxu0 0
        %2485 = vmatprep.subr.bf16.mxu0 0
        %2486 = vmatpush2.bf16.msra.mxu0 0
        %2487 = vmatprep.subr.bf16.mxu0 0
        %2488 = vmatpush2.bf16.msra.mxu0 0
        %2489 = vmatprep.subr.bf16.mxu0 0
        %2490 = vmatpush2.bf16.msra.mxu0 0
        %2491 = vmatprep.subr.bf16.mxu0 0
        %2492 = vmatpush2.bf16.msra.mxu0 0
        %2493 = vmatprep.subr.bf16.mxu0 0
        %2494 = vmatpush2.bf16.msra.mxu0 0
        %2495 = vmatprep.mubr.bf16.mxu0 0
        %2496 = vmatmul.mubr.bf16.gmra.mxu0 %v1671
        %v2497 = vpop.f32.mrf.mxu0
        %v2498 = vadd.f32 %v2449, %v2497
        %v2499 = vpop.f32.mrf.mxu0
        %v2500 = vpop.f32.mrf.mxu0
        %v2501 = vadd.f32 %v2452, %v2500
        %v2502 = vpop.f32.mrf.mxu0
        %2503 = vmatprep.mubr.bf16.mxu0 0
        %2504 = vmatmul.mubr.bf16.gmra.mxu0 %v1674
        %v2505 = vpop.f32.mrf.mxu0
        %v2506 = vadd.f32 %v2457, %v2505
        %v2507 = vpop.f32.mrf.mxu0
        %v2508 = vpop.f32.mrf.mxu0
        %v2509 = vadd.f32 %v2460, %v2508
        %v2510 = vpop.f32.mrf.mxu0
        %2511 = vdwg.mxu0
        %vm2512 = vcmp.ge.f32.partialorder %v2498, 0.0
        %vm2513 = vcmp.ge.f32.partialorder %v2501, 0.0
        %vm2514 = vcmp.ge.f32.partialorder %v2506, 0.0
        %vm2515 = vcmp.ge.f32.partialorder %v2509, 0.0
        %v2516 = vmul.f32 %v2498, 0.01
        %v2517 = vmul.f32 %v2501, 0.01
        %v2518 = vmul.f32 %v2506, 0.01
        %v2519 = vmul.f32 %v2509, 0.01
        %v2520 = vsel %vm2512, %v2498, %v2516
        %v2521 = vsel %vm2513, %v2501, %v2517
        %v2522 = vsel %vm2514, %v2506, %v2518
        %v2523 = vsel %vm2515, %v2509, %v2519
        %v2524 = vpack.c.bf16 %v2521, %v2520
        %v2525 = vpack.c.bf16 %v2523, %v2522
        %v2528 = vunpack.c.l.b16 %v2524
        %v2529 = vunpack.c.h.b16 %v2524
        %v2530 = vunpack.c.l.b16 %v2525
        %v2531 = vunpack.c.h.b16 %v2525
        %v2532 = vpack.c.b16 %v2528, %v2528
        %v2533 = vpack.c.b16 %v2529, %v2529
        %v2534 = vpack.c.b16 %v2530, %v2530
        %v2535 = vpack.c.b16 %v2531, %v2531
        %v2537 = vshrl.u32 %v2532, 16
        %v2539 = vrot.slane %v2537, 6
        %v2540 = vshll.u32 %v2532, 16
        %v2542 = vrot.slane %v2540, 7
        %v2543 = vor.u32 %v2539, %v2542
        %v2544 = vrot.slane %v2543, 4
        %v2546 = vshrl.u32 %v2533, 16
        %v2548 = vrot.slane %v2546, 6
        %v2549 = vshll.u32 %v2533, 16
        %v2551 = vrot.slane %v2549, 7
        %v2552 = vor.u32 %v2548, %v2551
        %v2553 = vsel %vm269, %v2544, %v2552
        %v2554 = vrot.slane %v2552, 4
        %v2556 = vshrl.u32 %v2534, 16
        %v2558 = vrot.slane %v2556, 6
        %v2559 = vshll.u32 %v2534, 16
        %v2561 = vrot.slane %v2559, 7
        %v2562 = vor.u32 %v2558, %v2561
        %v2563 = vrot.slane %v2562, 4
        %v2565 = vshrl.u32 %v2535, 16
        %v2567 = vrot.slane %v2565, 6
        %v2568 = vshll.u32 %v2535, 16
        %v2570 = vrot.slane %v2568, 7
        %v2571 = vor.u32 %v2567, %v2570
        %v2572 = vsel %vm269, %v2563, %v2571
        %v2573 = vrot.slane %v2571, 4
        %v2580 = vld [vmem:[#allocation2] sm:$0xe]
        %v2581 = vsel %vm315, %v2543, %v2580
        %2582 = vst [vmem:[#allocation2] sm:$0xe] %v2581
        %2583 = vst [vmem:[#allocation2 + $0x4] sm:$0xf] %v2553
        %v2584 = vld [vmem:[#allocation2 + $0x8] sm:$0x3]
        %v2585 = vsel %vm224, %v2554, %v2584
        %2586 = vst [vmem:[#allocation2 + $0x8] sm:$0x3] %v2585
        %v2587 = vld [vmem:[#allocation2 + $0xc] sm:$0xe]
        %v2588 = vsel %vm315, %v2562, %v2587
        %2589 = vst [vmem:[#allocation2 + $0xc] sm:$0xe] %v2588
        %2590 = vst [vmem:[#allocation2 + $0x10] sm:$0xf] %v2572
        %v2591 = vld [vmem:[#allocation2 + $0x14] sm:$0x3]
        %v2592 = vsel %vm224, %v2573, %v2591
        %2593 = vst [vmem:[#allocation2 + $0x14] sm:$0x3] %v2592
        %v2594 = vld [vmem:[#allocation2] sm:$0xf]
        %v2595 = vld [vmem:[#allocation2 + $0x4] sm:$0xf]
        %v2596 = vld [vmem:[#allocation2 + $0xc] sm:$0xf]
        %v2597 = vld [vmem:[#allocation2 + $0x10] sm:$0xf]
        %v2602 = vunpack.c.l.b16 %v2594
        %v2603 = vunpack.c.l.b16 %v2595
        %v2604 = vunpack.c.l.b16 %v2596
        %v2605 = vunpack.c.l.b16 %v2597
        %v2606 = vpack.c.b16 %v2603, %v2602
        %v2607 = vpack.c.b16 %v2605, %v2604
        %2608 = vrot.lane.b32.xlu0 %v2606, 24
        %v2609 = vpop.permute.xlu0 %2608
        %2610 = vrot.lane.b32.xlu0 %v2607, 24
        %v2611 = vpop.permute.xlu0 %2610
        %vm2612 = vcmask 195584
        %v2614 = vsel %vm2612, 0, %v2609
        %v2617 = vsel %vm2612, 0, %v2611
        %2619 = vrot.lane.b32.xlu0 %v2606, 104
        %v2620 = vpop.permute.xlu0 %2619
        %2621 = vrot.lane.b32.xlu0 %v2607, 104
        %v2622 = vpop.permute.xlu0 %2621
        %vm2623 = vcmask 850944
        %v2625 = vsel %vm2623, %v2620, 0
        %v2628 = vsel %vm2623, %v2622, 0
        %v2630 = vld [vmem:[#allocation2] sm:$0xe]
        %v2631 = vld [vmem:[#allocation2 + $0x8] sm:$0x3]
        %v2632 = vld [vmem:[#allocation2 + $0xc] sm:$0xe]
        %v2633 = vld [vmem:[#allocation2 + $0x14] sm:$0x3]
        %v2635 = vshrl.u32 %v2630, 16
        %v2637 = vrot.slane %v2635, 5
        %v2638 = vshll.u32 %v2630, 16
        %v2640 = vrot.slane %v2638, 6
        %v2641 = vor.u32 %v2637, %v2640
        %v2642 = vrot.slane %v2641, 4
        %v2644 = vshrl.u32 %v2595, 16
        %v2646 = vrot.slane %v2644, 5
        %v2647 = vshll.u32 %v2595, 16
        %v2649 = vrot.slane %v2647, 6
        %v2650 = vor.u32 %v2646, %v2649
        %v2651 = vsel %vm392, %v2642, %v2650
        %v2652 = vrot.slane %v2650, 4
        %v2654 = vshrl.u32 %v2631, 16
        %v2656 = vrot.slane %v2654, 5
        %v2657 = vshll.u32 %v2631, 16
        %v2659 = vrot.slane %v2657, 6
        %v2660 = vor.u32 %v2656, %v2659
        %v2661 = vsel %vm392, %v2652, %v2660
        %v2663 = vshrl.u32 %v2632, 16
        %v2665 = vrot.slane %v2663, 5
        %v2666 = vshll.u32 %v2632, 16
        %v2668 = vrot.slane %v2666, 6
        %v2669 = vor.u32 %v2665, %v2668
        %v2670 = vrot.slane %v2669, 4
        %v2672 = vshrl.u32 %v2597, 16
        %v2674 = vrot.slane %v2672, 5
        %v2675 = vshll.u32 %v2597, 16
        %v2677 = vrot.slane %v2675, 6
        %v2678 = vor.u32 %v2674, %v2677
        %v2679 = vsel %vm392, %v2670, %v2678
        %v2680 = vrot.slane %v2678, 4
        %v2682 = vshrl.u32 %v2633, 16
        %v2684 = vrot.slane %v2682, 5
        %v2685 = vshll.u32 %v2633, 16
        %v2687 = vrot.slane %v2685, 6
        %v2688 = vor.u32 %v2684, %v2687
        %v2689 = vsel %vm392, %v2680, %v2688
        %v2690 = vunpack.c.l.b16 %v2651
        %v2691 = vunpack.c.l.b16 %v2661
        %v2692 = vunpack.c.l.b16 %v2679
        %v2693 = vunpack.c.l.b16 %v2689
        %v2694 = vpack.c.b16 %v2691, %v2690
        %v2695 = vpack.c.b16 %v2693, %v2692
        %2696 = vrot.lane.b32.xlu0 %v2694, 24
        %v2697 = vpop.permute.xlu0 %2696
        %2698 = vrot.lane.b32.xlu0 %v2695, 24
        %v2699 = vpop.permute.xlu0 %2698
        %v2701 = vsel %vm2612, 0, %v2697
        %v2704 = vsel %vm2612, 0, %v2699
        %2706 = vrot.lane.b32.xlu0 %v2694, 104
        %v2707 = vpop.permute.xlu0 %2706
        %2708 = vrot.lane.b32.xlu0 %v2695, 104
        %v2709 = vpop.permute.xlu0 %2708
        %v2711 = vsel %vm2623, %v2707, 0
        %v2714 = vsel %vm2623, %v2709, 0
        %v2716 = vld [vmem:[#allocation2] sm:$0x8]
        %v2717 = vld [vmem:[#allocation2 + $0x8] sm:$0x7]
        %v2718 = vld [vmem:[#allocation2 + $0xc] sm:$0x8]
        %v2719 = vld [vmem:[#allocation2 + $0x14] sm:$0x7]
        %vm2724 = vcmask 1040384
        %vm2725 = vcmask 1044484
        %vm2726 = vmor %vm2724, %vm2725
        %v2727 = vrot.slane %v2716, 7
        %v2728 = vrot.slane %v2727, 4
        %v2729 = vrot.slane %v2595, 7
        %v2730 = vsel %vm2726, %v2728, %v2729
        %v2731 = vrot.slane %v2729, 4
        %v2732 = vrot.slane %v2717, 7
        %v2733 = vsel %vm2726, %v2731, %v2732
        %v2734 = vrot.slane %v2718, 7
        %v2735 = vrot.slane %v2734, 4
        %v2736 = vrot.slane %v2597, 7
        %v2737 = vsel %vm2726, %v2735, %v2736
        %v2738 = vrot.slane %v2736, 4
        %v2739 = vrot.slane %v2719, 7
        %v2740 = vsel %vm2726, %v2738, %v2739
        %v2741 = vunpack.c.l.b16 %v2730
        %v2742 = vunpack.c.l.b16 %v2733
        %v2743 = vunpack.c.l.b16 %v2737
        %v2744 = vunpack.c.l.b16 %v2740
        %v2745 = vpack.c.b16 %v2742, %v2741
        %v2746 = vpack.c.b16 %v2744, %v2743
        %2747 = vrot.lane.b32.xlu0 %v2745, 24
        %v2748 = vpop.permute.xlu0 %2747
        %2749 = vrot.lane.b32.xlu0 %v2746, 24
        %v2750 = vpop.permute.xlu0 %2749
        %v2752 = vsel %vm2612, 0, %v2748
        %v2755 = vsel %vm2612, 0, %v2750
        %2757 = vrot.lane.b32.xlu0 %v2745, 104
        %v2758 = vpop.permute.xlu0 %2757
        %2759 = vrot.lane.b32.xlu0 %v2746, 104
        %v2760 = vpop.permute.xlu0 %2759
        %v2762 = vsel %vm2623, %v2758, 0
        %v2765 = vsel %vm2623, %v2760, 0
        %s2773 = scalar_lea.vmem [#allocation7], 1152
        %v2774 = vld [vmem:[%s2773] sm:$0xf]
        %v2775 = vld [vmem:[%s2773 + $0x4] sm:$0xf]
        %v2776 = vld [vmem:[%s2773 + $0x8] sm:$0xf]
        %v2777 = vld [vmem:[%s2773 + $0xc] sm:$0xf]
        %v2778 = vld [vmem:[%s2773 + $0x10] sm:$0xf]
        %v2779 = vld [vmem:[%s2773 + $0x14] sm:$0xf]
        %v2780 = vld [vmem:[%s2773 + $0x18] sm:$0xf]
        %v2781 = vld [vmem:[%s2773 + $0x1c] sm:$0xf]
        %v2782 = vld [vmem:[%s2773 + $0x20] sm:$0xf]
        %v2783 = vld [vmem:[%s2773 + $0x24] sm:$0xf]
        %v2784 = vld [vmem:[%s2773 + $0x28] sm:$0xf]
        %v2785 = vld [vmem:[%s2773 + $0x2c] sm:$0xf]
        %v2786 = vld [vmem:[%s2773 + $0x30] sm:$0xf]
        %v2787 = vld [vmem:[%s2773 + $0x34] sm:$0xf]
        %v2788 = vld [vmem:[%s2773 + $0x38] sm:$0xf]
        %v2789 = vld [vmem:[%s2773 + $0x3c] sm:$0xf]
        %v2790 = vld [vmem:[%s2773 + $0x40] sm:$0xf]
        %v2791 = vld [vmem:[%s2773 + $0x44] sm:$0xf]
        %v2792 = vld [vmem:[%s2773 + $0x48] sm:$0xf]
        %v2793 = vld [vmem:[%s2773 + $0x4c] sm:$0xf]
        %v2794 = vld [vmem:[%s2773 + $0x50] sm:$0xf]
        %v2795 = vld [vmem:[%s2773 + $0x54] sm:$0xf]
        %v2796 = vld [vmem:[%s2773 + $0x58] sm:$0xf]
        %v2797 = vld [vmem:[%s2773 + $0x5c] sm:$0xf]
        %v2798 = vld [vmem:[%s2773 + $0x60] sm:$0xf]
        %v2799 = vld [vmem:[%s2773 + $0x64] sm:$0xf]
        %v2800 = vld [vmem:[%s2773 + $0x68] sm:$0xf]
        %v2801 = vld [vmem:[%s2773 + $0x6c] sm:$0xf]
        %v2802 = vld [vmem:[%s2773 + $0x70] sm:$0xf]
        %v2803 = vld [vmem:[%s2773 + $0x74] sm:$0xf]
        %v2804 = vld [vmem:[%s2773 + $0x78] sm:$0xf]
        %v2805 = vld [vmem:[%s2773 + $0x7c] sm:$0xf]
        %v2806 = vld [vmem:[%s2773 + $0x80] sm:$0xf]
        %v2807 = vld [vmem:[%s2773 + $0x84] sm:$0xf]
        %v2808 = vld [vmem:[%s2773 + $0x88] sm:$0xf]
        %v2809 = vld [vmem:[%s2773 + $0x8c] sm:$0xf]
        %v2810 = vld [vmem:[%s2773 + $0x90] sm:$0xf]
        %v2811 = vld [vmem:[%s2773 + $0x94] sm:$0xf]
        %v2812 = vld [vmem:[%s2773 + $0x98] sm:$0xf]
        %v2813 = vld [vmem:[%s2773 + $0x9c] sm:$0xf]
        %v2814 = vld [vmem:[%s2773 + $0xa0] sm:$0xf]
        %v2815 = vld [vmem:[%s2773 + $0xa4] sm:$0xf]
        %v2816 = vld [vmem:[%s2773 + $0xa8] sm:$0xf]
        %v2817 = vld [vmem:[%s2773 + $0xac] sm:$0xf]
        %v2818 = vld [vmem:[%s2773 + $0xb0] sm:$0xf]
        %v2819 = vld [vmem:[%s2773 + $0xb4] sm:$0xf]
        %v2820 = vld [vmem:[%s2773 + $0xb8] sm:$0xf]
        %v2821 = vld [vmem:[%s2773 + $0xbc] sm:$0xf]
        %v2822 = vld [vmem:[%s2773 + $0xc0] sm:$0xf]
        %v2823 = vld [vmem:[%s2773 + $0xc4] sm:$0xf]
        %v2824 = vld [vmem:[%s2773 + $0xc8] sm:$0xf]
        %v2825 = vld [vmem:[%s2773 + $0xcc] sm:$0xf]
        %v2826 = vld [vmem:[%s2773 + $0xd0] sm:$0xf]
        %v2827 = vld [vmem:[%s2773 + $0xd4] sm:$0xf]
        %v2828 = vld [vmem:[%s2773 + $0xd8] sm:$0xf]
        %v2829 = vld [vmem:[%s2773 + $0xdc] sm:$0xf]
        %v2830 = vld [vmem:[%s2773 + $0xe0] sm:$0xf]
        %v2831 = vld [vmem:[%s2773 + $0xe4] sm:$0xf]
        %v2832 = vld [vmem:[%s2773 + $0xe8] sm:$0xf]
        %v2833 = vld [vmem:[%s2773 + $0xec] sm:$0xf]
        %v2834 = vld [vmem:[%s2773 + $0xf0] sm:$0xf]
        %v2835 = vld [vmem:[%s2773 + $0xf4] sm:$0xf]
        %v2836 = vld [vmem:[%s2773 + $0xf8] sm:$0xf]
        %v2837 = vld [vmem:[%s2773 + $0xfc] sm:$0xf]
        %v2838 = vld [vmem:[%s2773 + $0x100] sm:$0xf]
        %v2839 = vld [vmem:[%s2773 + $0x104] sm:$0xf]
        %v2840 = vld [vmem:[%s2773 + $0x108] sm:$0xf]
        %v2841 = vld [vmem:[%s2773 + $0x10c] sm:$0xf]
        %v2842 = vld [vmem:[%s2773 + $0x110] sm:$0xf]
        %v2843 = vld [vmem:[%s2773 + $0x114] sm:$0xf]
        %v2844 = vld [vmem:[%s2773 + $0x118] sm:$0xf]
        %v2845 = vld [vmem:[%s2773 + $0x11c] sm:$0xf]
        %v2846 = vld [vmem:[%s2773 + $0x120] sm:$0xf]
        %v2847 = vld [vmem:[%s2773 + $0x124] sm:$0xf]
        %v2848 = vld [vmem:[%s2773 + $0x128] sm:$0xf]
        %v2849 = vld [vmem:[%s2773 + $0x12c] sm:$0xf]
        %v2850 = vld [vmem:[%s2773 + $0x130] sm:$0xf]
        %v2851 = vld [vmem:[%s2773 + $0x134] sm:$0xf]
        %v2852 = vld [vmem:[%s2773 + $0x138] sm:$0xf]
        %v2853 = vld [vmem:[%s2773 + $0x13c] sm:$0xf]
        %v2854 = vld [vmem:[%s2773 + $0x140] sm:$0xf]
        %v2855 = vld [vmem:[%s2773 + $0x144] sm:$0xf]
        %v2856 = vld [vmem:[%s2773 + $0x148] sm:$0xf]
        %v2857 = vld [vmem:[%s2773 + $0x14c] sm:$0xf]
        %v2858 = vld [vmem:[%s2773 + $0x150] sm:$0xf]
        %v2859 = vld [vmem:[%s2773 + $0x154] sm:$0xf]
        %v2860 = vld [vmem:[%s2773 + $0x158] sm:$0xf]
        %v2861 = vld [vmem:[%s2773 + $0x15c] sm:$0xf]
        %v2862 = vld [vmem:[%s2773 + $0x160] sm:$0xf]
        %v2863 = vld [vmem:[%s2773 + $0x164] sm:$0xf]
        %v2864 = vld [vmem:[%s2773 + $0x168] sm:$0xf]
        %v2865 = vld [vmem:[%s2773 + $0x16c] sm:$0xf]
        %v2866 = vld [vmem:[%s2773 + $0x170] sm:$0xf]
        %v2867 = vld [vmem:[%s2773 + $0x174] sm:$0xf]
        %v2868 = vld [vmem:[%s2773 + $0x178] sm:$0xf]
        %v2869 = vld [vmem:[%s2773 + $0x17c] sm:$0xf]
        %v2870 = vld [vmem:[%s2773 + $0x180] sm:$0xf]
        %v2871 = vld [vmem:[%s2773 + $0x184] sm:$0xf]
        %v2872 = vld [vmem:[%s2773 + $0x188] sm:$0xf]
        %v2873 = vld [vmem:[%s2773 + $0x18c] sm:$0xf]
        %v2874 = vld [vmem:[%s2773 + $0x190] sm:$0xf]
        %v2875 = vld [vmem:[%s2773 + $0x194] sm:$0xf]
        %v2876 = vld [vmem:[%s2773 + $0x198] sm:$0xf]
        %v2877 = vld [vmem:[%s2773 + $0x19c] sm:$0xf]
        %v2878 = vld [vmem:[%s2773 + $0x1a0] sm:$0xf]
        %v2879 = vld [vmem:[%s2773 + $0x1a4] sm:$0xf]
        %v2880 = vld [vmem:[%s2773 + $0x1a8] sm:$0xf]
        %v2881 = vld [vmem:[%s2773 + $0x1ac] sm:$0xf]
        %v2882 = vld [vmem:[%s2773 + $0x1b0] sm:$0xf]
        %v2883 = vld [vmem:[%s2773 + $0x1b4] sm:$0xf]
        %v2884 = vld [vmem:[%s2773 + $0x1b8] sm:$0xf]
        %v2885 = vld [vmem:[%s2773 + $0x1bc] sm:$0xf]
        %v2886 = vld [vmem:[%s2773 + $0x1c0] sm:$0xf]
        %v2887 = vld [vmem:[%s2773 + $0x1c4] sm:$0xf]
        %v2888 = vld [vmem:[%s2773 + $0x1c8] sm:$0xf]
        %v2889 = vld [vmem:[%s2773 + $0x1cc] sm:$0xf]
        %v2890 = vld [vmem:[%s2773 + $0x1d0] sm:$0xf]
        %v2891 = vld [vmem:[%s2773 + $0x1d4] sm:$0xf]
        %v2892 = vld [vmem:[%s2773 + $0x1d8] sm:$0xf]
        %v2893 = vld [vmem:[%s2773 + $0x1dc] sm:$0xf]
        %v2894 = vld [vmem:[%s2773 + $0x1e0] sm:$0xf]
        %v2895 = vld [vmem:[%s2773 + $0x1e4] sm:$0xf]
        %v2896 = vld [vmem:[%s2773 + $0x1e8] sm:$0xf]
        %v2897 = vld [vmem:[%s2773 + $0x1ec] sm:$0xf]
        %v2898 = vld [vmem:[%s2773 + $0x1f0] sm:$0xf]
        %v2899 = vld [vmem:[%s2773 + $0x1f4] sm:$0xf]
        %v2900 = vld [vmem:[%s2773 + $0x1f8] sm:$0xf]
        %v2901 = vld [vmem:[%s2773 + $0x1fc] sm:$0xf]
        %v2902 = vld [vmem:[%s2773 + $0x200] sm:$0xf]
        %v2903 = vld [vmem:[%s2773 + $0x204] sm:$0xf]
        %v2904 = vld [vmem:[%s2773 + $0x208] sm:$0xf]
        %v2905 = vld [vmem:[%s2773 + $0x20c] sm:$0xf]
        %v2906 = vld [vmem:[%s2773 + $0x210] sm:$0xf]
        %v2907 = vld [vmem:[%s2773 + $0x214] sm:$0xf]
        %v2908 = vld [vmem:[%s2773 + $0x218] sm:$0xf]
        %v2909 = vld [vmem:[%s2773 + $0x21c] sm:$0xf]
        %v2910 = vld [vmem:[%s2773 + $0x220] sm:$0xf]
        %v2911 = vld [vmem:[%s2773 + $0x224] sm:$0xf]
        %v2912 = vld [vmem:[%s2773 + $0x228] sm:$0xf]
        %v2913 = vld [vmem:[%s2773 + $0x22c] sm:$0xf]
        %v2914 = vld [vmem:[%s2773 + $0x230] sm:$0xf]
        %v2915 = vld [vmem:[%s2773 + $0x234] sm:$0xf]
        %v2916 = vld [vmem:[%s2773 + $0x238] sm:$0xf]
        %v2917 = vld [vmem:[%s2773 + $0x23c] sm:$0xf]
        %s2918 = scalar_lea.vmem [#allocation9], 2
        %v2919 = vld [vmem:[%s2918] sm:$0x1]
        %v2921 = vlaneseq
        %v2922 = vshrl.u32 %v2921, 7
        %v2923 = vsub.s32 0, %v2922
        %v2924 = vrot.slane %v2919, %v2923
        %v3070 = vunpack.c.l.b16 %v2774
        %v3071 = vunpack.c.l.b16 %v2775
        %v3072 = vunpack.c.l.b16 %v2776
        %v3073 = vunpack.c.l.b16 %v2777
        %v3074 = vunpack.c.l.b16 %v2778
        %v3075 = vunpack.c.l.b16 %v2779
        %v3076 = vunpack.c.l.b16 %v2780
        %v3077 = vunpack.c.l.b16 %v2781
        %v3078 = vunpack.c.l.b16 %v2782
        %v3079 = vunpack.c.l.b16 %v2783
        %v3080 = vunpack.c.l.b16 %v2784
        %v3081 = vunpack.c.l.b16 %v2785
        %v3082 = vunpack.c.l.b16 %v2786
        %v3083 = vunpack.c.l.b16 %v2787
        %v3084 = vunpack.c.l.b16 %v2788
        %v3085 = vunpack.c.l.b16 %v2789
        %v3086 = vunpack.c.l.b16 %v2790
        %v3087 = vunpack.c.l.b16 %v2791
        %v3088 = vunpack.c.l.b16 %v2792
        %v3089 = vunpack.c.l.b16 %v2793
        %v3090 = vunpack.c.l.b16 %v2794
        %v3091 = vunpack.c.l.b16 %v2795
        %v3092 = vunpack.c.l.b16 %v2796
        %v3093 = vunpack.c.l.b16 %v2797
        %v3094 = vunpack.c.l.b16 %v2798
        %v3095 = vunpack.c.l.b16 %v2799
        %v3096 = vunpack.c.l.b16 %v2800
        %v3097 = vunpack.c.l.b16 %v2801
        %v3098 = vunpack.c.l.b16 %v2802
        %v3099 = vunpack.c.l.b16 %v2803
        %v3100 = vunpack.c.l.b16 %v2804
        %v3101 = vunpack.c.l.b16 %v2805
        %v3102 = vunpack.c.l.b16 %v2806
        %v3103 = vunpack.c.l.b16 %v2807
        %v3104 = vunpack.c.l.b16 %v2808
        %v3105 = vunpack.c.l.b16 %v2809
        %v3106 = vunpack.c.l.b16 %v2810
        %v3107 = vunpack.c.l.b16 %v2811
        %v3108 = vunpack.c.l.b16 %v2812
        %v3109 = vunpack.c.l.b16 %v2813
        %v3110 = vunpack.c.l.b16 %v2814
        %v3111 = vunpack.c.l.b16 %v2815
        %v3112 = vunpack.c.l.b16 %v2816
        %v3113 = vunpack.c.l.b16 %v2817
        %v3114 = vunpack.c.l.b16 %v2818
        %v3115 = vunpack.c.l.b16 %v2819
        %v3116 = vunpack.c.l.b16 %v2820
        %v3117 = vunpack.c.l.b16 %v2821
        %v3118 = vunpack.c.l.b16 %v2822
        %v3119 = vunpack.c.l.b16 %v2823
        %v3120 = vunpack.c.l.b16 %v2824
        %v3121 = vunpack.c.l.b16 %v2825
        %v3122 = vunpack.c.l.b16 %v2826
        %v3123 = vunpack.c.l.b16 %v2827
        %v3124 = vunpack.c.l.b16 %v2828
        %v3125 = vunpack.c.l.b16 %v2829
        %v3126 = vunpack.c.l.b16 %v2830
        %v3127 = vunpack.c.l.b16 %v2831
        %v3128 = vunpack.c.l.b16 %v2832
        %v3129 = vunpack.c.l.b16 %v2833
        %v3130 = vunpack.c.l.b16 %v2834
        %v3131 = vunpack.c.l.b16 %v2835
        %v3132 = vunpack.c.l.b16 %v2836
        %v3133 = vunpack.c.l.b16 %v2837
        %v3134 = vunpack.c.l.b16 %v2838
        %v3135 = vunpack.c.l.b16 %v2839
        %v3136 = vunpack.c.l.b16 %v2840
        %v3137 = vunpack.c.l.b16 %v2841
        %v3138 = vunpack.c.l.b16 %v2842
        %v3139 = vunpack.c.l.b16 %v2843
        %v3140 = vunpack.c.l.b16 %v2844
        %v3141 = vunpack.c.l.b16 %v2845
        %v3142 = vunpack.c.l.b16 %v2846
        %v3143 = vunpack.c.l.b16 %v2847
        %v3144 = vunpack.c.l.b16 %v2848
        %v3145 = vunpack.c.l.b16 %v2849
        %v3146 = vunpack.c.l.b16 %v2850
        %v3147 = vunpack.c.l.b16 %v2851
        %v3148 = vunpack.c.l.b16 %v2852
        %v3149 = vunpack.c.l.b16 %v2853
        %v3150 = vunpack.c.l.b16 %v2854
        %v3151 = vunpack.c.l.b16 %v2855
        %v3152 = vunpack.c.l.b16 %v2856
        %v3153 = vunpack.c.l.b16 %v2857
        %v3154 = vunpack.c.l.b16 %v2858
        %v3155 = vunpack.c.l.b16 %v2859
        %v3156 = vunpack.c.l.b16 %v2860
        %v3157 = vunpack.c.l.b16 %v2861
        %v3158 = vunpack.c.l.b16 %v2862
        %v3159 = vunpack.c.l.b16 %v2863
        %v3160 = vunpack.c.l.b16 %v2864
        %v3161 = vunpack.c.l.b16 %v2865
        %v3162 = vunpack.c.l.b16 %v2866
        %v3163 = vunpack.c.l.b16 %v2867
        %v3164 = vunpack.c.l.b16 %v2868
        %v3165 = vunpack.c.l.b16 %v2869
        %v3166 = vunpack.c.l.b16 %v2870
        %v3167 = vunpack.c.l.b16 %v2871
        %v3168 = vunpack.c.l.b16 %v2872
        %v3169 = vunpack.c.l.b16 %v2873
        %v3170 = vunpack.c.l.b16 %v2874
        %v3171 = vunpack.c.l.b16 %v2875
        %v3172 = vunpack.c.l.b16 %v2876
        %v3173 = vunpack.c.l.b16 %v2877
        %v3174 = vunpack.c.l.b16 %v2878
        %v3175 = vunpack.c.l.b16 %v2879
        %v3176 = vunpack.c.l.b16 %v2880
        %v3177 = vunpack.c.l.b16 %v2881
        %v3178 = vunpack.c.l.b16 %v2882
        %v3179 = vunpack.c.l.b16 %v2883
        %v3180 = vunpack.c.l.b16 %v2884
        %v3181 = vunpack.c.l.b16 %v2885
        %v3182 = vunpack.c.l.b16 %v2886
        %v3183 = vunpack.c.l.b16 %v2887
        %v3184 = vunpack.c.l.b16 %v2888
        %v3185 = vunpack.c.l.b16 %v2889
        %v3186 = vunpack.c.l.b16 %v2890
        %v3187 = vunpack.c.l.b16 %v2891
        %v3188 = vunpack.c.l.b16 %v2892
        %v3189 = vunpack.c.l.b16 %v2893
        %v3190 = vunpack.c.l.b16 %v2894
        %v3191 = vunpack.c.l.b16 %v2895
        %v3192 = vunpack.c.l.b16 %v2896
        %v3193 = vunpack.c.l.b16 %v2897
        %v3194 = vunpack.c.l.b16 %v2898
        %v3195 = vunpack.c.l.b16 %v2899
        %v3196 = vunpack.c.l.b16 %v2900
        %v3197 = vunpack.c.l.b16 %v2901
        %v3198 = vunpack.c.l.b16 %v2902
        %v3199 = vunpack.c.l.b16 %v2903
        %v3200 = vunpack.c.l.b16 %v2904
        %v3201 = vunpack.c.l.b16 %v2905
        %v3202 = vunpack.c.l.b16 %v2906
        %v3203 = vunpack.c.l.b16 %v2907
        %v3204 = vunpack.c.l.b16 %v2908
        %v3205 = vunpack.c.l.b16 %v2909
        %v3206 = vunpack.c.l.b16 %v2910
        %v3207 = vunpack.c.l.b16 %v2911
        %v3208 = vunpack.c.l.b16 %v2912
        %v3209 = vunpack.c.l.b16 %v2913
        %v3210 = vunpack.c.l.b16 %v2914
        %v3211 = vunpack.c.l.b16 %v2915
        %v3212 = vunpack.c.l.b16 %v2916
        %v3213 = vunpack.c.l.b16 %v2917
        %v3214 = vpack.c.b16 %v3071, %v3070
        %v3215 = vpack.c.b16 %v3073, %v3072
        %v3216 = vpack.c.b16 %v3075, %v3074
        %v3217 = vpack.c.b16 %v3077, %v3076
        %v3218 = vpack.c.b16 %v3079, %v3078
        %v3219 = vpack.c.b16 %v3081, %v3080
        %v3220 = vpack.c.b16 %v3083, %v3082
        %v3221 = vpack.c.b16 %v3085, %v3084
        %v3222 = vpack.c.b16 %v3087, %v3086
        %v3223 = vpack.c.b16 %v3089, %v3088
        %v3224 = vpack.c.b16 %v3091, %v3090
        %v3225 = vpack.c.b16 %v3093, %v3092
        %v3226 = vpack.c.b16 %v3095, %v3094
        %v3227 = vpack.c.b16 %v3097, %v3096
        %v3228 = vpack.c.b16 %v3099, %v3098
        %v3229 = vpack.c.b16 %v3101, %v3100
        %v3230 = vpack.c.b16 %v3103, %v3102
        %v3231 = vpack.c.b16 %v3105, %v3104
        %v3232 = vpack.c.b16 %v3107, %v3106
        %v3233 = vpack.c.b16 %v3109, %v3108
        %v3234 = vpack.c.b16 %v3111, %v3110
        %v3235 = vpack.c.b16 %v3113, %v3112
        %v3236 = vpack.c.b16 %v3115, %v3114
        %v3237 = vpack.c.b16 %v3117, %v3116
        %v3238 = vpack.c.b16 %v3119, %v3118
        %v3239 = vpack.c.b16 %v3121, %v3120
        %v3240 = vpack.c.b16 %v3123, %v3122
        %v3241 = vpack.c.b16 %v3125, %v3124
        %v3242 = vpack.c.b16 %v3127, %v3126
        %v3243 = vpack.c.b16 %v3129, %v3128
        %v3244 = vpack.c.b16 %v3131, %v3130
        %v3245 = vpack.c.b16 %v3133, %v3132
        %v3246 = vpack.c.b16 %v3135, %v3134
        %v3247 = vpack.c.b16 %v3137, %v3136
        %v3248 = vpack.c.b16 %v3139, %v3138
        %v3249 = vpack.c.b16 %v3141, %v3140
        %v3250 = vpack.c.b16 %v3143, %v3142
        %v3251 = vpack.c.b16 %v3145, %v3144
        %v3252 = vpack.c.b16 %v3147, %v3146
        %v3253 = vpack.c.b16 %v3149, %v3148
        %v3254 = vpack.c.b16 %v3151, %v3150
        %v3255 = vpack.c.b16 %v3153, %v3152
        %v3256 = vpack.c.b16 %v3155, %v3154
        %v3257 = vpack.c.b16 %v3157, %v3156
        %v3258 = vpack.c.b16 %v3159, %v3158
        %v3259 = vpack.c.b16 %v3161, %v3160
        %v3260 = vpack.c.b16 %v3163, %v3162
        %v3261 = vpack.c.b16 %v3165, %v3164
        %v3262 = vpack.c.b16 %v3167, %v3166
        %v3263 = vpack.c.b16 %v3169, %v3168
        %v3264 = vpack.c.b16 %v3171, %v3170
        %v3265 = vpack.c.b16 %v3173, %v3172
        %v3266 = vpack.c.b16 %v3175, %v3174
        %v3267 = vpack.c.b16 %v3177, %v3176
        %v3268 = vpack.c.b16 %v3179, %v3178
        %v3269 = vpack.c.b16 %v3181, %v3180
        %v3270 = vpack.c.b16 %v3183, %v3182
        %v3271 = vpack.c.b16 %v3185, %v3184
        %v3272 = vpack.c.b16 %v3187, %v3186
        %v3273 = vpack.c.b16 %v3189, %v3188
        %v3274 = vpack.c.b16 %v3191, %v3190
        %v3275 = vpack.c.b16 %v3193, %v3192
        %v3276 = vpack.c.b16 %v3195, %v3194
        %v3277 = vpack.c.b16 %v3197, %v3196
        %v3278 = vpack.c.b16 %v3199, %v3198
        %v3279 = vpack.c.b16 %v3201, %v3200
        %v3280 = vpack.c.b16 %v3203, %v3202
        %v3281 = vpack.c.b16 %v3205, %v3204
        %v3282 = vpack.c.b16 %v3207, %v3206
        %v3283 = vpack.c.b16 %v3209, %v3208
        %v3284 = vpack.c.b16 %v3211, %v3210
        %v3285 = vpack.c.b16 %v3213, %v3212
        %3358 = vmatprep.subr.bf16.mxu0 0
        %3359 = vmatpush1.bf16.msra.mxu0 %v3221
        %3360 = vmatprep.subr.bf16.mxu0 0
        %3361 = vmatpush1.bf16.msra.mxu0 %v3220
        %3362 = vmatprep.subr.bf16.mxu0 0
        %3363 = vmatpush1.bf16.msra.mxu0 %v3219
        %3364 = vmatprep.subr.bf16.mxu0 0
        %3365 = vmatpush1.bf16.msra.mxu0 %v3218
        %3366 = vmatprep.subr.bf16.mxu0 0
        %3367 = vmatpush1.bf16.msra.mxu0 %v3217
        %3368 = vmatprep.subr.bf16.mxu0 0
        %3369 = vmatpush1.bf16.msra.mxu0 %v3216
        %3370 = vmatprep.subr.bf16.mxu0 0
        %3371 = vmatpush1.bf16.msra.mxu0 %v3215
        %3372 = vmatprep.subr.bf16.mxu0 0
        %3373 = vmatpush1.bf16.msra.mxu0 %v3214
        %3374 = vmatprep.subr.bf16.mxu0 0
        %3375 = vmatpush2.bf16.msra.mxu0 %v3229
        %3376 = vmatprep.subr.bf16.mxu0 0
        %3377 = vmatpush2.bf16.msra.mxu0 %v3228
        %3378 = vmatprep.subr.bf16.mxu0 0
        %3379 = vmatpush2.bf16.msra.mxu0 %v3227
        %3380 = vmatprep.subr.bf16.mxu0 0
        %3381 = vmatpush2.bf16.msra.mxu0 %v3226
        %3382 = vmatprep.subr.bf16.mxu0 0
        %3383 = vmatpush2.bf16.msra.mxu0 %v3225
        %3384 = vmatprep.subr.bf16.mxu0 0
        %3385 = vmatpush2.bf16.msra.mxu0 %v3224
        %3386 = vmatprep.subr.bf16.mxu0 0
        %3387 = vmatpush2.bf16.msra.mxu0 %v3223
        %3388 = vmatprep.subr.bf16.mxu0 0
        %3389 = vmatpush2.bf16.msra.mxu0 %v3222
        %3390 = vmatprep.mubr.bf16.mxu0 %v2606
        %3391 = vmatmul.mubr.bf16.gmra.mxu0 %v2614
        %v3392 = vpop.f32.mrf.mxu0
        %v3393 = vadd.f32 %v2924, %v3392
        %v3394 = vpop.f32.mrf.mxu0
        %v3395 = vpop.f32.mrf.mxu0
        %v3396 = vadd.f32 %v2924, %v3395
        %v3397 = vpop.f32.mrf.mxu0
        %3398 = vmatprep.mubr.bf16.mxu0 %v2607
        %3399 = vmatmul.mubr.bf16.gmra.mxu0 %v2617
        %v3400 = vpop.f32.mrf.mxu0
        %v3401 = vadd.f32 %v2924, %v3400
        %v3402 = vpop.f32.mrf.mxu0
        %v3403 = vpop.f32.mrf.mxu0
        %v3404 = vadd.f32 %v2924, %v3403
        %v3405 = vpop.f32.mrf.mxu0
        %3406 = vdwg.mxu0
        %3407 = vmatprep.subr.bf16.mxu0 0
        %3408 = vmatpush1.bf16.msra.mxu0 %v3237
        %3409 = vmatprep.subr.bf16.mxu0 0
        %3410 = vmatpush1.bf16.msra.mxu0 %v3236
        %3411 = vmatprep.subr.bf16.mxu0 0
        %3412 = vmatpush1.bf16.msra.mxu0 %v3235
        %3413 = vmatprep.subr.bf16.mxu0 0
        %3414 = vmatpush1.bf16.msra.mxu0 %v3234
        %3415 = vmatprep.subr.bf16.mxu0 0
        %3416 = vmatpush1.bf16.msra.mxu0 %v3233
        %3417 = vmatprep.subr.bf16.mxu0 0
        %3418 = vmatpush1.bf16.msra.mxu0 %v3232
        %3419 = vmatprep.subr.bf16.mxu0 0
        %3420 = vmatpush1.bf16.msra.mxu0 %v3231
        %3421 = vmatprep.subr.bf16.mxu0 0
        %3422 = vmatpush1.bf16.msra.mxu0 %v3230
        %3423 = vmatprep.subr.bf16.mxu0 0
        %3424 = vmatpush2.bf16.msra.mxu0 %v3245
        %3425 = vmatprep.subr.bf16.mxu0 0
        %3426 = vmatpush2.bf16.msra.mxu0 %v3244
        %3427 = vmatprep.subr.bf16.mxu0 0
        %3428 = vmatpush2.bf16.msra.mxu0 %v3243
        %3429 = vmatprep.subr.bf16.mxu0 0
        %3430 = vmatpush2.bf16.msra.mxu0 %v3242
        %3431 = vmatprep.subr.bf16.mxu0 0
        %3432 = vmatpush2.bf16.msra.mxu0 %v3241
        %3433 = vmatprep.subr.bf16.mxu0 0
        %3434 = vmatpush2.bf16.msra.mxu0 %v3240
        %3435 = vmatprep.subr.bf16.mxu0 0
        %3436 = vmatpush2.bf16.msra.mxu0 %v3239
        %3437 = vmatprep.subr.bf16.mxu0 0
        %3438 = vmatpush2.bf16.msra.mxu0 %v3238
        %3439 = vmatprep.mubr.bf16.mxu0 %v2701
        %3440 = vmatmul.mubr.bf16.gmra.mxu0 %v2625
        %v3441 = vpop.f32.mrf.mxu0
        %v3442 = vadd.f32 %v3393, %v3441
        %v3443 = vpop.f32.mrf.mxu0
        %v3444 = vpop.f32.mrf.mxu0
        %v3445 = vadd.f32 %v3396, %v3444
        %v3446 = vpop.f32.mrf.mxu0
        %3447 = vmatprep.mubr.bf16.mxu0 %v2704
        %3448 = vmatmul.mubr.bf16.gmra.mxu0 %v2628
        %v3449 = vpop.f32.mrf.mxu0
        %v3450 = vadd.f32 %v3401, %v3449
        %v3451 = vpop.f32.mrf.mxu0
        %v3452 = vpop.f32.mrf.mxu0
        %v3453 = vadd.f32 %v3404, %v3452
        %v3454 = vpop.f32.mrf.mxu0
        %3455 = vdwg.mxu0
        %3456 = vmatprep.subr.bf16.mxu0 0
        %3457 = vmatpush1.bf16.msra.mxu0 %v3253
        %3458 = vmatprep.subr.bf16.mxu0 0
        %3459 = vmatpush1.bf16.msra.mxu0 %v3252
        %3460 = vmatprep.subr.bf16.mxu0 0
        %3461 = vmatpush1.bf16.msra.mxu0 %v3251
        %3462 = vmatprep.subr.bf16.mxu0 0
        %3463 = vmatpush1.bf16.msra.mxu0 %v3250
        %3464 = vmatprep.subr.bf16.mxu0 0
        %3465 = vmatpush1.bf16.msra.mxu0 %v3249
        %3466 = vmatprep.subr.bf16.mxu0 0
        %3467 = vmatpush1.bf16.msra.mxu0 %v3248
        %3468 = vmatprep.subr.bf16.mxu0 0
        %3469 = vmatpush1.bf16.msra.mxu0 %v3247
        %3470 = vmatprep.subr.bf16.mxu0 0
        %3471 = vmatpush1.bf16.msra.mxu0 %v3246
        %3472 = vmatprep.subr.bf16.mxu0 0
        %3473 = vmatpush2.bf16.msra.mxu0 %v3261
        %3474 = vmatprep.subr.bf16.mxu0 0
        %3475 = vmatpush2.bf16.msra.mxu0 %v3260
        %3476 = vmatprep.subr.bf16.mxu0 0
        %3477 = vmatpush2.bf16.msra.mxu0 %v3259
        %3478 = vmatprep.subr.bf16.mxu0 0
        %3479 = vmatpush2.bf16.msra.mxu0 %v3258
        %3480 = vmatprep.subr.bf16.mxu0 0
        %3481 = vmatpush2.bf16.msra.mxu0 %v3257
        %3482 = vmatprep.subr.bf16.mxu0 0
        %3483 = vmatpush2.bf16.msra.mxu0 %v3256
        %3484 = vmatprep.subr.bf16.mxu0 0
        %3485 = vmatpush2.bf16.msra.mxu0 %v3255
        %3486 = vmatprep.subr.bf16.mxu0 0
        %3487 = vmatpush2.bf16.msra.mxu0 %v3254
        %3488 = vmatprep.mubr.bf16.mxu0 %v2711
        %3489 = vmatmul.mubr.bf16.gmra.mxu0 %v2694
        %v3490 = vpop.f32.mrf.mxu0
        %v3491 = vadd.f32 %v3442, %v3490
        %v3492 = vpop.f32.mrf.mxu0
        %v3493 = vpop.f32.mrf.mxu0
        %v3494 = vadd.f32 %v3445, %v3493
        %v3495 = vpop.f32.mrf.mxu0
        %3496 = vmatprep.mubr.bf16.mxu0 %v2714
        %3497 = vmatmul.mubr.bf16.gmra.mxu0 %v2695
        %v3498 = vpop.f32.mrf.mxu0
        %v3499 = vadd.f32 %v3450, %v3498
        %v3500 = vpop.f32.mrf.mxu0
        %v3501 = vpop.f32.mrf.mxu0
        %v3502 = vadd.f32 %v3453, %v3501
        %v3503 = vpop.f32.mrf.mxu0
        %3504 = vdwg.mxu0
        %3505 = vmatprep.subr.bf16.mxu0 0
        %3506 = vmatpush1.bf16.msra.mxu0 %v3269
        %3507 = vmatprep.subr.bf16.mxu0 0
        %3508 = vmatpush1.bf16.msra.mxu0 %v3268
        %3509 = vmatprep.subr.bf16.mxu0 0
        %3510 = vmatpush1.bf16.msra.mxu0 %v3267
        %3511 = vmatprep.subr.bf16.mxu0 0
        %3512 = vmatpush1.bf16.msra.mxu0 %v3266
        %3513 = vmatprep.subr.bf16.mxu0 0
        %3514 = vmatpush1.bf16.msra.mxu0 %v3265
        %3515 = vmatprep.subr.bf16.mxu0 0
        %3516 = vmatpush1.bf16.msra.mxu0 %v3264
        %3517 = vmatprep.subr.bf16.mxu0 0
        %3518 = vmatpush1.bf16.msra.mxu0 %v3263
        %3519 = vmatprep.subr.bf16.mxu0 0
        %3520 = vmatpush1.bf16.msra.mxu0 %v3262
        %3521 = vmatprep.subr.bf16.mxu0 0
        %3522 = vmatpush2.bf16.msra.mxu0 %v3277
        %3523 = vmatprep.subr.bf16.mxu0 0
        %3524 = vmatpush2.bf16.msra.mxu0 %v3276
        %3525 = vmatprep.subr.bf16.mxu0 0
        %3526 = vmatpush2.bf16.msra.mxu0 %v3275
        %3527 = vmatprep.subr.bf16.mxu0 0
        %3528 = vmatpush2.bf16.msra.mxu0 %v3274
        %3529 = vmatprep.subr.bf16.mxu0 0
        %3530 = vmatpush2.bf16.msra.mxu0 %v3273
        %3531 = vmatprep.subr.bf16.mxu0 0
        %3532 = vmatpush2.bf16.msra.mxu0 %v3272
        %3533 = vmatprep.subr.bf16.mxu0 0
        %3534 = vmatpush2.bf16.msra.mxu0 %v3271
        %3535 = vmatprep.subr.bf16.mxu0 0
        %3536 = vmatpush2.bf16.msra.mxu0 %v3270
        %3537 = vmatprep.mubr.bf16.mxu0 %v2745
        %3538 = vmatmul.mubr.bf16.gmra.mxu0 %v2752
        %v3539 = vpop.f32.mrf.mxu0
        %v3540 = vadd.f32 %v3491, %v3539
        %v3541 = vpop.f32.mrf.mxu0
        %v3542 = vpop.f32.mrf.mxu0
        %v3543 = vadd.f32 %v3494, %v3542
        %v3544 = vpop.f32.mrf.mxu0
        %3545 = vmatprep.mubr.bf16.mxu0 %v2746
        %3546 = vmatmul.mubr.bf16.gmra.mxu0 %v2755
        %v3547 = vpop.f32.mrf.mxu0
        %v3548 = vadd.f32 %v3499, %v3547
        %v3549 = vpop.f32.mrf.mxu0
        %v3550 = vpop.f32.mrf.mxu0
        %v3551 = vadd.f32 %v3502, %v3550
        %v3552 = vpop.f32.mrf.mxu0
        %3553 = vdwg.mxu0
        %3554 = vmatprep.subr.bf16.mxu0 0
        %3555 = vmatpush1.bf16.msra.mxu0 %v3285
        %3556 = vmatprep.subr.bf16.mxu0 0
        %3557 = vmatpush1.bf16.msra.mxu0 %v3284
        %3558 = vmatprep.subr.bf16.mxu0 0
        %3559 = vmatpush1.bf16.msra.mxu0 %v3283
        %3560 = vmatprep.subr.bf16.mxu0 0
        %3561 = vmatpush1.bf16.msra.mxu0 %v3282
        %3562 = vmatprep.subr.bf16.mxu0 0
        %3563 = vmatpush1.bf16.msra.mxu0 %v3281
        %3564 = vmatprep.subr.bf16.mxu0 0
        %3565 = vmatpush1.bf16.msra.mxu0 %v3280
        %3566 = vmatprep.subr.bf16.mxu0 0
        %3567 = vmatpush1.bf16.msra.mxu0 %v3279
        %3568 = vmatprep.subr.bf16.mxu0 0
        %3569 = vmatpush1.bf16.msra.mxu0 %v3278
        %3570 = vmatprep.subr.bf16.mxu0 0
        %3571 = vmatpush2.bf16.msra.mxu0 0
        %3572 = vmatprep.subr.bf16.mxu0 0
        %3573 = vmatpush2.bf16.msra.mxu0 0
        %3574 = vmatprep.subr.bf16.mxu0 0
        %3575 = vmatpush2.bf16.msra.mxu0 0
        %3576 = vmatprep.subr.bf16.mxu0 0
        %3577 = vmatpush2.bf16.msra.mxu0 0
        %3578 = vmatprep.subr.bf16.mxu0 0
        %3579 = vmatpush2.bf16.msra.mxu0 0
        %3580 = vmatprep.subr.bf16.mxu0 0
        %3581 = vmatpush2.bf16.msra.mxu0 0
        %3582 = vmatprep.subr.bf16.mxu0 0
        %3583 = vmatpush2.bf16.msra.mxu0 0
        %3584 = vmatprep.subr.bf16.mxu0 0
        %3585 = vmatpush2.bf16.msra.mxu0 0
        %3586 = vmatprep.mubr.bf16.mxu0 0
        %3587 = vmatmul.mubr.bf16.gmra.mxu0 %v2762
        %v3588 = vpop.f32.mrf.mxu0
        %v3589 = vadd.f32 %v3540, %v3588
        %v3590 = vpop.f32.mrf.mxu0
        %v3591 = vpop.f32.mrf.mxu0
        %v3592 = vadd.f32 %v3543, %v3591
        %v3593 = vpop.f32.mrf.mxu0
        %3594 = vmatprep.mubr.bf16.mxu0 0
        %3595 = vmatmul.mubr.bf16.gmra.mxu0 %v2765
        %v3596 = vpop.f32.mrf.mxu0
        %v3597 = vadd.f32 %v3548, %v3596
        %v3598 = vpop.f32.mrf.mxu0
        %v3599 = vpop.f32.mrf.mxu0
        %v3600 = vadd.f32 %v3551, %v3599
        %v3601 = vpop.f32.mrf.mxu0
        %3602 = vdwg.mxu0
        %vm3603 = vcmp.ge.f32.partialorder %v3589, 0.0
        %vm3604 = vcmp.ge.f32.partialorder %v3592, 0.0
        %vm3605 = vcmp.ge.f32.partialorder %v3597, 0.0
        %vm3606 = vcmp.ge.f32.partialorder %v3600, 0.0
        %v3607 = vmul.f32 %v3589, 0.01
        %v3608 = vmul.f32 %v3592, 0.01
        %v3609 = vmul.f32 %v3597, 0.01
        %v3610 = vmul.f32 %v3600, 0.01
        %v3611 = vsel %vm3603, %v3589, %v3607
        %v3612 = vsel %vm3604, %v3592, %v3608
        %v3613 = vsel %vm3605, %v3597, %v3609
        %v3614 = vsel %vm3606, %v3600, %v3610
        %v3615 = vpack.c.bf16 %v3612, %v3611
        %v3616 = vpack.c.bf16 %v3614, %v3613
        %v3619 = vunpack.c.l.b16 %v3615
        %v3620 = vunpack.c.h.b16 %v3615
        %v3621 = vunpack.c.l.b16 %v3616
        %v3622 = vunpack.c.h.b16 %v3616
        %v3623 = vpack.c.b16 %v3619, %v3619
        %v3624 = vpack.c.b16 %v3620, %v3620
        %v3625 = vpack.c.b16 %v3621, %v3621
        %v3626 = vpack.c.b16 %v3622, %v3622
        %v3628 = vshrl.u32 %v3623, 16
        %v3630 = vrot.slane %v3628, 6
        %v3631 = vshll.u32 %v3623, 16
        %v3633 = vrot.slane %v3631, 7
        %v3634 = vor.u32 %v3630, %v3633
        %v3635 = vrot.slane %v3634, 4
        %v3637 = vshrl.u32 %v3624, 16
        %v3639 = vrot.slane %v3637, 6
        %v3640 = vshll.u32 %v3624, 16
        %v3642 = vrot.slane %v3640, 7
        %v3643 = vor.u32 %v3639, %v3642
        %v3644 = vsel %vm269, %v3635, %v3643
        %v3645 = vrot.slane %v3643, 4
        %v3647 = vshrl.u32 %v3625, 16
        %v3649 = vrot.slane %v3647, 6
        %v3650 = vshll.u32 %v3625, 16
        %v3652 = vrot.slane %v3650, 7
        %v3653 = vor.u32 %v3649, %v3652
        %v3654 = vrot.slane %v3653, 4
        %v3656 = vshrl.u32 %v3626, 16
        %v3658 = vrot.slane %v3656, 6
        %v3659 = vshll.u32 %v3626, 16
        %v3661 = vrot.slane %v3659, 7
        %v3662 = vor.u32 %v3658, %v3661
        %v3663 = vsel %vm269, %v3654, %v3662
        %v3664 = vrot.slane %v3662, 4
        %v3671 = vld [vmem:[#allocation3] sm:$0xe]
        %v3672 = vsel %vm315, %v3634, %v3671
        %3673 = vst [vmem:[#allocation3] sm:$0xe] %v3672
        %3674 = vst [vmem:[#allocation3 + $0x4] sm:$0xf] %v3644
        %v3675 = vld [vmem:[#allocation3 + $0x8] sm:$0x3]
        %v3676 = vsel %vm224, %v3645, %v3675
        %3677 = vst [vmem:[#allocation3 + $0x8] sm:$0x3] %v3676
        %v3678 = vld [vmem:[#allocation3 + $0xc] sm:$0xe]
        %v3679 = vsel %vm315, %v3653, %v3678
        %3680 = vst [vmem:[#allocation3 + $0xc] sm:$0xe] %v3679
        %3681 = vst [vmem:[#allocation3 + $0x10] sm:$0xf] %v3663
        %v3682 = vld [vmem:[#allocation3 + $0x14] sm:$0x3]
        %v3683 = vsel %vm224, %v3664, %v3682
        %3684 = vst [vmem:[#allocation3 + $0x14] sm:$0x3] %v3683
        %v3685 = vld [vmem:[#allocation3] sm:$0xf]
        %v3686 = vld [vmem:[#allocation3 + $0x4] sm:$0xf]
        %v3687 = vld [vmem:[#allocation3 + $0x8] sm:$0x1]
        %v3688 = vld [vmem:[#allocation3 + $0xc] sm:$0xf]
        %v3689 = vld [vmem:[#allocation3 + $0x10] sm:$0xf]
        %v3690 = vld [vmem:[#allocation3 + $0x14] sm:$0x1]
        %v3692 = vshrl.u32 %v3685, 16
        %v3694 = vrot.slane %v3692, 4
        %v3695 = vshll.u32 %v3685, 16
        %v3697 = vrot.slane %v3695, 5
        %v3698 = vor.u32 %v3694, %v3697
        %v3699 = vrot.slane %v3698, 4
        %v3701 = vshll.u32 %v3686, 16
        %v3703 = vrot.slane %v3701, 5
        %v3704 = vsel %vm1447, %v3699, %v3703
        %v3705 = vshrl.u32 %v3686, 16
        %v3707 = vrot.slane %v3705, 4
        %v3708 = vor.u32 %v3707, %v3703
        %v3709 = vrot.slane %v3708, 4
        %v3711 = vshll.u32 %v3687, 16
        %v3713 = vrot.slane %v3711, 5
        %v3714 = vsel %vm1447, %v3709, %v3713
        %v3716 = vshrl.u32 %v3688, 16
        %v3718 = vrot.slane %v3716, 4
        %v3719 = vshll.u32 %v3688, 16
        %v3721 = vrot.slane %v3719, 5
        %v3722 = vor.u32 %v3718, %v3721
        %v3723 = vrot.slane %v3722, 4
        %v3725 = vshll.u32 %v3689, 16
        %v3727 = vrot.slane %v3725, 5
        %v3728 = vsel %vm1447, %v3723, %v3727
        %v3729 = vshrl.u32 %v3689, 16
        %v3731 = vrot.slane %v3729, 4
        %v3732 = vor.u32 %v3731, %v3727
        %v3733 = vrot.slane %v3732, 4
        %v3735 = vshll.u32 %v3690, 16
        %v3737 = vrot.slane %v3735, 5
        %v3738 = vsel %vm1447, %v3733, %v3737
        %v3739 = vunpack.c.l.b16 %v3704
        %v3740 = vunpack.c.l.b16 %v3714
        %v3741 = vunpack.c.l.b16 %v3728
        %v3742 = vunpack.c.l.b16 %v3738
        %v3743 = vpack.c.b16 %v3740, %v3739
        %v3744 = vpack.c.b16 %v3742, %v3741
        %3745 = vrot.lane.b32.xlu0 %v3743, 16
        %v3746 = vpop.permute.xlu0 %3745
        %3747 = vrot.lane.b32.xlu0 %v3744, 16
        %v3748 = vpop.permute.xlu0 %3747
        %v3750 = vsel %vm1506, 0, %v3746
        %v3753 = vsel %vm1506, 0, %v3748
        %3755 = vrot.lane.b32.xlu0 %v3743, 112
        %v3756 = vpop.permute.xlu0 %3755
        %3757 = vrot.lane.b32.xlu0 %v3744, 112
        %v3758 = vpop.permute.xlu0 %3757
        %v3760 = vsel %vm1517, %v3756, 0
        %v3763 = vsel %vm1517, %v3758, 0
        %v3765 = vld [vmem:[#allocation3] sm:$0xe]
        %v3766 = vld [vmem:[#allocation3 + $0x8] sm:$0x3]
        %v3767 = vld [vmem:[#allocation3 + $0xc] sm:$0xe]
        %v3768 = vld [vmem:[#allocation3 + $0x14] sm:$0x3]
        %v3770 = vshrl.u32 %v3765, 16
        %v3772 = vrot.slane %v3770, 5
        %v3773 = vshll.u32 %v3765, 16
        %v3775 = vrot.slane %v3773, 6
        %v3776 = vor.u32 %v3772, %v3775
        %v3777 = vrot.slane %v3776, 4
        %v3778 = vrot.slane %v3705, 5
        %v3779 = vrot.slane %v3701, 6
        %v3780 = vor.u32 %v3778, %v3779
        %v3781 = vsel %vm392, %v3777, %v3780
        %v3782 = vrot.slane %v3780, 4
        %v3784 = vshrl.u32 %v3766, 16
        %v3786 = vrot.slane %v3784, 5
        %v3787 = vshll.u32 %v3766, 16
        %v3789 = vrot.slane %v3787, 6
        %v3790 = vor.u32 %v3786, %v3789
        %v3791 = vsel %vm392, %v3782, %v3790
        %v3793 = vshrl.u32 %v3767, 16
        %v3795 = vrot.slane %v3793, 5
        %v3796 = vshll.u32 %v3767, 16
        %v3798 = vrot.slane %v3796, 6
        %v3799 = vor.u32 %v3795, %v3798
        %v3800 = vrot.slane %v3799, 4
        %v3801 = vrot.slane %v3729, 5
        %v3802 = vrot.slane %v3725, 6
        %v3803 = vor.u32 %v3801, %v3802
        %v3804 = vsel %vm392, %v3800, %v3803
        %v3805 = vrot.slane %v3803, 4
        %v3807 = vshrl.u32 %v3768, 16
        %v3809 = vrot.slane %v3807, 5
        %v3810 = vshll.u32 %v3768, 16
        %v3812 = vrot.slane %v3810, 6
        %v3813 = vor.u32 %v3809, %v3812
        %v3814 = vsel %vm392, %v3805, %v3813
        %v3815 = vunpack.c.l.b16 %v3781
        %v3816 = vunpack.c.l.b16 %v3791
        %v3817 = vunpack.c.l.b16 %v3804
        %v3818 = vunpack.c.l.b16 %v3814
        %v3819 = vpack.c.b16 %v3816, %v3815
        %v3820 = vpack.c.b16 %v3818, %v3817
        %3821 = vrot.lane.b32.xlu0 %v3819, 16
        %v3822 = vpop.permute.xlu0 %3821
        %3823 = vrot.lane.b32.xlu0 %v3820, 16
        %v3824 = vpop.permute.xlu0 %3823
        %v3826 = vsel %vm1506, 0, %v3822
        %v3829 = vsel %vm1506, 0, %v3824
        %3831 = vrot.lane.b32.xlu0 %v3819, 112
        %v3832 = vpop.permute.xlu0 %3831
        %3833 = vrot.lane.b32.xlu0 %v3820, 112
        %v3834 = vpop.permute.xlu0 %3833
        %v3836 = vsel %vm1517, %v3832, 0
        %v3839 = vsel %vm1517, %v3834, 0
        %v3841 = vld [vmem:[#allocation3] sm:$0xc]
        %v3842 = vld [vmem:[#allocation3 + $0x8] sm:$0x7]
        %v3843 = vld [vmem:[#allocation3 + $0xc] sm:$0xc]
        %v3844 = vld [vmem:[#allocation3 + $0x14] sm:$0x7]
        %v3846 = vshrl.u32 %v3841, 16
        %v3848 = vrot.slane %v3846, 6
        %v3849 = vshll.u32 %v3841, 16
        %v3851 = vrot.slane %v3849, 7
        %v3852 = vor.u32 %v3848, %v3851
        %v3853 = vrot.slane %v3852, 4
        %v3854 = vrot.slane %v3705, 6
        %v3855 = vrot.slane %v3701, 7
        %v3856 = vor.u32 %v3854, %v3855
        %v3857 = vsel %vm269, %v3853, %v3856
        %v3858 = vrot.slane %v3856, 4
        %v3860 = vshrl.u32 %v3842, 16
        %v3862 = vrot.slane %v3860, 6
        %v3863 = vshll.u32 %v3842, 16
        %v3865 = vrot.slane %v3863, 7
        %v3866 = vor.u32 %v3862, %v3865
        %v3867 = vsel %vm269, %v3858, %v3866
        %v3869 = vshrl.u32 %v3843, 16
        %v3871 = vrot.slane %v3869, 6
        %v3872 = vshll.u32 %v3843, 16
        %v3874 = vrot.slane %v3872, 7
        %v3875 = vor.u32 %v3871, %v3874
        %v3876 = vrot.slane %v3875, 4
        %v3877 = vrot.slane %v3729, 6
        %v3878 = vrot.slane %v3725, 7
        %v3879 = vor.u32 %v3877, %v3878
        %v3880 = vsel %vm269, %v3876, %v3879
        %v3881 = vrot.slane %v3879, 4
        %v3883 = vshrl.u32 %v3844, 16
        %v3885 = vrot.slane %v3883, 6
        %v3886 = vshll.u32 %v3844, 16
        %v3888 = vrot.slane %v3886, 7
        %v3889 = vor.u32 %v3885, %v3888
        %v3890 = vsel %vm269, %v3881, %v3889
        %v3891 = vunpack.c.l.b16 %v3857
        %v3892 = vunpack.c.l.b16 %v3867
        %v3893 = vunpack.c.l.b16 %v3880
        %v3894 = vunpack.c.l.b16 %v3890
        %v3895 = vpack.c.b16 %v3892, %v3891
        %v3896 = vpack.c.b16 %v3894, %v3893
        %3897 = vrot.lane.b32.xlu0 %v3895, 16
        %v3898 = vpop.permute.xlu0 %3897
        %3899 = vrot.lane.b32.xlu0 %v3896, 16
        %v3900 = vpop.permute.xlu0 %3899
        %v3902 = vsel %vm1506, 0, %v3898
        %v3905 = vsel %vm1506, 0, %v3900
        %3907 = vrot.lane.b32.xlu0 %v3895, 112
        %v3908 = vpop.permute.xlu0 %3907
        %3909 = vrot.lane.b32.xlu0 %v3896, 112
        %v3910 = vpop.permute.xlu0 %3909
        %v3912 = vsel %vm1517, %v3908, 0
        %v3915 = vsel %vm1517, %v3910, 0
        %s3923 = scalar_lea.vmem [#allocation7], 1728
        %v3924 = vld [vmem:[%s3923] sm:$0xf]
        %v3925 = vld [vmem:[%s3923 + $0x4] sm:$0xf]
        %v3926 = vld [vmem:[%s3923 + $0x8] sm:$0xf]
        %v3927 = vld [vmem:[%s3923 + $0xc] sm:$0xf]
        %v3928 = vld [vmem:[%s3923 + $0x10] sm:$0xf]
        %v3929 = vld [vmem:[%s3923 + $0x14] sm:$0xf]
        %v3930 = vld [vmem:[%s3923 + $0x18] sm:$0xf]
        %v3931 = vld [vmem:[%s3923 + $0x1c] sm:$0xf]
        %v3932 = vld [vmem:[%s3923 + $0x20] sm:$0xf]
        %v3933 = vld [vmem:[%s3923 + $0x24] sm:$0xf]
        %v3934 = vld [vmem:[%s3923 + $0x28] sm:$0xf]
        %v3935 = vld [vmem:[%s3923 + $0x2c] sm:$0xf]
        %v3936 = vld [vmem:[%s3923 + $0x30] sm:$0xf]
        %v3937 = vld [vmem:[%s3923 + $0x34] sm:$0xf]
        %v3938 = vld [vmem:[%s3923 + $0x38] sm:$0xf]
        %v3939 = vld [vmem:[%s3923 + $0x3c] sm:$0xf]
        %v3940 = vld [vmem:[%s3923 + $0x40] sm:$0xf]
        %v3941 = vld [vmem:[%s3923 + $0x44] sm:$0xf]
        %v3942 = vld [vmem:[%s3923 + $0x48] sm:$0xf]
        %v3943 = vld [vmem:[%s3923 + $0x4c] sm:$0xf]
        %v3944 = vld [vmem:[%s3923 + $0x50] sm:$0xf]
        %v3945 = vld [vmem:[%s3923 + $0x54] sm:$0xf]
        %v3946 = vld [vmem:[%s3923 + $0x58] sm:$0xf]
        %v3947 = vld [vmem:[%s3923 + $0x5c] sm:$0xf]
        %v3948 = vld [vmem:[%s3923 + $0x60] sm:$0xf]
        %v3949 = vld [vmem:[%s3923 + $0x64] sm:$0xf]
        %v3950 = vld [vmem:[%s3923 + $0x68] sm:$0xf]
        %v3951 = vld [vmem:[%s3923 + $0x6c] sm:$0xf]
        %v3952 = vld [vmem:[%s3923 + $0x70] sm:$0xf]
        %v3953 = vld [vmem:[%s3923 + $0x74] sm:$0xf]
        %v3954 = vld [vmem:[%s3923 + $0x78] sm:$0xf]
        %v3955 = vld [vmem:[%s3923 + $0x7c] sm:$0xf]
        %v3956 = vld [vmem:[%s3923 + $0x80] sm:$0xf]
        %v3957 = vld [vmem:[%s3923 + $0x84] sm:$0xf]
        %v3958 = vld [vmem:[%s3923 + $0x88] sm:$0xf]
        %v3959 = vld [vmem:[%s3923 + $0x8c] sm:$0xf]
        %v3960 = vld [vmem:[%s3923 + $0x90] sm:$0xf]
        %v3961 = vld [vmem:[%s3923 + $0x94] sm:$0xf]
        %v3962 = vld [vmem:[%s3923 + $0x98] sm:$0xf]
        %v3963 = vld [vmem:[%s3923 + $0x9c] sm:$0xf]
        %v3964 = vld [vmem:[%s3923 + $0xa0] sm:$0xf]
        %v3965 = vld [vmem:[%s3923 + $0xa4] sm:$0xf]
        %v3966 = vld [vmem:[%s3923 + $0xa8] sm:$0xf]
        %v3967 = vld [vmem:[%s3923 + $0xac] sm:$0xf]
        %v3968 = vld [vmem:[%s3923 + $0xb0] sm:$0xf]
        %v3969 = vld [vmem:[%s3923 + $0xb4] sm:$0xf]
        %v3970 = vld [vmem:[%s3923 + $0xb8] sm:$0xf]
        %v3971 = vld [vmem:[%s3923 + $0xbc] sm:$0xf]
        %v3972 = vld [vmem:[%s3923 + $0xc0] sm:$0xf]
        %v3973 = vld [vmem:[%s3923 + $0xc4] sm:$0xf]
        %v3974 = vld [vmem:[%s3923 + $0xc8] sm:$0xf]
        %v3975 = vld [vmem:[%s3923 + $0xcc] sm:$0xf]
        %v3976 = vld [vmem:[%s3923 + $0xd0] sm:$0xf]
        %v3977 = vld [vmem:[%s3923 + $0xd4] sm:$0xf]
        %v3978 = vld [vmem:[%s3923 + $0xd8] sm:$0xf]
        %v3979 = vld [vmem:[%s3923 + $0xdc] sm:$0xf]
        %v3980 = vld [vmem:[%s3923 + $0xe0] sm:$0xf]
        %v3981 = vld [vmem:[%s3923 + $0xe4] sm:$0xf]
        %v3982 = vld [vmem:[%s3923 + $0xe8] sm:$0xf]
        %v3983 = vld [vmem:[%s3923 + $0xec] sm:$0xf]
        %v3984 = vld [vmem:[%s3923 + $0xf0] sm:$0xf]
        %v3985 = vld [vmem:[%s3923 + $0xf4] sm:$0xf]
        %v3986 = vld [vmem:[%s3923 + $0xf8] sm:$0xf]
        %v3987 = vld [vmem:[%s3923 + $0xfc] sm:$0xf]
        %v3988 = vld [vmem:[%s3923 + $0x100] sm:$0xf]
        %v3989 = vld [vmem:[%s3923 + $0x104] sm:$0xf]
        %v3990 = vld [vmem:[%s3923 + $0x108] sm:$0xf]
        %v3991 = vld [vmem:[%s3923 + $0x10c] sm:$0xf]
        %v3992 = vld [vmem:[%s3923 + $0x110] sm:$0xf]
        %v3993 = vld [vmem:[%s3923 + $0x114] sm:$0xf]
        %v3994 = vld [vmem:[%s3923 + $0x118] sm:$0xf]
        %v3995 = vld [vmem:[%s3923 + $0x11c] sm:$0xf]
        %v3996 = vld [vmem:[%s3923 + $0x120] sm:$0xf]
        %v3997 = vld [vmem:[%s3923 + $0x124] sm:$0xf]
        %v3998 = vld [vmem:[%s3923 + $0x128] sm:$0xf]
        %v3999 = vld [vmem:[%s3923 + $0x12c] sm:$0xf]
        %v4000 = vld [vmem:[%s3923 + $0x130] sm:$0xf]
        %v4001 = vld [vmem:[%s3923 + $0x134] sm:$0xf]
        %v4002 = vld [vmem:[%s3923 + $0x138] sm:$0xf]
        %v4003 = vld [vmem:[%s3923 + $0x13c] sm:$0xf]
        %v4004 = vld [vmem:[%s3923 + $0x140] sm:$0xf]
        %v4005 = vld [vmem:[%s3923 + $0x144] sm:$0xf]
        %v4006 = vld [vmem:[%s3923 + $0x148] sm:$0xf]
        %v4007 = vld [vmem:[%s3923 + $0x14c] sm:$0xf]
        %v4008 = vld [vmem:[%s3923 + $0x150] sm:$0xf]
        %v4009 = vld [vmem:[%s3923 + $0x154] sm:$0xf]
        %v4010 = vld [vmem:[%s3923 + $0x158] sm:$0xf]
        %v4011 = vld [vmem:[%s3923 + $0x15c] sm:$0xf]
        %v4012 = vld [vmem:[%s3923 + $0x160] sm:$0xf]
        %v4013 = vld [vmem:[%s3923 + $0x164] sm:$0xf]
        %v4014 = vld [vmem:[%s3923 + $0x168] sm:$0xf]
        %v4015 = vld [vmem:[%s3923 + $0x16c] sm:$0xf]
        %v4016 = vld [vmem:[%s3923 + $0x170] sm:$0xf]
        %v4017 = vld [vmem:[%s3923 + $0x174] sm:$0xf]
        %v4018 = vld [vmem:[%s3923 + $0x178] sm:$0xf]
        %v4019 = vld [vmem:[%s3923 + $0x17c] sm:$0xf]
        %v4020 = vld [vmem:[%s3923 + $0x180] sm:$0xf]
        %v4021 = vld [vmem:[%s3923 + $0x184] sm:$0xf]
        %v4022 = vld [vmem:[%s3923 + $0x188] sm:$0xf]
        %v4023 = vld [vmem:[%s3923 + $0x18c] sm:$0xf]
        %v4024 = vld [vmem:[%s3923 + $0x190] sm:$0xf]
        %v4025 = vld [vmem:[%s3923 + $0x194] sm:$0xf]
        %v4026 = vld [vmem:[%s3923 + $0x198] sm:$0xf]
        %v4027 = vld [vmem:[%s3923 + $0x19c] sm:$0xf]
        %v4028 = vld [vmem:[%s3923 + $0x1a0] sm:$0xf]
        %v4029 = vld [vmem:[%s3923 + $0x1a4] sm:$0xf]
        %v4030 = vld [vmem:[%s3923 + $0x1a8] sm:$0xf]
        %v4031 = vld [vmem:[%s3923 + $0x1ac] sm:$0xf]
        %v4032 = vld [vmem:[%s3923 + $0x1b0] sm:$0xf]
        %v4033 = vld [vmem:[%s3923 + $0x1b4] sm:$0xf]
        %v4034 = vld [vmem:[%s3923 + $0x1b8] sm:$0xf]
        %v4035 = vld [vmem:[%s3923 + $0x1bc] sm:$0xf]
        %v4036 = vld [vmem:[%s3923 + $0x1c0] sm:$0xf]
        %v4037 = vld [vmem:[%s3923 + $0x1c4] sm:$0xf]
        %v4038 = vld [vmem:[%s3923 + $0x1c8] sm:$0xf]
        %v4039 = vld [vmem:[%s3923 + $0x1cc] sm:$0xf]
        %v4040 = vld [vmem:[%s3923 + $0x1d0] sm:$0xf]
        %v4041 = vld [vmem:[%s3923 + $0x1d4] sm:$0xf]
        %v4042 = vld [vmem:[%s3923 + $0x1d8] sm:$0xf]
        %v4043 = vld [vmem:[%s3923 + $0x1dc] sm:$0xf]
        %v4044 = vld [vmem:[%s3923 + $0x1e0] sm:$0xf]
        %v4045 = vld [vmem:[%s3923 + $0x1e4] sm:$0xf]
        %v4046 = vld [vmem:[%s3923 + $0x1e8] sm:$0xf]
        %v4047 = vld [vmem:[%s3923 + $0x1ec] sm:$0xf]
        %v4048 = vld [vmem:[%s3923 + $0x1f0] sm:$0xf]
        %v4049 = vld [vmem:[%s3923 + $0x1f4] sm:$0xf]
        %v4050 = vld [vmem:[%s3923 + $0x1f8] sm:$0xf]
        %v4051 = vld [vmem:[%s3923 + $0x1fc] sm:$0xf]
        %v4052 = vld [vmem:[%s3923 + $0x200] sm:$0xf]
        %v4053 = vld [vmem:[%s3923 + $0x204] sm:$0xf]
        %v4054 = vld [vmem:[%s3923 + $0x208] sm:$0xf]
        %v4055 = vld [vmem:[%s3923 + $0x20c] sm:$0xf]
        %v4056 = vld [vmem:[%s3923 + $0x210] sm:$0xf]
        %v4057 = vld [vmem:[%s3923 + $0x214] sm:$0xf]
        %v4058 = vld [vmem:[%s3923 + $0x218] sm:$0xf]
        %v4059 = vld [vmem:[%s3923 + $0x21c] sm:$0xf]
        %v4060 = vld [vmem:[%s3923 + $0x220] sm:$0xf]
        %v4061 = vld [vmem:[%s3923 + $0x224] sm:$0xf]
        %v4062 = vld [vmem:[%s3923 + $0x228] sm:$0xf]
        %v4063 = vld [vmem:[%s3923 + $0x22c] sm:$0xf]
        %v4064 = vld [vmem:[%s3923 + $0x230] sm:$0xf]
        %v4065 = vld [vmem:[%s3923 + $0x234] sm:$0xf]
        %v4066 = vld [vmem:[%s3923 + $0x238] sm:$0xf]
        %v4067 = vld [vmem:[%s3923 + $0x23c] sm:$0xf]
        %s4068 = scalar_lea.vmem [#allocation9], 3
        %v4069 = vld [vmem:[%s4068] sm:$0x1]
        %v4071 = vlaneseq
        %v4072 = vshrl.u32 %v4071, 7
        %v4073 = vsub.s32 0, %v4072
        %v4074 = vrot.slane %v4069, %v4073
        %v4220 = vunpack.c.l.b16 %v3924
        %v4221 = vunpack.c.l.b16 %v3925
        %v4222 = vunpack.c.l.b16 %v3926
        %v4223 = vunpack.c.l.b16 %v3927
        %v4224 = vunpack.c.l.b16 %v3928
        %v4225 = vunpack.c.l.b16 %v3929
        %v4226 = vunpack.c.l.b16 %v3930
        %v4227 = vunpack.c.l.b16 %v3931
        %v4228 = vunpack.c.l.b16 %v3932
        %v4229 = vunpack.c.l.b16 %v3933
        %v4230 = vunpack.c.l.b16 %v3934
        %v4231 = vunpack.c.l.b16 %v3935
        %v4232 = vunpack.c.l.b16 %v3936
        %v4233 = vunpack.c.l.b16 %v3937
        %v4234 = vunpack.c.l.b16 %v3938
        %v4235 = vunpack.c.l.b16 %v3939
        %v4236 = vunpack.c.l.b16 %v3940
        %v4237 = vunpack.c.l.b16 %v3941
        %v4238 = vunpack.c.l.b16 %v3942
        %v4239 = vunpack.c.l.b16 %v3943
        %v4240 = vunpack.c.l.b16 %v3944
        %v4241 = vunpack.c.l.b16 %v3945
        %v4242 = vunpack.c.l.b16 %v3946
        %v4243 = vunpack.c.l.b16 %v3947
        %v4244 = vunpack.c.l.b16 %v3948
        %v4245 = vunpack.c.l.b16 %v3949
        %v4246 = vunpack.c.l.b16 %v3950
        %v4247 = vunpack.c.l.b16 %v3951
        %v4248 = vunpack.c.l.b16 %v3952
        %v4249 = vunpack.c.l.b16 %v3953
        %v4250 = vunpack.c.l.b16 %v3954
        %v4251 = vunpack.c.l.b16 %v3955
        %v4252 = vunpack.c.l.b16 %v3956
        %v4253 = vunpack.c.l.b16 %v3957
        %v4254 = vunpack.c.l.b16 %v3958
        %v4255 = vunpack.c.l.b16 %v3959
        %v4256 = vunpack.c.l.b16 %v3960
        %v4257 = vunpack.c.l.b16 %v3961
        %v4258 = vunpack.c.l.b16 %v3962
        %v4259 = vunpack.c.l.b16 %v3963
        %v4260 = vunpack.c.l.b16 %v3964
        %v4261 = vunpack.c.l.b16 %v3965
        %v4262 = vunpack.c.l.b16 %v3966
        %v4263 = vunpack.c.l.b16 %v3967
        %v4264 = vunpack.c.l.b16 %v3968
        %v4265 = vunpack.c.l.b16 %v3969
        %v4266 = vunpack.c.l.b16 %v3970
        %v4267 = vunpack.c.l.b16 %v3971
        %v4268 = vunpack.c.l.b16 %v3972
        %v4269 = vunpack.c.l.b16 %v3973
        %v4270 = vunpack.c.l.b16 %v3974
        %v4271 = vunpack.c.l.b16 %v3975
        %v4272 = vunpack.c.l.b16 %v3976
        %v4273 = vunpack.c.l.b16 %v3977
        %v4274 = vunpack.c.l.b16 %v3978
        %v4275 = vunpack.c.l.b16 %v3979
        %v4276 = vunpack.c.l.b16 %v3980
        %v4277 = vunpack.c.l.b16 %v3981
        %v4278 = vunpack.c.l.b16 %v3982
        %v4279 = vunpack.c.l.b16 %v3983
        %v4280 = vunpack.c.l.b16 %v3984
        %v4281 = vunpack.c.l.b16 %v3985
        %v4282 = vunpack.c.l.b16 %v3986
        %v4283 = vunpack.c.l.b16 %v3987
        %v4284 = vunpack.c.l.b16 %v3988
        %v4285 = vunpack.c.l.b16 %v3989
        %v4286 = vunpack.c.l.b16 %v3990
        %v4287 = vunpack.c.l.b16 %v3991
        %v4288 = vunpack.c.l.b16 %v3992
        %v4289 = vunpack.c.l.b16 %v3993
        %v4290 = vunpack.c.l.b16 %v3994
        %v4291 = vunpack.c.l.b16 %v3995
        %v4292 = vunpack.c.l.b16 %v3996
        %v4293 = vunpack.c.l.b16 %v3997
        %v4294 = vunpack.c.l.b16 %v3998
        %v4295 = vunpack.c.l.b16 %v3999
        %v4296 = vunpack.c.l.b16 %v4000
        %v4297 = vunpack.c.l.b16 %v4001
        %v4298 = vunpack.c.l.b16 %v4002
        %v4299 = vunpack.c.l.b16 %v4003
        %v4300 = vunpack.c.l.b16 %v4004
        %v4301 = vunpack.c.l.b16 %v4005
        %v4302 = vunpack.c.l.b16 %v4006
        %v4303 = vunpack.c.l.b16 %v4007
        %v4304 = vunpack.c.l.b16 %v4008
        %v4305 = vunpack.c.l.b16 %v4009
        %v4306 = vunpack.c.l.b16 %v4010
        %v4307 = vunpack.c.l.b16 %v4011
        %v4308 = vunpack.c.l.b16 %v4012
        %v4309 = vunpack.c.l.b16 %v4013
        %v4310 = vunpack.c.l.b16 %v4014
        %v4311 = vunpack.c.l.b16 %v4015
        %v4312 = vunpack.c.l.b16 %v4016
        %v4313 = vunpack.c.l.b16 %v4017
        %v4314 = vunpack.c.l.b16 %v4018
        %v4315 = vunpack.c.l.b16 %v4019
        %v4316 = vunpack.c.l.b16 %v4020
        %v4317 = vunpack.c.l.b16 %v4021
        %v4318 = vunpack.c.l.b16 %v4022
        %v4319 = vunpack.c.l.b16 %v4023
        %v4320 = vunpack.c.l.b16 %v4024
        %v4321 = vunpack.c.l.b16 %v4025
        %v4322 = vunpack.c.l.b16 %v4026
        %v4323 = vunpack.c.l.b16 %v4027
        %v4324 = vunpack.c.l.b16 %v4028
        %v4325 = vunpack.c.l.b16 %v4029
        %v4326 = vunpack.c.l.b16 %v4030
        %v4327 = vunpack.c.l.b16 %v4031
        %v4328 = vunpack.c.l.b16 %v4032
        %v4329 = vunpack.c.l.b16 %v4033
        %v4330 = vunpack.c.l.b16 %v4034
        %v4331 = vunpack.c.l.b16 %v4035
        %v4332 = vunpack.c.l.b16 %v4036
        %v4333 = vunpack.c.l.b16 %v4037
        %v4334 = vunpack.c.l.b16 %v4038
        %v4335 = vunpack.c.l.b16 %v4039
        %v4336 = vunpack.c.l.b16 %v4040
        %v4337 = vunpack.c.l.b16 %v4041
        %v4338 = vunpack.c.l.b16 %v4042
        %v4339 = vunpack.c.l.b16 %v4043
        %v4340 = vunpack.c.l.b16 %v4044
        %v4341 = vunpack.c.l.b16 %v4045
        %v4342 = vunpack.c.l.b16 %v4046
        %v4343 = vunpack.c.l.b16 %v4047
        %v4344 = vunpack.c.l.b16 %v4048
        %v4345 = vunpack.c.l.b16 %v4049
        %v4346 = vunpack.c.l.b16 %v4050
        %v4347 = vunpack.c.l.b16 %v4051
        %v4348 = vunpack.c.l.b16 %v4052
        %v4349 = vunpack.c.l.b16 %v4053
        %v4350 = vunpack.c.l.b16 %v4054
        %v4351 = vunpack.c.l.b16 %v4055
        %v4352 = vunpack.c.l.b16 %v4056
        %v4353 = vunpack.c.l.b16 %v4057
        %v4354 = vunpack.c.l.b16 %v4058
        %v4355 = vunpack.c.l.b16 %v4059
        %v4356 = vunpack.c.l.b16 %v4060
        %v4357 = vunpack.c.l.b16 %v4061
        %v4358 = vunpack.c.l.b16 %v4062
        %v4359 = vunpack.c.l.b16 %v4063
        %v4360 = vunpack.c.l.b16 %v4064
        %v4361 = vunpack.c.l.b16 %v4065
        %v4362 = vunpack.c.l.b16 %v4066
        %v4363 = vunpack.c.l.b16 %v4067
        %v4364 = vpack.c.b16 %v4221, %v4220
        %v4365 = vpack.c.b16 %v4223, %v4222
        %v4366 = vpack.c.b16 %v4225, %v4224
        %v4367 = vpack.c.b16 %v4227, %v4226
        %v4368 = vpack.c.b16 %v4229, %v4228
        %v4369 = vpack.c.b16 %v4231, %v4230
        %v4370 = vpack.c.b16 %v4233, %v4232
        %v4371 = vpack.c.b16 %v4235, %v4234
        %v4372 = vpack.c.b16 %v4237, %v4236
        %v4373 = vpack.c.b16 %v4239, %v4238
        %v4374 = vpack.c.b16 %v4241, %v4240
        %v4375 = vpack.c.b16 %v4243, %v4242
        %v4376 = vpack.c.b16 %v4245, %v4244
        %v4377 = vpack.c.b16 %v4247, %v4246
        %v4378 = vpack.c.b16 %v4249, %v4248
        %v4379 = vpack.c.b16 %v4251, %v4250
        %v4380 = vpack.c.b16 %v4253, %v4252
        %v4381 = vpack.c.b16 %v4255, %v4254
        %v4382 = vpack.c.b16 %v4257, %v4256
        %v4383 = vpack.c.b16 %v4259, %v4258
        %v4384 = vpack.c.b16 %v4261, %v4260
        %v4385 = vpack.c.b16 %v4263, %v4262
        %v4386 = vpack.c.b16 %v4265, %v4264
        %v4387 = vpack.c.b16 %v4267, %v4266
        %v4388 = vpack.c.b16 %v4269, %v4268
        %v4389 = vpack.c.b16 %v4271, %v4270
        %v4390 = vpack.c.b16 %v4273, %v4272
        %v4391 = vpack.c.b16 %v4275, %v4274
        %v4392 = vpack.c.b16 %v4277, %v4276
        %v4393 = vpack.c.b16 %v4279, %v4278
        %v4394 = vpack.c.b16 %v4281, %v4280
        %v4395 = vpack.c.b16 %v4283, %v4282
        %v4396 = vpack.c.b16 %v4285, %v4284
        %v4397 = vpack.c.b16 %v4287, %v4286
        %v4398 = vpack.c.b16 %v4289, %v4288
        %v4399 = vpack.c.b16 %v4291, %v4290
        %v4400 = vpack.c.b16 %v4293, %v4292
        %v4401 = vpack.c.b16 %v4295, %v4294
        %v4402 = vpack.c.b16 %v4297, %v4296
        %v4403 = vpack.c.b16 %v4299, %v4298
        %v4404 = vpack.c.b16 %v4301, %v4300
        %v4405 = vpack.c.b16 %v4303, %v4302
        %v4406 = vpack.c.b16 %v4305, %v4304
        %v4407 = vpack.c.b16 %v4307, %v4306
        %v4408 = vpack.c.b16 %v4309, %v4308
        %v4409 = vpack.c.b16 %v4311, %v4310
        %v4410 = vpack.c.b16 %v4313, %v4312
        %v4411 = vpack.c.b16 %v4315, %v4314
        %v4412 = vpack.c.b16 %v4317, %v4316
        %v4413 = vpack.c.b16 %v4319, %v4318
        %v4414 = vpack.c.b16 %v4321, %v4320
        %v4415 = vpack.c.b16 %v4323, %v4322
        %v4416 = vpack.c.b16 %v4325, %v4324
        %v4417 = vpack.c.b16 %v4327, %v4326
        %v4418 = vpack.c.b16 %v4329, %v4328
        %v4419 = vpack.c.b16 %v4331, %v4330
        %v4420 = vpack.c.b16 %v4333, %v4332
        %v4421 = vpack.c.b16 %v4335, %v4334
        %v4422 = vpack.c.b16 %v4337, %v4336
        %v4423 = vpack.c.b16 %v4339, %v4338
        %v4424 = vpack.c.b16 %v4341, %v4340
        %v4425 = vpack.c.b16 %v4343, %v4342
        %v4426 = vpack.c.b16 %v4345, %v4344
        %v4427 = vpack.c.b16 %v4347, %v4346
        %v4428 = vpack.c.b16 %v4349, %v4348
        %v4429 = vpack.c.b16 %v4351, %v4350
        %v4430 = vpack.c.b16 %v4353, %v4352
        %v4431 = vpack.c.b16 %v4355, %v4354
        %v4432 = vpack.c.b16 %v4357, %v4356
        %v4433 = vpack.c.b16 %v4359, %v4358
        %v4434 = vpack.c.b16 %v4361, %v4360
        %v4435 = vpack.c.b16 %v4363, %v4362
        %4508 = vmatprep.subr.bf16.mxu0 0
        %4509 = vmatpush1.bf16.msra.mxu0 %v4371
        %4510 = vmatprep.subr.bf16.mxu0 0
        %4511 = vmatpush1.bf16.msra.mxu0 %v4370
        %4512 = vmatprep.subr.bf16.mxu0 0
        %4513 = vmatpush1.bf16.msra.mxu0 %v4369
        %4514 = vmatprep.subr.bf16.mxu0 0
        %4515 = vmatpush1.bf16.msra.mxu0 %v4368
        %4516 = vmatprep.subr.bf16.mxu0 0
        %4517 = vmatpush1.bf16.msra.mxu0 %v4367
        %4518 = vmatprep.subr.bf16.mxu0 0
        %4519 = vmatpush1.bf16.msra.mxu0 %v4366
        %4520 = vmatprep.subr.bf16.mxu0 0
        %4521 = vmatpush1.bf16.msra.mxu0 %v4365
        %4522 = vmatprep.subr.bf16.mxu0 0
        %4523 = vmatpush1.bf16.msra.mxu0 %v4364
        %4524 = vmatprep.subr.bf16.mxu0 0
        %4525 = vmatpush2.bf16.msra.mxu0 %v4379
        %4526 = vmatprep.subr.bf16.mxu0 0
        %4527 = vmatpush2.bf16.msra.mxu0 %v4378
        %4528 = vmatprep.subr.bf16.mxu0 0
        %4529 = vmatpush2.bf16.msra.mxu0 %v4377
        %4530 = vmatprep.subr.bf16.mxu0 0
        %4531 = vmatpush2.bf16.msra.mxu0 %v4376
        %4532 = vmatprep.subr.bf16.mxu0 0
        %4533 = vmatpush2.bf16.msra.mxu0 %v4375
        %4534 = vmatprep.subr.bf16.mxu0 0
        %4535 = vmatpush2.bf16.msra.mxu0 %v4374
        %4536 = vmatprep.subr.bf16.mxu0 0
        %4537 = vmatpush2.bf16.msra.mxu0 %v4373
        %4538 = vmatprep.subr.bf16.mxu0 0
        %4539 = vmatpush2.bf16.msra.mxu0 %v4372
        %4540 = vmatprep.mubr.bf16.mxu0 %v3743
        %4541 = vmatmul.mubr.bf16.gmra.mxu0 %v3750
        %v4542 = vpop.f32.mrf.mxu0
        %v4543 = vadd.f32 %v4074, %v4542
        %v4544 = vpop.f32.mrf.mxu0
        %v4545 = vpop.f32.mrf.mxu0
        %v4546 = vadd.f32 %v4074, %v4545
        %v4547 = vpop.f32.mrf.mxu0
        %4548 = vmatprep.mubr.bf16.mxu0 %v3744
        %4549 = vmatmul.mubr.bf16.gmra.mxu0 %v3753
        %v4550 = vpop.f32.mrf.mxu0
        %v4551 = vadd.f32 %v4074, %v4550
        %v4552 = vpop.f32.mrf.mxu0
        %v4553 = vpop.f32.mrf.mxu0
        %v4554 = vadd.f32 %v4074, %v4553
        %v4555 = vpop.f32.mrf.mxu0
        %4556 = vdwg.mxu0
        %4557 = vmatprep.subr.bf16.mxu0 0
        %4558 = vmatpush1.bf16.msra.mxu0 %v4387
        %4559 = vmatprep.subr.bf16.mxu0 0
        %4560 = vmatpush1.bf16.msra.mxu0 %v4386
        %4561 = vmatprep.subr.bf16.mxu0 0
        %4562 = vmatpush1.bf16.msra.mxu0 %v4385
        %4563 = vmatprep.subr.bf16.mxu0 0
        %4564 = vmatpush1.bf16.msra.mxu0 %v4384
        %4565 = vmatprep.subr.bf16.mxu0 0
        %4566 = vmatpush1.bf16.msra.mxu0 %v4383
        %4567 = vmatprep.subr.bf16.mxu0 0
        %4568 = vmatpush1.bf16.msra.mxu0 %v4382
        %4569 = vmatprep.subr.bf16.mxu0 0
        %4570 = vmatpush1.bf16.msra.mxu0 %v4381
        %4571 = vmatprep.subr.bf16.mxu0 0
        %4572 = vmatpush1.bf16.msra.mxu0 %v4380
        %4573 = vmatprep.subr.bf16.mxu0 0
        %4574 = vmatpush2.bf16.msra.mxu0 %v4395
        %4575 = vmatprep.subr.bf16.mxu0 0
        %4576 = vmatpush2.bf16.msra.mxu0 %v4394
        %4577 = vmatprep.subr.bf16.mxu0 0
        %4578 = vmatpush2.bf16.msra.mxu0 %v4393
        %4579 = vmatprep.subr.bf16.mxu0 0
        %4580 = vmatpush2.bf16.msra.mxu0 %v4392
        %4581 = vmatprep.subr.bf16.mxu0 0
        %4582 = vmatpush2.bf16.msra.mxu0 %v4391
        %4583 = vmatprep.subr.bf16.mxu0 0
        %4584 = vmatpush2.bf16.msra.mxu0 %v4390
        %4585 = vmatprep.subr.bf16.mxu0 0
        %4586 = vmatpush2.bf16.msra.mxu0 %v4389
        %4587 = vmatprep.subr.bf16.mxu0 0
        %4588 = vmatpush2.bf16.msra.mxu0 %v4388
        %4589 = vmatprep.mubr.bf16.mxu0 %v3826
        %4590 = vmatmul.mubr.bf16.gmra.mxu0 %v3760
        %v4591 = vpop.f32.mrf.mxu0
        %v4592 = vadd.f32 %v4543, %v4591
        %v4593 = vpop.f32.mrf.mxu0
        %v4594 = vpop.f32.mrf.mxu0
        %v4595 = vadd.f32 %v4546, %v4594
        %v4596 = vpop.f32.mrf.mxu0
        %4597 = vmatprep.mubr.bf16.mxu0 %v3829
        %4598 = vmatmul.mubr.bf16.gmra.mxu0 %v3763
        %v4599 = vpop.f32.mrf.mxu0
        %v4600 = vadd.f32 %v4551, %v4599
        %v4601 = vpop.f32.mrf.mxu0
        %v4602 = vpop.f32.mrf.mxu0
        %v4603 = vadd.f32 %v4554, %v4602
        %v4604 = vpop.f32.mrf.mxu0
        %4605 = vdwg.mxu0
        %4606 = vmatprep.subr.bf16.mxu0 0
        %4607 = vmatpush1.bf16.msra.mxu0 %v4403
        %4608 = vmatprep.subr.bf16.mxu0 0
        %4609 = vmatpush1.bf16.msra.mxu0 %v4402
        %4610 = vmatprep.subr.bf16.mxu0 0
        %4611 = vmatpush1.bf16.msra.mxu0 %v4401
        %4612 = vmatprep.subr.bf16.mxu0 0
        %4613 = vmatpush1.bf16.msra.mxu0 %v4400
        %4614 = vmatprep.subr.bf16.mxu0 0
        %4615 = vmatpush1.bf16.msra.mxu0 %v4399
        %4616 = vmatprep.subr.bf16.mxu0 0
        %4617 = vmatpush1.bf16.msra.mxu0 %v4398
        %4618 = vmatprep.subr.bf16.mxu0 0
        %4619 = vmatpush1.bf16.msra.mxu0 %v4397
        %4620 = vmatprep.subr.bf16.mxu0 0
        %4621 = vmatpush1.bf16.msra.mxu0 %v4396
        %4622 = vmatprep.subr.bf16.mxu0 0
        %4623 = vmatpush2.bf16.msra.mxu0 %v4411
        %4624 = vmatprep.subr.bf16.mxu0 0
        %4625 = vmatpush2.bf16.msra.mxu0 %v4410
        %4626 = vmatprep.subr.bf16.mxu0 0
        %4627 = vmatpush2.bf16.msra.mxu0 %v4409
        %4628 = vmatprep.subr.bf16.mxu0 0
        %4629 = vmatpush2.bf16.msra.mxu0 %v4408
        %4630 = vmatprep.subr.bf16.mxu0 0
        %4631 = vmatpush2.bf16.msra.mxu0 %v4407
        %4632 = vmatprep.subr.bf16.mxu0 0
        %4633 = vmatpush2.bf16.msra.mxu0 %v4406
        %4634 = vmatprep.subr.bf16.mxu0 0
        %4635 = vmatpush2.bf16.msra.mxu0 %v4405
        %4636 = vmatprep.subr.bf16.mxu0 0
        %4637 = vmatpush2.bf16.msra.mxu0 %v4404
        %4638 = vmatprep.mubr.bf16.mxu0 %v3836
        %4639 = vmatmul.mubr.bf16.gmra.mxu0 %v3819
        %v4640 = vpop.f32.mrf.mxu0
        %v4641 = vadd.f32 %v4592, %v4640
        %v4642 = vpop.f32.mrf.mxu0
        %v4643 = vpop.f32.mrf.mxu0
        %v4644 = vadd.f32 %v4595, %v4643
        %v4645 = vpop.f32.mrf.mxu0
        %4646 = vmatprep.mubr.bf16.mxu0 %v3839
        %4647 = vmatmul.mubr.bf16.gmra.mxu0 %v3820
        %v4648 = vpop.f32.mrf.mxu0
        %v4649 = vadd.f32 %v4600, %v4648
        %v4650 = vpop.f32.mrf.mxu0
        %v4651 = vpop.f32.mrf.mxu0
        %v4652 = vadd.f32 %v4603, %v4651
        %v4653 = vpop.f32.mrf.mxu0
        %4654 = vdwg.mxu0
        %4655 = vmatprep.subr.bf16.mxu0 0
        %4656 = vmatpush1.bf16.msra.mxu0 %v4419
        %4657 = vmatprep.subr.bf16.mxu0 0
        %4658 = vmatpush1.bf16.msra.mxu0 %v4418
        %4659 = vmatprep.subr.bf16.mxu0 0
        %4660 = vmatpush1.bf16.msra.mxu0 %v4417
        %4661 = vmatprep.subr.bf16.mxu0 0
        %4662 = vmatpush1.bf16.msra.mxu0 %v4416
        %4663 = vmatprep.subr.bf16.mxu0 0
        %4664 = vmatpush1.bf16.msra.mxu0 %v4415
        %4665 = vmatprep.subr.bf16.mxu0 0
        %4666 = vmatpush1.bf16.msra.mxu0 %v4414
        %4667 = vmatprep.subr.bf16.mxu0 0
        %4668 = vmatpush1.bf16.msra.mxu0 %v4413
        %4669 = vmatprep.subr.bf16.mxu0 0
        %4670 = vmatpush1.bf16.msra.mxu0 %v4412
        %4671 = vmatprep.subr.bf16.mxu0 0
        %4672 = vmatpush2.bf16.msra.mxu0 %v4427
        %4673 = vmatprep.subr.bf16.mxu0 0
        %4674 = vmatpush2.bf16.msra.mxu0 %v4426
        %4675 = vmatprep.subr.bf16.mxu0 0
        %4676 = vmatpush2.bf16.msra.mxu0 %v4425
        %4677 = vmatprep.subr.bf16.mxu0 0
        %4678 = vmatpush2.bf16.msra.mxu0 %v4424
        %4679 = vmatprep.subr.bf16.mxu0 0
        %4680 = vmatpush2.bf16.msra.mxu0 %v4423
        %4681 = vmatprep.subr.bf16.mxu0 0
        %4682 = vmatpush2.bf16.msra.mxu0 %v4422
        %4683 = vmatprep.subr.bf16.mxu0 0
        %4684 = vmatpush2.bf16.msra.mxu0 %v4421
        %4685 = vmatprep.subr.bf16.mxu0 0
        %4686 = vmatpush2.bf16.msra.mxu0 %v4420
        %4687 = vmatprep.mubr.bf16.mxu0 %v3895
        %4688 = vmatmul.mubr.bf16.gmra.mxu0 %v3902
        %v4689 = vpop.f32.mrf.mxu0
        %v4690 = vadd.f32 %v4641, %v4689
        %v4691 = vpop.f32.mrf.mxu0
        %v4692 = vpop.f32.mrf.mxu0
        %v4693 = vadd.f32 %v4644, %v4692
        %v4694 = vpop.f32.mrf.mxu0
        %4695 = vmatprep.mubr.bf16.mxu0 %v3896
        %4696 = vmatmul.mubr.bf16.gmra.mxu0 %v3905
        %v4697 = vpop.f32.mrf.mxu0
        %v4698 = vadd.f32 %v4649, %v4697
        %v4699 = vpop.f32.mrf.mxu0
        %v4700 = vpop.f32.mrf.mxu0
        %v4701 = vadd.f32 %v4652, %v4700
        %v4702 = vpop.f32.mrf.mxu0
        %4703 = vdwg.mxu0
        %4704 = vmatprep.subr.bf16.mxu0 0
        %4705 = vmatpush1.bf16.msra.mxu0 %v4435
        %4706 = vmatprep.subr.bf16.mxu0 0
        %4707 = vmatpush1.bf16.msra.mxu0 %v4434
        %4708 = vmatprep.subr.bf16.mxu0 0
        %4709 = vmatpush1.bf16.msra.mxu0 %v4433
        %4710 = vmatprep.subr.bf16.mxu0 0
        %4711 = vmatpush1.bf16.msra.mxu0 %v4432
        %4712 = vmatprep.subr.bf16.mxu0 0
        %4713 = vmatpush1.bf16.msra.mxu0 %v4431
        %4714 = vmatprep.subr.bf16.mxu0 0
        %4715 = vmatpush1.bf16.msra.mxu0 %v4430
        %4716 = vmatprep.subr.bf16.mxu0 0
        %4717 = vmatpush1.bf16.msra.mxu0 %v4429
        %4718 = vmatprep.subr.bf16.mxu0 0
        %4719 = vmatpush1.bf16.msra.mxu0 %v4428
        %4720 = vmatprep.subr.bf16.mxu0 0
        %4721 = vmatpush2.bf16.msra.mxu0 0
        %4722 = vmatprep.subr.bf16.mxu0 0
        %4723 = vmatpush2.bf16.msra.mxu0 0
        %4724 = vmatprep.subr.bf16.mxu0 0
        %4725 = vmatpush2.bf16.msra.mxu0 0
        %4726 = vmatprep.subr.bf16.mxu0 0
        %4727 = vmatpush2.bf16.msra.mxu0 0
        %4728 = vmatprep.subr.bf16.mxu0 0
        %4729 = vmatpush2.bf16.msra.mxu0 0
        %4730 = vmatprep.subr.bf16.mxu0 0
        %4731 = vmatpush2.bf16.msra.mxu0 0
        %4732 = vmatprep.subr.bf16.mxu0 0
        %4733 = vmatpush2.bf16.msra.mxu0 0
        %4734 = vmatprep.subr.bf16.mxu0 0
        %4735 = vmatpush2.bf16.msra.mxu0 0
        %4736 = vmatprep.mubr.bf16.mxu0 0
        %4737 = vmatmul.mubr.bf16.gmra.mxu0 %v3912
        %v4738 = vpop.f32.mrf.mxu0
        %v4739 = vadd.f32 %v4690, %v4738
        %v4740 = vpop.f32.mrf.mxu0
        %v4741 = vpop.f32.mrf.mxu0
        %v4742 = vadd.f32 %v4693, %v4741
        %v4743 = vpop.f32.mrf.mxu0
        %4744 = vmatprep.mubr.bf16.mxu0 0
        %4745 = vmatmul.mubr.bf16.gmra.mxu0 %v3915
        %v4746 = vpop.f32.mrf.mxu0
        %v4747 = vadd.f32 %v4698, %v4746
        %v4748 = vpop.f32.mrf.mxu0
        %v4749 = vpop.f32.mrf.mxu0
        %v4750 = vadd.f32 %v4701, %v4749
        %v4751 = vpop.f32.mrf.mxu0
        %4752 = vdwg.mxu0
        %vm4753 = vcmp.ge.f32.partialorder %v4739, 0.0
        %vm4754 = vcmp.ge.f32.partialorder %v4742, 0.0
        %vm4755 = vcmp.ge.f32.partialorder %v4747, 0.0
        %vm4756 = vcmp.ge.f32.partialorder %v4750, 0.0
        %v4757 = vmul.f32 %v4739, 0.01
        %v4758 = vmul.f32 %v4742, 0.01
        %v4759 = vmul.f32 %v4747, 0.01
        %v4760 = vmul.f32 %v4750, 0.01
        %v4761 = vsel %vm4753, %v4739, %v4757
        %v4762 = vsel %vm4754, %v4742, %v4758
        %v4763 = vsel %vm4755, %v4747, %v4759
        %v4764 = vsel %vm4756, %v4750, %v4760
        %v4765 = vpack.c.bf16 %v4762, %v4761
        %v4766 = vpack.c.bf16 %v4764, %v4763
        %v4769 = vunpack.c.l.b16 %v4765
        %v4770 = vunpack.c.h.b16 %v4765
        %v4771 = vunpack.c.l.b16 %v4766
        %v4772 = vunpack.c.h.b16 %v4766
        %v4773 = vpack.c.b16 %v4769, %v4769
        %v4774 = vpack.c.b16 %v4770, %v4770
        %v4775 = vpack.c.b16 %v4771, %v4771
        %v4776 = vpack.c.b16 %v4772, %v4772
        %v4778 = vshrl.u32 %v4773, 16
        %v4780 = vrot.slane %v4778, 6
        %v4781 = vshll.u32 %v4773, 16
        %v4783 = vrot.slane %v4781, 7
        %v4784 = vor.u32 %v4780, %v4783
        %v4785 = vrot.slane %v4784, 4
        %v4787 = vshrl.u32 %v4774, 16
        %v4789 = vrot.slane %v4787, 6
        %v4790 = vshll.u32 %v4774, 16
        %v4792 = vrot.slane %v4790, 7
        %v4793 = vor.u32 %v4789, %v4792
        %v4794 = vsel %vm269, %v4785, %v4793
        %v4795 = vrot.slane %v4793, 4
        %v4797 = vshrl.u32 %v4775, 16
        %v4799 = vrot.slane %v4797, 6
        %v4800 = vshll.u32 %v4775, 16
        %v4802 = vrot.slane %v4800, 7
        %v4803 = vor.u32 %v4799, %v4802
        %v4804 = vrot.slane %v4803, 4
        %v4806 = vshrl.u32 %v4776, 16
        %v4808 = vrot.slane %v4806, 6
        %v4809 = vshll.u32 %v4776, 16
        %v4811 = vrot.slane %v4809, 7
        %v4812 = vor.u32 %v4808, %v4811
        %v4813 = vsel %vm269, %v4804, %v4812
        %v4814 = vrot.slane %v4812, 4
        %v4821 = vld [vmem:[#allocation2] sm:$0xe]
        %v4822 = vsel %vm315, %v4784, %v4821
        %4823 = vst [vmem:[#allocation2] sm:$0xe] %v4822
        %4824 = vst [vmem:[#allocation2 + $0x4] sm:$0xf] %v4794
        %v4825 = vld [vmem:[#allocation2 + $0x8] sm:$0x3]
        %v4826 = vsel %vm224, %v4795, %v4825
        %4827 = vst [vmem:[#allocation2 + $0x8] sm:$0x3] %v4826
        %v4828 = vld [vmem:[#allocation2 + $0xc] sm:$0xe]
        %v4829 = vsel %vm315, %v4803, %v4828
        %4830 = vst [vmem:[#allocation2 + $0xc] sm:$0xe] %v4829
        %4831 = vst [vmem:[#allocation2 + $0x10] sm:$0xf] %v4813
        %v4832 = vld [vmem:[#allocation2 + $0x14] sm:$0x3]
        %v4833 = vsel %vm224, %v4814, %v4832
        %4834 = vst [vmem:[#allocation2 + $0x14] sm:$0x3] %v4833
        %v4835 = vld [vmem:[#allocation2] sm:$0xe]
        %v4836 = vld [vmem:[#allocation2 + $0x4] sm:$0xf]
        %v4837 = vld [vmem:[#allocation2 + $0x8] sm:$0x1]
        %v4838 = vld [vmem:[#allocation2 + $0xc] sm:$0xe]
        %v4839 = vld [vmem:[#allocation2 + $0x10] sm:$0xf]
        %v4840 = vld [vmem:[#allocation2 + $0x14] sm:$0x1]
        %v4847 = vrot.slane %v4835, 5
        %v4848 = vrot.slane %v4847, 4
        %v4849 = vrot.slane %v4836, 5
        %v4850 = vsel %vm344, %v4848, %v4849
        %v4851 = vrot.slane %v4849, 4
        %v4852 = vrot.slane %v4837, 5
        %v4853 = vsel %vm344, %v4851, %v4852
        %v4854 = vrot.slane %v4838, 5
        %v4855 = vrot.slane %v4854, 4
        %v4856 = vrot.slane %v4839, 5
        %v4857 = vsel %vm344, %v4855, %v4856
        %v4858 = vrot.slane %v4856, 4
        %v4859 = vrot.slane %v4840, 5
        %v4860 = vsel %vm344, %v4858, %v4859
        %v4861 = vunpack.c.l.b16 %v4850
        %v4862 = vunpack.c.l.b16 %v4853
        %v4863 = vunpack.c.l.b16 %v4857
        %v4864 = vunpack.c.l.b16 %v4860
        %v4865 = vpack.c.b16 %v4862, %v4861
        %v4866 = vpack.c.b16 %v4864, %v4863
        %4867 = vrot.lane.b32.xlu0 %v4865, 8
        %v4868 = vpop.permute.xlu0 %4867
        %4869 = vrot.lane.b32.xlu0 %v4866, 8
        %v4870 = vpop.permute.xlu0 %4869
        %v4872 = vsel %vm369, 0, %v4868
        %v4875 = vsel %vm369, 0, %v4870
        %4877 = vrot.lane.b32.xlu0 %v4865, 120
        %v4878 = vpop.permute.xlu0 %4877
        %4879 = vrot.lane.b32.xlu0 %v4866, 120
        %v4880 = vpop.permute.xlu0 %4879
        %v4882 = vsel %vm381, %v4878, 0
        %v4885 = vsel %vm381, %v4880, 0
        %v4887 = vld [vmem:[#allocation2 + $0x8] sm:$0x3]
        %v4888 = vld [vmem:[#allocation2 + $0x14] sm:$0x3]
        %v4890 = vshrl.u32 %v4835, 16
        %v4892 = vrot.slane %v4890, 5
        %v4893 = vshll.u32 %v4835, 16
        %v4895 = vrot.slane %v4893, 6
        %v4896 = vor.u32 %v4892, %v4895
        %v4897 = vrot.slane %v4896, 4
        %v4899 = vshrl.u32 %v4836, 16
        %v4901 = vrot.slane %v4899, 5
        %v4902 = vshll.u32 %v4836, 16
        %v4904 = vrot.slane %v4902, 6
        %v4905 = vor.u32 %v4901, %v4904
        %v4906 = vsel %vm392, %v4897, %v4905
        %v4907 = vrot.slane %v4905, 4
        %v4909 = vshrl.u32 %v4887, 16
        %v4911 = vrot.slane %v4909, 5
        %v4912 = vshll.u32 %v4887, 16
        %v4914 = vrot.slane %v4912, 6
        %v4915 = vor.u32 %v4911, %v4914
        %v4916 = vsel %vm392, %v4907, %v4915
        %v4918 = vshrl.u32 %v4838, 16
        %v4920 = vrot.slane %v4918, 5
        %v4921 = vshll.u32 %v4838, 16
        %v4923 = vrot.slane %v4921, 6
        %v4924 = vor.u32 %v4920, %v4923
        %v4925 = vrot.slane %v4924, 4
        %v4927 = vshrl.u32 %v4839, 16
        %v4929 = vrot.slane %v4927, 5
        %v4930 = vshll.u32 %v4839, 16
        %v4932 = vrot.slane %v4930, 6
        %v4933 = vor.u32 %v4929, %v4932
        %v4934 = vsel %vm392, %v4925, %v4933
        %v4935 = vrot.slane %v4933, 4
        %v4937 = vshrl.u32 %v4888, 16
        %v4939 = vrot.slane %v4937, 5
        %v4940 = vshll.u32 %v4888, 16
        %v4942 = vrot.slane %v4940, 6
        %v4943 = vor.u32 %v4939, %v4942
        %v4944 = vsel %vm392, %v4935, %v4943
        %v4945 = vunpack.c.l.b16 %v4906
        %v4946 = vunpack.c.l.b16 %v4916
        %v4947 = vunpack.c.l.b16 %v4934
        %v4948 = vunpack.c.l.b16 %v4944
        %v4949 = vpack.c.b16 %v4946, %v4945
        %v4950 = vpack.c.b16 %v4948, %v4947
        %4951 = vrot.lane.b32.xlu0 %v4949, 8
        %v4952 = vpop.permute.xlu0 %4951
        %4953 = vrot.lane.b32.xlu0 %v4950, 8
        %v4954 = vpop.permute.xlu0 %4953
        %v4956 = vsel %vm369, 0, %v4952
        %v4959 = vsel %vm369, 0, %v4954
        %4961 = vrot.lane.b32.xlu0 %v4949, 120
        %v4962 = vpop.permute.xlu0 %4961
        %4963 = vrot.lane.b32.xlu0 %v4950, 120
        %v4964 = vpop.permute.xlu0 %4963
        %v4966 = vsel %vm381, %v4962, 0
        %v4969 = vsel %vm381, %v4964, 0
        %v4971 = vld [vmem:[#allocation2] sm:$0xc]
        %v4972 = vld [vmem:[#allocation2 + $0xc] sm:$0xc]
        %v4977 = vrot.slane %v4971, 6
        %v4978 = vrot.slane %v4977, 4
        %v4979 = vrot.slane %v4836, 6
        %v4980 = vsel %vm482, %v4978, %v4979
        %v4981 = vrot.slane %v4979, 4
        %v4982 = vrot.slane %v4887, 6
        %v4983 = vsel %vm482, %v4981, %v4982
        %v4984 = vrot.slane %v4972, 6
        %v4985 = vrot.slane %v4984, 4
        %v4986 = vrot.slane %v4839, 6
        %v4987 = vsel %vm482, %v4985, %v4986
        %v4988 = vrot.slane %v4986, 4
        %v4989 = vrot.slane %v4888, 6
        %v4990 = vsel %vm482, %v4988, %v4989
        %v4991 = vunpack.c.l.b16 %v4980
        %v4992 = vunpack.c.l.b16 %v4983
        %v4993 = vunpack.c.l.b16 %v4987
        %v4994 = vunpack.c.l.b16 %v4990
        %v4995 = vpack.c.b16 %v4992, %v4991
        %v4996 = vpack.c.b16 %v4994, %v4993
        %4997 = vrot.lane.b32.xlu0 %v4995, 8
        %v4998 = vpop.permute.xlu0 %4997
        %4999 = vrot.lane.b32.xlu0 %v4996, 8
        %v5000 = vpop.permute.xlu0 %4999
        %v5002 = vsel %vm369, 0, %v4998
        %v5005 = vsel %vm369, 0, %v5000
        %5007 = vrot.lane.b32.xlu0 %v4995, 120
        %v5008 = vpop.permute.xlu0 %5007
        %5009 = vrot.lane.b32.xlu0 %v4996, 120
        %v5010 = vpop.permute.xlu0 %5009
        %v5012 = vsel %vm381, %v5008, 0
        %v5015 = vsel %vm381, %v5010, 0
        %s5023 = scalar_lea.vmem [#allocation7], 2304
        %v5024 = vld [vmem:[%s5023] sm:$0xf]
        %v5025 = vld [vmem:[%s5023 + $0x4] sm:$0xf]
        %v5026 = vld [vmem:[%s5023 + $0x8] sm:$0xf]
        %v5027 = vld [vmem:[%s5023 + $0xc] sm:$0xf]
        %v5028 = vld [vmem:[%s5023 + $0x10] sm:$0xf]
        %v5029 = vld [vmem:[%s5023 + $0x14] sm:$0xf]
        %v5030 = vld [vmem:[%s5023 + $0x18] sm:$0xf]
        %v5031 = vld [vmem:[%s5023 + $0x1c] sm:$0xf]
        %v5032 = vld [vmem:[%s5023 + $0x20] sm:$0xf]
        %v5033 = vld [vmem:[%s5023 + $0x24] sm:$0xf]
        %v5034 = vld [vmem:[%s5023 + $0x28] sm:$0xf]
        %v5035 = vld [vmem:[%s5023 + $0x2c] sm:$0xf]
        %v5036 = vld [vmem:[%s5023 + $0x30] sm:$0xf]
        %v5037 = vld [vmem:[%s5023 + $0x34] sm:$0xf]
        %v5038 = vld [vmem:[%s5023 + $0x38] sm:$0xf]
        %v5039 = vld [vmem:[%s5023 + $0x3c] sm:$0xf]
        %v5040 = vld [vmem:[%s5023 + $0x40] sm:$0xf]
        %v5041 = vld [vmem:[%s5023 + $0x44] sm:$0xf]
        %v5042 = vld [vmem:[%s5023 + $0x48] sm:$0xf]
        %v5043 = vld [vmem:[%s5023 + $0x4c] sm:$0xf]
        %v5044 = vld [vmem:[%s5023 + $0x50] sm:$0xf]
        %v5045 = vld [vmem:[%s5023 + $0x54] sm:$0xf]
        %v5046 = vld [vmem:[%s5023 + $0x58] sm:$0xf]
        %v5047 = vld [vmem:[%s5023 + $0x5c] sm:$0xf]
        %v5048 = vld [vmem:[%s5023 + $0x60] sm:$0xf]
        %v5049 = vld [vmem:[%s5023 + $0x64] sm:$0xf]
        %v5050 = vld [vmem:[%s5023 + $0x68] sm:$0xf]
        %v5051 = vld [vmem:[%s5023 + $0x6c] sm:$0xf]
        %v5052 = vld [vmem:[%s5023 + $0x70] sm:$0xf]
        %v5053 = vld [vmem:[%s5023 + $0x74] sm:$0xf]
        %v5054 = vld [vmem:[%s5023 + $0x78] sm:$0xf]
        %v5055 = vld [vmem:[%s5023 + $0x7c] sm:$0xf]
        %v5056 = vld [vmem:[%s5023 + $0x80] sm:$0xf]
        %v5057 = vld [vmem:[%s5023 + $0x84] sm:$0xf]
        %v5058 = vld [vmem:[%s5023 + $0x88] sm:$0xf]
        %v5059 = vld [vmem:[%s5023 + $0x8c] sm:$0xf]
        %v5060 = vld [vmem:[%s5023 + $0x90] sm:$0xf]
        %v5061 = vld [vmem:[%s5023 + $0x94] sm:$0xf]
        %v5062 = vld [vmem:[%s5023 + $0x98] sm:$0xf]
        %v5063 = vld [vmem:[%s5023 + $0x9c] sm:$0xf]
        %v5064 = vld [vmem:[%s5023 + $0xa0] sm:$0xf]
        %v5065 = vld [vmem:[%s5023 + $0xa4] sm:$0xf]
        %v5066 = vld [vmem:[%s5023 + $0xa8] sm:$0xf]
        %v5067 = vld [vmem:[%s5023 + $0xac] sm:$0xf]
        %v5068 = vld [vmem:[%s5023 + $0xb0] sm:$0xf]
        %v5069 = vld [vmem:[%s5023 + $0xb4] sm:$0xf]
        %v5070 = vld [vmem:[%s5023 + $0xb8] sm:$0xf]
        %v5071 = vld [vmem:[%s5023 + $0xbc] sm:$0xf]
        %v5072 = vld [vmem:[%s5023 + $0xc0] sm:$0xf]
        %v5073 = vld [vmem:[%s5023 + $0xc4] sm:$0xf]
        %v5074 = vld [vmem:[%s5023 + $0xc8] sm:$0xf]
        %v5075 = vld [vmem:[%s5023 + $0xcc] sm:$0xf]
        %v5076 = vld [vmem:[%s5023 + $0xd0] sm:$0xf]
        %v5077 = vld [vmem:[%s5023 + $0xd4] sm:$0xf]
        %v5078 = vld [vmem:[%s5023 + $0xd8] sm:$0xf]
        %v5079 = vld [vmem:[%s5023 + $0xdc] sm:$0xf]
        %v5080 = vld [vmem:[%s5023 + $0xe0] sm:$0xf]
        %v5081 = vld [vmem:[%s5023 + $0xe4] sm:$0xf]
        %v5082 = vld [vmem:[%s5023 + $0xe8] sm:$0xf]
        %v5083 = vld [vmem:[%s5023 + $0xec] sm:$0xf]
        %v5084 = vld [vmem:[%s5023 + $0xf0] sm:$0xf]
        %v5085 = vld [vmem:[%s5023 + $0xf4] sm:$0xf]
        %v5086 = vld [vmem:[%s5023 + $0xf8] sm:$0xf]
        %v5087 = vld [vmem:[%s5023 + $0xfc] sm:$0xf]
        %v5088 = vld [vmem:[%s5023 + $0x100] sm:$0xf]
        %v5089 = vld [vmem:[%s5023 + $0x104] sm:$0xf]
        %v5090 = vld [vmem:[%s5023 + $0x108] sm:$0xf]
        %v5091 = vld [vmem:[%s5023 + $0x10c] sm:$0xf]
        %v5092 = vld [vmem:[%s5023 + $0x110] sm:$0xf]
        %v5093 = vld [vmem:[%s5023 + $0x114] sm:$0xf]
        %v5094 = vld [vmem:[%s5023 + $0x118] sm:$0xf]
        %v5095 = vld [vmem:[%s5023 + $0x11c] sm:$0xf]
        %v5096 = vld [vmem:[%s5023 + $0x120] sm:$0xf]
        %v5097 = vld [vmem:[%s5023 + $0x124] sm:$0xf]
        %v5098 = vld [vmem:[%s5023 + $0x128] sm:$0xf]
        %v5099 = vld [vmem:[%s5023 + $0x12c] sm:$0xf]
        %v5100 = vld [vmem:[%s5023 + $0x130] sm:$0xf]
        %v5101 = vld [vmem:[%s5023 + $0x134] sm:$0xf]
        %v5102 = vld [vmem:[%s5023 + $0x138] sm:$0xf]
        %v5103 = vld [vmem:[%s5023 + $0x13c] sm:$0xf]
        %v5104 = vld [vmem:[%s5023 + $0x140] sm:$0xf]
        %v5105 = vld [vmem:[%s5023 + $0x144] sm:$0xf]
        %v5106 = vld [vmem:[%s5023 + $0x148] sm:$0xf]
        %v5107 = vld [vmem:[%s5023 + $0x14c] sm:$0xf]
        %v5108 = vld [vmem:[%s5023 + $0x150] sm:$0xf]
        %v5109 = vld [vmem:[%s5023 + $0x154] sm:$0xf]
        %v5110 = vld [vmem:[%s5023 + $0x158] sm:$0xf]
        %v5111 = vld [vmem:[%s5023 + $0x15c] sm:$0xf]
        %v5112 = vld [vmem:[%s5023 + $0x160] sm:$0xf]
        %v5113 = vld [vmem:[%s5023 + $0x164] sm:$0xf]
        %v5114 = vld [vmem:[%s5023 + $0x168] sm:$0xf]
        %v5115 = vld [vmem:[%s5023 + $0x16c] sm:$0xf]
        %v5116 = vld [vmem:[%s5023 + $0x170] sm:$0xf]
        %v5117 = vld [vmem:[%s5023 + $0x174] sm:$0xf]
        %v5118 = vld [vmem:[%s5023 + $0x178] sm:$0xf]
        %v5119 = vld [vmem:[%s5023 + $0x17c] sm:$0xf]
        %v5120 = vld [vmem:[%s5023 + $0x180] sm:$0xf]
        %v5121 = vld [vmem:[%s5023 + $0x184] sm:$0xf]
        %v5122 = vld [vmem:[%s5023 + $0x188] sm:$0xf]
        %v5123 = vld [vmem:[%s5023 + $0x18c] sm:$0xf]
        %v5124 = vld [vmem:[%s5023 + $0x190] sm:$0xf]
        %v5125 = vld [vmem:[%s5023 + $0x194] sm:$0xf]
        %v5126 = vld [vmem:[%s5023 + $0x198] sm:$0xf]
        %v5127 = vld [vmem:[%s5023 + $0x19c] sm:$0xf]
        %v5128 = vld [vmem:[%s5023 + $0x1a0] sm:$0xf]
        %v5129 = vld [vmem:[%s5023 + $0x1a4] sm:$0xf]
        %v5130 = vld [vmem:[%s5023 + $0x1a8] sm:$0xf]
        %v5131 = vld [vmem:[%s5023 + $0x1ac] sm:$0xf]
        %v5132 = vld [vmem:[%s5023 + $0x1b0] sm:$0xf]
        %v5133 = vld [vmem:[%s5023 + $0x1b4] sm:$0xf]
        %v5134 = vld [vmem:[%s5023 + $0x1b8] sm:$0xf]
        %v5135 = vld [vmem:[%s5023 + $0x1bc] sm:$0xf]
        %v5136 = vld [vmem:[%s5023 + $0x1c0] sm:$0xf]
        %v5137 = vld [vmem:[%s5023 + $0x1c4] sm:$0xf]
        %v5138 = vld [vmem:[%s5023 + $0x1c8] sm:$0xf]
        %v5139 = vld [vmem:[%s5023 + $0x1cc] sm:$0xf]
        %v5140 = vld [vmem:[%s5023 + $0x1d0] sm:$0xf]
        %v5141 = vld [vmem:[%s5023 + $0x1d4] sm:$0xf]
        %v5142 = vld [vmem:[%s5023 + $0x1d8] sm:$0xf]
        %v5143 = vld [vmem:[%s5023 + $0x1dc] sm:$0xf]
        %v5144 = vld [vmem:[%s5023 + $0x1e0] sm:$0xf]
        %v5145 = vld [vmem:[%s5023 + $0x1e4] sm:$0xf]
        %v5146 = vld [vmem:[%s5023 + $0x1e8] sm:$0xf]
        %v5147 = vld [vmem:[%s5023 + $0x1ec] sm:$0xf]
        %v5148 = vld [vmem:[%s5023 + $0x1f0] sm:$0xf]
        %v5149 = vld [vmem:[%s5023 + $0x1f4] sm:$0xf]
        %v5150 = vld [vmem:[%s5023 + $0x1f8] sm:$0xf]
        %v5151 = vld [vmem:[%s5023 + $0x1fc] sm:$0xf]
        %v5152 = vld [vmem:[%s5023 + $0x200] sm:$0xf]
        %v5153 = vld [vmem:[%s5023 + $0x204] sm:$0xf]
        %v5154 = vld [vmem:[%s5023 + $0x208] sm:$0xf]
        %v5155 = vld [vmem:[%s5023 + $0x20c] sm:$0xf]
        %v5156 = vld [vmem:[%s5023 + $0x210] sm:$0xf]
        %v5157 = vld [vmem:[%s5023 + $0x214] sm:$0xf]
        %v5158 = vld [vmem:[%s5023 + $0x218] sm:$0xf]
        %v5159 = vld [vmem:[%s5023 + $0x21c] sm:$0xf]
        %v5160 = vld [vmem:[%s5023 + $0x220] sm:$0xf]
        %v5161 = vld [vmem:[%s5023 + $0x224] sm:$0xf]
        %v5162 = vld [vmem:[%s5023 + $0x228] sm:$0xf]
        %v5163 = vld [vmem:[%s5023 + $0x22c] sm:$0xf]
        %v5164 = vld [vmem:[%s5023 + $0x230] sm:$0xf]
        %v5165 = vld [vmem:[%s5023 + $0x234] sm:$0xf]
        %v5166 = vld [vmem:[%s5023 + $0x238] sm:$0xf]
        %v5167 = vld [vmem:[%s5023 + $0x23c] sm:$0xf]
        %s5168 = scalar_lea.vmem [#allocation9], 4
        %v5169 = vld [vmem:[%s5168] sm:$0x1]
        %v5171 = vlaneseq
        %v5172 = vshrl.u32 %v5171, 7
        %v5173 = vsub.s32 0, %v5172
        %v5174 = vrot.slane %v5169, %v5173
        %v5320 = vunpack.c.l.b16 %v5024
        %v5321 = vunpack.c.l.b16 %v5025
        %v5322 = vunpack.c.l.b16 %v5026
        %v5323 = vunpack.c.l.b16 %v5027
        %v5324 = vunpack.c.l.b16 %v5028
        %v5325 = vunpack.c.l.b16 %v5029
        %v5326 = vunpack.c.l.b16 %v5030
        %v5327 = vunpack.c.l.b16 %v5031
        %v5328 = vunpack.c.l.b16 %v5032
        %v5329 = vunpack.c.l.b16 %v5033
        %v5330 = vunpack.c.l.b16 %v5034
        %v5331 = vunpack.c.l.b16 %v5035
        %v5332 = vunpack.c.l.b16 %v5036
        %v5333 = vunpack.c.l.b16 %v5037
        %v5334 = vunpack.c.l.b16 %v5038
        %v5335 = vunpack.c.l.b16 %v5039
        %v5336 = vunpack.c.l.b16 %v5040
        %v5337 = vunpack.c.l.b16 %v5041
        %v5338 = vunpack.c.l.b16 %v5042
        %v5339 = vunpack.c.l.b16 %v5043
        %v5340 = vunpack.c.l.b16 %v5044
        %v5341 = vunpack.c.l.b16 %v5045
        %v5342 = vunpack.c.l.b16 %v5046
        %v5343 = vunpack.c.l.b16 %v5047
        %v5344 = vunpack.c.l.b16 %v5048
        %v5345 = vunpack.c.l.b16 %v5049
        %v5346 = vunpack.c.l.b16 %v5050
        %v5347 = vunpack.c.l.b16 %v5051
        %v5348 = vunpack.c.l.b16 %v5052
        %v5349 = vunpack.c.l.b16 %v5053
        %v5350 = vunpack.c.l.b16 %v5054
        %v5351 = vunpack.c.l.b16 %v5055
        %v5352 = vunpack.c.l.b16 %v5056
        %v5353 = vunpack.c.l.b16 %v5057
        %v5354 = vunpack.c.l.b16 %v5058
        %v5355 = vunpack.c.l.b16 %v5059
        %v5356 = vunpack.c.l.b16 %v5060
        %v5357 = vunpack.c.l.b16 %v5061
        %v5358 = vunpack.c.l.b16 %v5062
        %v5359 = vunpack.c.l.b16 %v5063
        %v5360 = vunpack.c.l.b16 %v5064
        %v5361 = vunpack.c.l.b16 %v5065
        %v5362 = vunpack.c.l.b16 %v5066
        %v5363 = vunpack.c.l.b16 %v5067
        %v5364 = vunpack.c.l.b16 %v5068
        %v5365 = vunpack.c.l.b16 %v5069
        %v5366 = vunpack.c.l.b16 %v5070
        %v5367 = vunpack.c.l.b16 %v5071
        %v5368 = vunpack.c.l.b16 %v5072
        %v5369 = vunpack.c.l.b16 %v5073
        %v5370 = vunpack.c.l.b16 %v5074
        %v5371 = vunpack.c.l.b16 %v5075
        %v5372 = vunpack.c.l.b16 %v5076
        %v5373 = vunpack.c.l.b16 %v5077
        %v5374 = vunpack.c.l.b16 %v5078
        %v5375 = vunpack.c.l.b16 %v5079
        %v5376 = vunpack.c.l.b16 %v5080
        %v5377 = vunpack.c.l.b16 %v5081
        %v5378 = vunpack.c.l.b16 %v5082
        %v5379 = vunpack.c.l.b16 %v5083
        %v5380 = vunpack.c.l.b16 %v5084
        %v5381 = vunpack.c.l.b16 %v5085
        %v5382 = vunpack.c.l.b16 %v5086
        %v5383 = vunpack.c.l.b16 %v5087
        %v5384 = vunpack.c.l.b16 %v5088
        %v5385 = vunpack.c.l.b16 %v5089
        %v5386 = vunpack.c.l.b16 %v5090
        %v5387 = vunpack.c.l.b16 %v5091
        %v5388 = vunpack.c.l.b16 %v5092
        %v5389 = vunpack.c.l.b16 %v5093
        %v5390 = vunpack.c.l.b16 %v5094
        %v5391 = vunpack.c.l.b16 %v5095
        %v5392 = vunpack.c.l.b16 %v5096
        %v5393 = vunpack.c.l.b16 %v5097
        %v5394 = vunpack.c.l.b16 %v5098
        %v5395 = vunpack.c.l.b16 %v5099
        %v5396 = vunpack.c.l.b16 %v5100
        %v5397 = vunpack.c.l.b16 %v5101
        %v5398 = vunpack.c.l.b16 %v5102
        %v5399 = vunpack.c.l.b16 %v5103
        %v5400 = vunpack.c.l.b16 %v5104
        %v5401 = vunpack.c.l.b16 %v5105
        %v5402 = vunpack.c.l.b16 %v5106
        %v5403 = vunpack.c.l.b16 %v5107
        %v5404 = vunpack.c.l.b16 %v5108
        %v5405 = vunpack.c.l.b16 %v5109
        %v5406 = vunpack.c.l.b16 %v5110
        %v5407 = vunpack.c.l.b16 %v5111
        %v5408 = vunpack.c.l.b16 %v5112
        %v5409 = vunpack.c.l.b16 %v5113
        %v5410 = vunpack.c.l.b16 %v5114
        %v5411 = vunpack.c.l.b16 %v5115
        %v5412 = vunpack.c.l.b16 %v5116
        %v5413 = vunpack.c.l.b16 %v5117
        %v5414 = vunpack.c.l.b16 %v5118
        %v5415 = vunpack.c.l.b16 %v5119
        %v5416 = vunpack.c.l.b16 %v5120
        %v5417 = vunpack.c.l.b16 %v5121
        %v5418 = vunpack.c.l.b16 %v5122
        %v5419 = vunpack.c.l.b16 %v5123
        %v5420 = vunpack.c.l.b16 %v5124
        %v5421 = vunpack.c.l.b16 %v5125
        %v5422 = vunpack.c.l.b16 %v5126
        %v5423 = vunpack.c.l.b16 %v5127
        %v5424 = vunpack.c.l.b16 %v5128
        %v5425 = vunpack.c.l.b16 %v5129
        %v5426 = vunpack.c.l.b16 %v5130
        %v5427 = vunpack.c.l.b16 %v5131
        %v5428 = vunpack.c.l.b16 %v5132
        %v5429 = vunpack.c.l.b16 %v5133
        %v5430 = vunpack.c.l.b16 %v5134
        %v5431 = vunpack.c.l.b16 %v5135
        %v5432 = vunpack.c.l.b16 %v5136
        %v5433 = vunpack.c.l.b16 %v5137
        %v5434 = vunpack.c.l.b16 %v5138
        %v5435 = vunpack.c.l.b16 %v5139
        %v5436 = vunpack.c.l.b16 %v5140
        %v5437 = vunpack.c.l.b16 %v5141
        %v5438 = vunpack.c.l.b16 %v5142
        %v5439 = vunpack.c.l.b16 %v5143
        %v5440 = vunpack.c.l.b16 %v5144
        %v5441 = vunpack.c.l.b16 %v5145
        %v5442 = vunpack.c.l.b16 %v5146
        %v5443 = vunpack.c.l.b16 %v5147
        %v5444 = vunpack.c.l.b16 %v5148
        %v5445 = vunpack.c.l.b16 %v5149
        %v5446 = vunpack.c.l.b16 %v5150
        %v5447 = vunpack.c.l.b16 %v5151
        %v5448 = vunpack.c.l.b16 %v5152
        %v5449 = vunpack.c.l.b16 %v5153
        %v5450 = vunpack.c.l.b16 %v5154
        %v5451 = vunpack.c.l.b16 %v5155
        %v5452 = vunpack.c.l.b16 %v5156
        %v5453 = vunpack.c.l.b16 %v5157
        %v5454 = vunpack.c.l.b16 %v5158
        %v5455 = vunpack.c.l.b16 %v5159
        %v5456 = vunpack.c.l.b16 %v5160
        %v5457 = vunpack.c.l.b16 %v5161
        %v5458 = vunpack.c.l.b16 %v5162
        %v5459 = vunpack.c.l.b16 %v5163
        %v5460 = vunpack.c.l.b16 %v5164
        %v5461 = vunpack.c.l.b16 %v5165
        %v5462 = vunpack.c.l.b16 %v5166
        %v5463 = vunpack.c.l.b16 %v5167
        %v5464 = vpack.c.b16 %v5321, %v5320
        %v5465 = vpack.c.b16 %v5323, %v5322
        %v5466 = vpack.c.b16 %v5325, %v5324
        %v5467 = vpack.c.b16 %v5327, %v5326
        %v5468 = vpack.c.b16 %v5329, %v5328
        %v5469 = vpack.c.b16 %v5331, %v5330
        %v5470 = vpack.c.b16 %v5333, %v5332
        %v5471 = vpack.c.b16 %v5335, %v5334
        %v5472 = vpack.c.b16 %v5337, %v5336
        %v5473 = vpack.c.b16 %v5339, %v5338
        %v5474 = vpack.c.b16 %v5341, %v5340
        %v5475 = vpack.c.b16 %v5343, %v5342
        %v5476 = vpack.c.b16 %v5345, %v5344
        %v5477 = vpack.c.b16 %v5347, %v5346
        %v5478 = vpack.c.b16 %v5349, %v5348
        %v5479 = vpack.c.b16 %v5351, %v5350
        %v5480 = vpack.c.b16 %v5353, %v5352
        %v5481 = vpack.c.b16 %v5355, %v5354
        %v5482 = vpack.c.b16 %v5357, %v5356
        %v5483 = vpack.c.b16 %v5359, %v5358
        %v5484 = vpack.c.b16 %v5361, %v5360
        %v5485 = vpack.c.b16 %v5363, %v5362
        %v5486 = vpack.c.b16 %v5365, %v5364
        %v5487 = vpack.c.b16 %v5367, %v5366
        %v5488 = vpack.c.b16 %v5369, %v5368
        %v5489 = vpack.c.b16 %v5371, %v5370
        %v5490 = vpack.c.b16 %v5373, %v5372
        %v5491 = vpack.c.b16 %v5375, %v5374
        %v5492 = vpack.c.b16 %v5377, %v5376
        %v5493 = vpack.c.b16 %v5379, %v5378
        %v5494 = vpack.c.b16 %v5381, %v5380
        %v5495 = vpack.c.b16 %v5383, %v5382
        %v5496 = vpack.c.b16 %v5385, %v5384
        %v5497 = vpack.c.b16 %v5387, %v5386
        %v5498 = vpack.c.b16 %v5389, %v5388
        %v5499 = vpack.c.b16 %v5391, %v5390
        %v5500 = vpack.c.b16 %v5393, %v5392
        %v5501 = vpack.c.b16 %v5395, %v5394
        %v5502 = vpack.c.b16 %v5397, %v5396
        %v5503 = vpack.c.b16 %v5399, %v5398
        %v5504 = vpack.c.b16 %v5401, %v5400
        %v5505 = vpack.c.b16 %v5403, %v5402
        %v5506 = vpack.c.b16 %v5405, %v5404
        %v5507 = vpack.c.b16 %v5407, %v5406
        %v5508 = vpack.c.b16 %v5409, %v5408
        %v5509 = vpack.c.b16 %v5411, %v5410
        %v5510 = vpack.c.b16 %v5413, %v5412
        %v5511 = vpack.c.b16 %v5415, %v5414
        %v5512 = vpack.c.b16 %v5417, %v5416
        %v5513 = vpack.c.b16 %v5419, %v5418
        %v5514 = vpack.c.b16 %v5421, %v5420
        %v5515 = vpack.c.b16 %v5423, %v5422
        %v5516 = vpack.c.b16 %v5425, %v5424
        %v5517 = vpack.c.b16 %v5427, %v5426
        %v5518 = vpack.c.b16 %v5429, %v5428
        %v5519 = vpack.c.b16 %v5431, %v5430
        %v5520 = vpack.c.b16 %v5433, %v5432
        %v5521 = vpack.c.b16 %v5435, %v5434
        %v5522 = vpack.c.b16 %v5437, %v5436
        %v5523 = vpack.c.b16 %v5439, %v5438
        %v5524 = vpack.c.b16 %v5441, %v5440
        %v5525 = vpack.c.b16 %v5443, %v5442
        %v5526 = vpack.c.b16 %v5445, %v5444
        %v5527 = vpack.c.b16 %v5447, %v5446
        %v5528 = vpack.c.b16 %v5449, %v5448
        %v5529 = vpack.c.b16 %v5451, %v5450
        %v5530 = vpack.c.b16 %v5453, %v5452
        %v5531 = vpack.c.b16 %v5455, %v5454
        %v5532 = vpack.c.b16 %v5457, %v5456
        %v5533 = vpack.c.b16 %v5459, %v5458
        %v5534 = vpack.c.b16 %v5461, %v5460
        %v5535 = vpack.c.b16 %v5463, %v5462
        %5608 = vmatprep.subr.bf16.mxu0 0
        %5609 = vmatpush1.bf16.msra.mxu0 %v5471
        %5610 = vmatprep.subr.bf16.mxu0 0
        %5611 = vmatpush1.bf16.msra.mxu0 %v5470
        %5612 = vmatprep.subr.bf16.mxu0 0
        %5613 = vmatpush1.bf16.msra.mxu0 %v5469
        %5614 = vmatprep.subr.bf16.mxu0 0
        %5615 = vmatpush1.bf16.msra.mxu0 %v5468
        %5616 = vmatprep.subr.bf16.mxu0 0
        %5617 = vmatpush1.bf16.msra.mxu0 %v5467
        %5618 = vmatprep.subr.bf16.mxu0 0
        %5619 = vmatpush1.bf16.msra.mxu0 %v5466
        %5620 = vmatprep.subr.bf16.mxu0 0
        %5621 = vmatpush1.bf16.msra.mxu0 %v5465
        %5622 = vmatprep.subr.bf16.mxu0 0
        %5623 = vmatpush1.bf16.msra.mxu0 %v5464
        %5624 = vmatprep.subr.bf16.mxu0 0
        %5625 = vmatpush2.bf16.msra.mxu0 %v5479
        %5626 = vmatprep.subr.bf16.mxu0 0
        %5627 = vmatpush2.bf16.msra.mxu0 %v5478
        %5628 = vmatprep.subr.bf16.mxu0 0
        %5629 = vmatpush2.bf16.msra.mxu0 %v5477
        %5630 = vmatprep.subr.bf16.mxu0 0
        %5631 = vmatpush2.bf16.msra.mxu0 %v5476
        %5632 = vmatprep.subr.bf16.mxu0 0
        %5633 = vmatpush2.bf16.msra.mxu0 %v5475
        %5634 = vmatprep.subr.bf16.mxu0 0
        %5635 = vmatpush2.bf16.msra.mxu0 %v5474
        %5636 = vmatprep.subr.bf16.mxu0 0
        %5637 = vmatpush2.bf16.msra.mxu0 %v5473
        %5638 = vmatprep.subr.bf16.mxu0 0
        %5639 = vmatpush2.bf16.msra.mxu0 %v5472
        %5640 = vmatprep.mubr.bf16.mxu0 %v4865
        %5641 = vmatmul.mubr.bf16.gmra.mxu0 %v4872
        %v5642 = vpop.f32.mrf.mxu0
        %v5643 = vadd.f32 %v5174, %v5642
        %v5644 = vpop.f32.mrf.mxu0
        %v5645 = vpop.f32.mrf.mxu0
        %v5646 = vadd.f32 %v5174, %v5645
        %v5647 = vpop.f32.mrf.mxu0
        %5648 = vmatprep.mubr.bf16.mxu0 %v4866
        %5649 = vmatmul.mubr.bf16.gmra.mxu0 %v4875
        %v5650 = vpop.f32.mrf.mxu0
        %v5651 = vadd.f32 %v5174, %v5650
        %v5652 = vpop.f32.mrf.mxu0
        %v5653 = vpop.f32.mrf.mxu0
        %v5654 = vadd.f32 %v5174, %v5653
        %v5655 = vpop.f32.mrf.mxu0
        %5656 = vdwg.mxu0
        %5657 = vmatprep.subr.bf16.mxu0 0
        %5658 = vmatpush1.bf16.msra.mxu0 %v5487
        %5659 = vmatprep.subr.bf16.mxu0 0
        %5660 = vmatpush1.bf16.msra.mxu0 %v5486
        %5661 = vmatprep.subr.bf16.mxu0 0
        %5662 = vmatpush1.bf16.msra.mxu0 %v5485
        %5663 = vmatprep.subr.bf16.mxu0 0
        %5664 = vmatpush1.bf16.msra.mxu0 %v5484
        %5665 = vmatprep.subr.bf16.mxu0 0
        %5666 = vmatpush1.bf16.msra.mxu0 %v5483
        %5667 = vmatprep.subr.bf16.mxu0 0
        %5668 = vmatpush1.bf16.msra.mxu0 %v5482
        %5669 = vmatprep.subr.bf16.mxu0 0
        %5670 = vmatpush1.bf16.msra.mxu0 %v5481
        %5671 = vmatprep.subr.bf16.mxu0 0
        %5672 = vmatpush1.bf16.msra.mxu0 %v5480
        %5673 = vmatprep.subr.bf16.mxu0 0
        %5674 = vmatpush2.bf16.msra.mxu0 %v5495
        %5675 = vmatprep.subr.bf16.mxu0 0
        %5676 = vmatpush2.bf16.msra.mxu0 %v5494
        %5677 = vmatprep.subr.bf16.mxu0 0
        %5678 = vmatpush2.bf16.msra.mxu0 %v5493
        %5679 = vmatprep.subr.bf16.mxu0 0
        %5680 = vmatpush2.bf16.msra.mxu0 %v5492
        %5681 = vmatprep.subr.bf16.mxu0 0
        %5682 = vmatpush2.bf16.msra.mxu0 %v5491
        %5683 = vmatprep.subr.bf16.mxu0 0
        %5684 = vmatpush2.bf16.msra.mxu0 %v5490
        %5685 = vmatprep.subr.bf16.mxu0 0
        %5686 = vmatpush2.bf16.msra.mxu0 %v5489
        %5687 = vmatprep.subr.bf16.mxu0 0
        %5688 = vmatpush2.bf16.msra.mxu0 %v5488
        %5689 = vmatprep.mubr.bf16.mxu0 %v4956
        %5690 = vmatmul.mubr.bf16.gmra.mxu0 %v4882
        %v5691 = vpop.f32.mrf.mxu0
        %v5692 = vadd.f32 %v5643, %v5691
        %v5693 = vpop.f32.mrf.mxu0
        %v5694 = vpop.f32.mrf.mxu0
        %v5695 = vadd.f32 %v5646, %v5694
        %v5696 = vpop.f32.mrf.mxu0
        %5697 = vmatprep.mubr.bf16.mxu0 %v4959
        %5698 = vmatmul.mubr.bf16.gmra.mxu0 %v4885
        %v5699 = vpop.f32.mrf.mxu0
        %v5700 = vadd.f32 %v5651, %v5699
        %v5701 = vpop.f32.mrf.mxu0
        %v5702 = vpop.f32.mrf.mxu0
        %v5703 = vadd.f32 %v5654, %v5702
        %v5704 = vpop.f32.mrf.mxu0
        %5705 = vdwg.mxu0
        %5706 = vmatprep.subr.bf16.mxu0 0
        %5707 = vmatpush1.bf16.msra.mxu0 %v5503
        %5708 = vmatprep.subr.bf16.mxu0 0
        %5709 = vmatpush1.bf16.msra.mxu0 %v5502
        %5710 = vmatprep.subr.bf16.mxu0 0
        %5711 = vmatpush1.bf16.msra.mxu0 %v5501
        %5712 = vmatprep.subr.bf16.mxu0 0
        %5713 = vmatpush1.bf16.msra.mxu0 %v5500
        %5714 = vmatprep.subr.bf16.mxu0 0
        %5715 = vmatpush1.bf16.msra.mxu0 %v5499
        %5716 = vmatprep.subr.bf16.mxu0 0
        %5717 = vmatpush1.bf16.msra.mxu0 %v5498
        %5718 = vmatprep.subr.bf16.mxu0 0
        %5719 = vmatpush1.bf16.msra.mxu0 %v5497
        %5720 = vmatprep.subr.bf16.mxu0 0
        %5721 = vmatpush1.bf16.msra.mxu0 %v5496
        %5722 = vmatprep.subr.bf16.mxu0 0
        %5723 = vmatpush2.bf16.msra.mxu0 %v5511
        %5724 = vmatprep.subr.bf16.mxu0 0
        %5725 = vmatpush2.bf16.msra.mxu0 %v5510
        %5726 = vmatprep.subr.bf16.mxu0 0
        %5727 = vmatpush2.bf16.msra.mxu0 %v5509
        %5728 = vmatprep.subr.bf16.mxu0 0
        %5729 = vmatpush2.bf16.msra.mxu0 %v5508
        %5730 = vmatprep.subr.bf16.mxu0 0
        %5731 = vmatpush2.bf16.msra.mxu0 %v5507
        %5732 = vmatprep.subr.bf16.mxu0 0
        %5733 = vmatpush2.bf16.msra.mxu0 %v5506
        %5734 = vmatprep.subr.bf16.mxu0 0
        %5735 = vmatpush2.bf16.msra.mxu0 %v5505
        %5736 = vmatprep.subr.bf16.mxu0 0
        %5737 = vmatpush2.bf16.msra.mxu0 %v5504
        %5738 = vmatprep.mubr.bf16.mxu0 %v4966
        %5739 = vmatmul.mubr.bf16.gmra.mxu0 %v4949
        %v5740 = vpop.f32.mrf.mxu0
        %v5741 = vadd.f32 %v5692, %v5740
        %v5742 = vpop.f32.mrf.mxu0
        %v5743 = vpop.f32.mrf.mxu0
        %v5744 = vadd.f32 %v5695, %v5743
        %v5745 = vpop.f32.mrf.mxu0
        %5746 = vmatprep.mubr.bf16.mxu0 %v4969
        %5747 = vmatmul.mubr.bf16.gmra.mxu0 %v4950
        %v5748 = vpop.f32.mrf.mxu0
        %v5749 = vadd.f32 %v5700, %v5748
        %v5750 = vpop.f32.mrf.mxu0
        %v5751 = vpop.f32.mrf.mxu0
        %v5752 = vadd.f32 %v5703, %v5751
        %v5753 = vpop.f32.mrf.mxu0
        %5754 = vdwg.mxu0
        %5755 = vmatprep.subr.bf16.mxu0 0
        %5756 = vmatpush1.bf16.msra.mxu0 %v5519
        %5757 = vmatprep.subr.bf16.mxu0 0
        %5758 = vmatpush1.bf16.msra.mxu0 %v5518
        %5759 = vmatprep.subr.bf16.mxu0 0
        %5760 = vmatpush1.bf16.msra.mxu0 %v5517
        %5761 = vmatprep.subr.bf16.mxu0 0
        %5762 = vmatpush1.bf16.msra.mxu0 %v5516
        %5763 = vmatprep.subr.bf16.mxu0 0
        %5764 = vmatpush1.bf16.msra.mxu0 %v5515
        %5765 = vmatprep.subr.bf16.mxu0 0
        %5766 = vmatpush1.bf16.msra.mxu0 %v5514
        %5767 = vmatprep.subr.bf16.mxu0 0
        %5768 = vmatpush1.bf16.msra.mxu0 %v5513
        %5769 = vmatprep.subr.bf16.mxu0 0
        %5770 = vmatpush1.bf16.msra.mxu0 %v5512
        %5771 = vmatprep.subr.bf16.mxu0 0
        %5772 = vmatpush2.bf16.msra.mxu0 %v5527
        %5773 = vmatprep.subr.bf16.mxu0 0
        %5774 = vmatpush2.bf16.msra.mxu0 %v5526
        %5775 = vmatprep.subr.bf16.mxu0 0
        %5776 = vmatpush2.bf16.msra.mxu0 %v5525
        %5777 = vmatprep.subr.bf16.mxu0 0
        %5778 = vmatpush2.bf16.msra.mxu0 %v5524
        %5779 = vmatprep.subr.bf16.mxu0 0
        %5780 = vmatpush2.bf16.msra.mxu0 %v5523
        %5781 = vmatprep.subr.bf16.mxu0 0
        %5782 = vmatpush2.bf16.msra.mxu0 %v5522
        %5783 = vmatprep.subr.bf16.mxu0 0
        %5784 = vmatpush2.bf16.msra.mxu0 %v5521
        %5785 = vmatprep.subr.bf16.mxu0 0
        %5786 = vmatpush2.bf16.msra.mxu0 %v5520
        %5787 = vmatprep.mubr.bf16.mxu0 %v4995
        %5788 = vmatmul.mubr.bf16.gmra.mxu0 %v5002
        %v5789 = vpop.f32.mrf.mxu0
        %v5790 = vadd.f32 %v5741, %v5789
        %v5791 = vpop.f32.mrf.mxu0
        %v5792 = vpop.f32.mrf.mxu0
        %v5793 = vadd.f32 %v5744, %v5792
        %v5794 = vpop.f32.mrf.mxu0
        %5795 = vmatprep.mubr.bf16.mxu0 %v4996
        %5796 = vmatmul.mubr.bf16.gmra.mxu0 %v5005
        %v5797 = vpop.f32.mrf.mxu0
        %v5798 = vadd.f32 %v5749, %v5797
        %v5799 = vpop.f32.mrf.mxu0
        %v5800 = vpop.f32.mrf.mxu0
        %v5801 = vadd.f32 %v5752, %v5800
        %v5802 = vpop.f32.mrf.mxu0
        %5803 = vdwg.mxu0
        %5804 = vmatprep.subr.bf16.mxu0 0
        %5805 = vmatpush1.bf16.msra.mxu0 %v5535
        %5806 = vmatprep.subr.bf16.mxu0 0
        %5807 = vmatpush1.bf16.msra.mxu0 %v5534
        %5808 = vmatprep.subr.bf16.mxu0 0
        %5809 = vmatpush1.bf16.msra.mxu0 %v5533
        %5810 = vmatprep.subr.bf16.mxu0 0
        %5811 = vmatpush1.bf16.msra.mxu0 %v5532
        %5812 = vmatprep.subr.bf16.mxu0 0
        %5813 = vmatpush1.bf16.msra.mxu0 %v5531
        %5814 = vmatprep.subr.bf16.mxu0 0
        %5815 = vmatpush1.bf16.msra.mxu0 %v5530
        %5816 = vmatprep.subr.bf16.mxu0 0
        %5817 = vmatpush1.bf16.msra.mxu0 %v5529
        %5818 = vmatprep.subr.bf16.mxu0 0
        %5819 = vmatpush1.bf16.msra.mxu0 %v5528
        %5820 = vmatprep.subr.bf16.mxu0 0
        %5821 = vmatpush2.bf16.msra.mxu0 0
        %5822 = vmatprep.subr.bf16.mxu0 0
        %5823 = vmatpush2.bf16.msra.mxu0 0
        %5824 = vmatprep.subr.bf16.mxu0 0
        %5825 = vmatpush2.bf16.msra.mxu0 0
        %5826 = vmatprep.subr.bf16.mxu0 0
        %5827 = vmatpush2.bf16.msra.mxu0 0
        %5828 = vmatprep.subr.bf16.mxu0 0
        %5829 = vmatpush2.bf16.msra.mxu0 0
        %5830 = vmatprep.subr.bf16.mxu0 0
        %5831 = vmatpush2.bf16.msra.mxu0 0
        %5832 = vmatprep.subr.bf16.mxu0 0
        %5833 = vmatpush2.bf16.msra.mxu0 0
        %5834 = vmatprep.subr.bf16.mxu0 0
        %5835 = vmatpush2.bf16.msra.mxu0 0
        %5836 = vmatprep.mubr.bf16.mxu0 0
        %5837 = vmatmul.mubr.bf16.gmra.mxu0 %v5012
        %v5838 = vpop.f32.mrf.mxu0
        %v5839 = vadd.f32 %v5790, %v5838
        %v5840 = vpop.f32.mrf.mxu0
        %v5841 = vpop.f32.mrf.mxu0
        %v5842 = vadd.f32 %v5793, %v5841
        %v5843 = vpop.f32.mrf.mxu0
        %5844 = vmatprep.mubr.bf16.mxu0 0
        %5845 = vmatmul.mubr.bf16.gmra.mxu0 %v5015
        %v5846 = vpop.f32.mrf.mxu0
        %v5847 = vadd.f32 %v5798, %v5846
        %v5848 = vpop.f32.mrf.mxu0
        %v5849 = vpop.f32.mrf.mxu0
        %v5850 = vadd.f32 %v5801, %v5849
        %v5851 = vpop.f32.mrf.mxu0
        %5852 = vdwg.mxu0
        %v5853 = vadd.f32 %v5839, %v252
        %v5854 = vadd.f32 %v5842, %v253
        %v5855 = vadd.f32 %v5847, %v254
        %v5856 = vadd.f32 %v5850, %v255
        %5857 = vst [vmem:[%s218] sm:$0xff] %v5853
        %5858 = vst [vmem:[%s218 + $0x8] sm:$0xff] %v5854
        %5859 = vst [vmem:[%s218 + $0x10] sm:$0xff] %v5855
        %5860 = vst [vmem:[%s218 + $0x18] sm:$0xff] %v5856
        %s5861 = sand.u32 %s97, 1
        %s5862 = scalar_lea.sflag [#allocation6], %s5861
        %s5863 = sand.u32 %s97, 1
        %s5864 = smul.addr %s5863, 32
        %s5865 = scalar_lea.vmem [#allocation10], %s5864
        // Predicated region
        $region45: #{tpu_custom_call.1} parent=31 // pred_check
          %p5866 = pneg %p107
        $region46: #{tpu_custom_call.1} parent=31 // pred_check_branch
          %5868 = sbr.rel (%p5866) target = $region48
        $region47: #{tpu_custom_call.1} parent=31 // pred_region
          %s5869 = smul.u32 2, %s21
          %s5871 = ssub.s32 512, 512
          %5872 = vsyncadd %s5862, %s5871
          %s5873 = smul.addr %s5869, 2
          %s5874 = smul.addr %s5873, 128
          %s5875 = scalar_lea.hbm %s3, %s5874
          %s5876 = sshll.u32 %s5865, 4
          %s5877 = int_to_ptr.vmem [resolvable:$true] %s5876
          %5882 = dma.vmem_to_hbm [thread:$0]  %s5877, 512, %s5875, %s5862, 128, 128, 8
        $region48: #{tpu_custom_call.1} parent=31 // pred_fallthru
          _
      $region32: #{tpu_custom_call.1} parent=5 // pred_fallthru
        _
      %p5883 = scmp.le.s32.totalorder 2, %s16
      // Predicated region
      $region49: #{tpu_custom_call.1} parent=5 // pred_check
        %p5884 = pneg %p5883
      $region50: #{tpu_custom_call.1} parent=5 // pred_check_branch
        %5886 = sbr.rel (%p5884) target = $region52
      $region51: #{tpu_custom_call.1} parent=5 // pred_region
        %s5887 = ssub.s32 %s16, 2
        // Predicated region
        $region53: #{tpu_custom_call.1} parent=51 // pred_check
          %p5888 = pneg %p113
        $region54: #{tpu_custom_call.1} parent=51 // pred_check_branch
          %5890 = sbr.rel (%p5888) target = $region56
        $region55: #{tpu_custom_call.1} parent=51 // pred_region
          %s5891 = sand.u32 %s98, 1
          %s5892 = scalar_lea.sflag [#allocation6], %s5891
          %s5893 = sand.u32 %s98, 1
          %s5894 = smul.addr %s5893, 32
          %s5895 = scalar_lea.vmem [#allocation10], %s5894
          %5896 = dma.done %s5892, 512
        $region56: #{tpu_custom_call.1} parent=51 // pred_fallthru
          _
      $region52: #{tpu_custom_call.1} parent=5 // pred_fallthru
        _
    $region6: #{tpu_custom_call.1} parent=1 // loop_footer
      %s20 = sadd.s32 1, %s16
    $region7: #{tpu_custom_call.1} parent=1 // loop_footer_branch
      %15 = sbr.rel target = $region3
    $region8: #{tpu_custom_call.1} parent=1 // loop_exit
      _
    %5897 = vsyncpa [#allocation5], 1
    %s5898 = scalar_lea.sflag [#allocation5], 1
    %5899 = vsyncpa %s5898, 1
    %5900 = vsyncpa [#allocation8], 1
    %5901 = vsyncpa [#allocation6], 1
    %s5902 = scalar_lea.sflag [#allocation6], 1
    %5903 = vsyncpa %s5902, 1

</llo_original>
